<compile_context>
chip_gen: v6e
topology: v6e:2x2x1
jax: 0.10.0
libtpu: 0.0.40
codegen_flags: <defaults>
</compile_context>

<pallas_src>
import math
import numpy as np
import jax
import jax.numpy as jnp
from jax import lax
from jax.experimental import pallas as pl
from jax.experimental.pallas import tpu as pltpu

# ---- static model configuration (mirrors Actor.__init__) --------------------
N_, M_ = 7, 7                                   # partial_obs_dims
IMG_FLAT = N_ * M_ * 3                          # 147
NUM_TASKS = 3
LTL_LEN = 8
ACTION_N = 7                                    # action_space.n
EMB_DIM = 8                                     # ltl_embedder dim
VOCAB = 20                                      # ltl_embedder vocab
GRU_H = 32                                      # ltl_rnn hidden size
IMG_EMB = ((N_ - 1) // 2 - 2) * ((M_ - 1) // 2 - 2) * 64   # 64
EMBED_SIZE = IMG_EMB + NUM_TASKS + 2 * GRU_H               # 131

SLAB_PAD = 256                 # lane-aligned stride of one maxpool-quadrant slab
CONV1_COLS = 4 * SLAB_PAD      # 1024 conv1 output columns (pool-friendly layout)
TB_CAP = 512                   # batch rows per grid step (fits scoped VMEM on all chips)


def _sigmoid(x):
    # robust sigmoid via tanh (no overflow, single EUP op)
    return 0.5 * jnp.tanh(0.5 * x) + 0.5


def actor_kernel(img_ref, task_ref, ltl_ref,
                 w1d_ref, b1d_ref, w2d_ref, b2d_ref, w3d_ref, b3d_ref,
                 giproj_ref, whh_ref, bhhn_ref,
                 wa1i_ref, wa1t_ref, wa1h_ref, ba1_ref, wa2_ref, ba2_ref,
                 out_ref):
    tb = img_ref.shape[0]
    bf16 = jnp.bfloat16
    f32 = jnp.float32

    # ---- image conv stack as 3 dense MXU matmuls -----------------------------
    # conv1 (3->16, 2x2) + ReLU; output columns grouped by pooling quadrant.
    a1 = jnp.dot(img_ref[...].astype(bf16), w1d_ref[...],
                 preferred_element_type=f32) + b1d_ref[...]
    a1 = jnp.maximum(a1, 0.0)                                        # (tb, 1024)
    # MaxPool2d((2,2)): elementwise max over the 4 lane-aligned slabs.
    pooled = jnp.maximum(
        jnp.maximum(a1[:, 0 * SLAB_PAD:1 * SLAB_PAD], a1[:, 1 * SLAB_PAD:2 * SLAB_PAD]),
        jnp.maximum(a1[:, 2 * SLAB_PAD:3 * SLAB_PAD], a1[:, 3 * SLAB_PAD:4 * SLAB_PAD]))
    # conv2 (16->32, 2x2) + ReLU on the 3x3 pooled map (first 144 lanes valid).
    a2 = jnp.dot(pooled.astype(bf16), w2d_ref[...],
                 preferred_element_type=f32) + b2d_ref[...]
    a2 = jnp.maximum(a2, 0.0)                                        # (tb, 128)
    # conv3 (32->64, 2x2) + ReLU consumes conv2's (position-major, 32ch) layout.
    img_emb = jnp.dot(a2.astype(bf16), w3d_ref[...],
                      preferred_element_type=f32) + b3d_ref[...]
    img_emb = jnp.maximum(img_emb, 0.0)                              # (tb, 64)

    # ---- bidirectional GRU (layer 0), both directions fused ------------------
    idx = ltl_ref[...]                                               # (tb, 8) int32
    row = lax.broadcasted_iota(jnp.int32, (2 * tb, 1), 0)
    viota = lax.broadcasted_iota(jnp.int32, (2 * tb, 2 * VOCAB), 1)
    mt = (row < tb).astype(f32)                                      # 1 for fwd rows
    mb = 1.0 - mt
    # b_hh(n) per direction (must stay inside the r*(...) term).
    bhn = bhhn_ref[0:1, :] * mt + bhhn_ref[1:2, :] * mb              # (2tb, 32)
    giproj = giproj_ref[...]                                         # (40, 96) bf16
    whh = whh_ref[...]                                               # (64, 96) bf16

    h = jnp.zeros((2 * tb, GRU_H), f32)
    for t in range(LTL_LEN):                      # unrolled: full LLO visibility
        # fwd half reads token t, bwd half reads token (L-1-t); direction is
        # encoded in the one-hot index (+VOCAB) so one matmul serves both.
        tb_idx = jnp.concatenate(
            [idx[:, t:t + 1], idx[:, LTL_LEN - 1 - t:LTL_LEN - t] + VOCAB], axis=0)
        onehot = (viota == tb_idx).astype(bf16)                      # (2tb, 40)
        gi = jnp.dot(onehot, giproj, preferred_element_type=f32)     # (2tb, 96)
        # block-diagonal recurrent matmul: fwd rows hit W_hh_f, bwd rows W_hh_b
        h_wide = jnp.concatenate([h * mt, h * mb], axis=1).astype(bf16)   # (2tb, 64)
        gh = jnp.dot(h_wide, whh, preferred_element_type=f32)        # (2tb, 96)
        r = _sigmoid(gi[:, 0:GRU_H] + gh[:, 0:GRU_H])
        z = _sigmoid(gi[:, GRU_H:2 * GRU_H] + gh[:, GRU_H:2 * GRU_H])
        n = jnp.tanh(gi[:, 2 * GRU_H:] + r * (gh[:, 2 * GRU_H:] + bhn))
        h = (1.0 - z) * n + z * h
    h_f = h[0:tb, :]                                                 # (tb, 32)
    h_b = h[tb:2 * tb, :]                                            # (tb, 32)

    # ---- actor head: split weights (no 131-lane concat) -> Tanh -> softmax ---
    hid = (jnp.dot(img_emb.astype(bf16), wa1i_ref[...], preferred_element_type=f32)
           + jnp.dot(task_ref[...].astype(bf16), wa1t_ref[...], preferred_element_type=f32)
           + jnp.dot(h_f.astype(bf16), wa1h_ref[0:GRU_H, :], preferred_element_type=f32)
           + jnp.dot(h_b.astype(bf16), wa1h_ref[GRU_H:2 * GRU_H, :], preferred_element_type=f32)
           + ba1_ref[...])
    hid = jnp.tanh(hid)
    logits = jnp.dot(hid.astype(bf16), wa2_ref[...],
                     preferred_element_type=f32) + ba2_ref[...]
    m = jnp.max(logits, axis=-1, keepdims=True)
    e = jnp.exp(logits - m)
    # exact normalization: only 7 lanes per row, exactness is free here
    out_ref[...] = e / jnp.sum(e, axis=-1, keepdims=True)


_WEIGHT_KEYS = ("w1d", "b1d", "w2d", "b2d", "w3d", "b3d",
                "giproj", "whh", "bhhn",
                "wa1_img", "wa1_task", "wa1_h", "ba1", "wa2", "ba2")


def _actor_forward(obs, params):
    B = obs.shape[0]
    img = obs[:, :IMG_FLAT]
    task = obs[:, IMG_FLAT:IMG_FLAT + NUM_TASKS]
    ltl_idx = obs[:, IMG_FLAT + NUM_TASKS:].astype(jnp.int32)

    if B <= TB_CAP:
        tb, bp = B, B                      # single block == full array dims
    else:
        tb = TB_CAP
        bp = ((B + tb - 1) // tb) * tb
    if bp != B:
        pad = ((0, bp - B), (0, 0))
        img = jnp.pad(img, pad)
        task = jnp.pad(task, pad)
        ltl_idx = jnp.pad(ltl_idx, pad)    # padded tokens = 0 (padding_idx)

    weights = [params[k] for k in _WEIGHT_KEYS]
    in_specs = ([pl.BlockSpec((tb, IMG_FLAT), lambda i: (i, 0)),
                 pl.BlockSpec((tb, NUM_TASKS), lambda i: (i, 0)),
                 pl.BlockSpec((tb, LTL_LEN), lambda i: (i, 0))]
                + [pl.BlockSpec(w.shape, lambda i: (0, 0)) for w in weights])

    out = pl.pallas_call(
        actor_kernel,
        grid=(bp // tb,),
        out_shape=jax.ShapeDtypeStruct((bp, ACTION_N), jnp.float32),
        in_specs=in_specs,
        out_specs=pl.BlockSpec((tb, ACTION_N), lambda i: (i, 0)),
        compiler_params=pltpu.CompilerParams(
            dimension_semantics=("parallel",),
            vmem_limit_bytes=32 * 1024 * 1024),
    )(img, task, ltl_idx, *weights)
    return out[:B]


actor_forward = jax.jit(_actor_forward)


# ---- parameter construction --------------------------------------------------
def init_actor_params(key):
    """Torch-equivalent init: Conv2d/GRU/Embedding defaults + init_params on Linear."""
    ks = jax.random.split(key, 18)

    def unif(k, shape, bound):
        return jax.random.uniform(k, shape, jnp.float32, -bound, bound)

    conv1_w = unif(ks[0], (16, 3, 2, 2), 1 / math.sqrt(12))
    conv1_b = unif(ks[1], (16,), 1 / math.sqrt(12))
    conv2_w = unif(ks[2], (32, 16, 2, 2), 1 / math.sqrt(64))
    conv2_b = unif(ks[3], (32,), 1 / math.sqrt(64))
    conv3_w = unif(ks[4], (64, 32, 2, 2), 1 / math.sqrt(128))
    conv3_b = unif(ks[5], (64,), 1 / math.sqrt(128))

    emb_table = jax.random.normal(ks[6], (VOCAB, EMB_DIM), jnp.float32).at[0].set(0.0)

    g = 1 / math.sqrt(GRU_H)
    wih_f = unif(ks[7], (EMB_DIM, 3 * GRU_H), g)    # transposed: (in, 3H), gates [r|z|n]
    whh_f = unif(ks[8], (GRU_H, 3 * GRU_H), g)
    bih_f = unif(ks[9], (3 * GRU_H,), g)
    bhh_f = unif(ks[10], (3 * GRU_H,), g)
    wih_b = unif(ks[11], (EMB_DIM, 3 * GRU_H), g)
    whh_b = unif(ks[12], (GRU_H, 3 * GRU_H), g)
    bih_b = unif(ks[13], (3 * GRU_H,), g)
    bhh_b = unif(ks[14], (3 * GRU_H,), g)
    # GRU layer-1 params intentionally omitted: forward only consumes h[:-2].

    # actor Linear layers follow init_params: N(0,1), normalized over fan-in, bias 0
    wa1 = jax.random.normal(ks[15], (EMBED_SIZE, 64), jnp.float32)
    wa1 = wa1 / jnp.sqrt(jnp.sum(wa1 ** 2, axis=0, keepdims=True))
    ba1 = jnp.zeros((1, 64), jnp.float32)
    wa2 = jax.random.normal(ks[16], (64, ACTION_N), jnp.float32)
    wa2 = wa2 / jnp.sqrt(jnp.sum(wa2 ** 2, axis=0, keepdims=True))
    ba2 = jnp.zeros((1, ACTION_N), jnp.float32)

    return dict(conv1_w=conv1_w, conv1_b=conv1_b, conv2_w=conv2_w, conv2_b=conv2_b,
                conv3_w=conv3_w, conv3_b=conv3_b, emb_table=emb_table,
                wih_f=wih_f, whh_f=whh_f, bih_f=bih_f, bhh_f=bhh_f,
                wih_b=wih_b, whh_b=whh_b, bih_b=bih_b, bhh_b=bhh_b,
                wa1=wa1, ba1=ba1, wa2=wa2, ba2=ba2)


def pack_params(p):
    """Host-side repack of natural (torch-layout) params into MXU-friendly buffers."""
    def np32(x):
        return np.asarray(jax.device_get(x), dtype=np.float32)

    w1, b1 = np32(p["conv1_w"]), np32(p["conv1_b"])
    w2, b2 = np32(p["conv2_w"]), np32(p["conv2_b"])
    w3, b3 = np32(p["conv3_w"]), np32(p["conv3_b"])

    # conv1 (3->16, 2x2) on the flattened HWC image as one dense matmul whose
    # output columns are grouped by pooling quadrant (di,dj), so MaxPool2d((2,2))
    # becomes an elementwise max over 4 lane-aligned SLAB_PAD-wide slabs.
    w1d = np.zeros((IMG_FLAT, CONV1_COLS), np.float32)
    b1d = np.zeros((1, CONV1_COLS), np.float32)
    for di in range(2):
        for dj in range(2):
            slab = di * 2 + dj
            for pi in range(3):
                for pj in range(3):
                    oi, oj = 2 * pi + di, 2 * pj + dj        # conv1 output position
                    col = slab * SLAB_PAD + (pi * 3 + pj) * 16
                    b1d[0, col:col + 16] = b1
                    for kh in range(2):
                        for kw in range(2):
                            r, c = oi + kh, oj + kw
                            for cin in range(3):
                                w1d[(r * 7 + c) * 3 + cin, col:col + 16] = w1[:, cin, kh, kw]

    # conv2 (16->32, 2x2) over the 3x3 pooled map (first 144 lanes of a slab valid,
    # padded lanes are exactly 0 and hit zero rows here).
    w2d = np.zeros((SLAB_PAD, 128), np.float32)
    for qi in range(2):
        for qj in range(2):
            col = (qi * 2 + qj) * 32
            for kh in range(2):
                for kw in range(2):
                    for cin in range(16):
                        w2d[((qi + kh) * 3 + (qj + kw)) * 16 + cin, col:col + 32] = \
                            w2[:, cin, kh, kw]
    b2d = np.tile(b2, 4)[None, :]                               # (1, 128)

    # conv3 (32->64, 2x2) consumes conv2's (position-major, 32ch) layout directly.
    w3d = np.transpose(w3, (2, 3, 1, 0)).reshape(128, 64)
    b3d = b3[None, :]

    # Embedding + GRU input projection + b_ih + b_hh(r,z) folded into a 40-row
    # table (rows 0..19 fwd, rows 20..39 bwd); b_hh(n) kept separate because it
    # sits inside the r*(...) term of the GRU update.
    emb = np32(p["emb_table"])
    def in_proj(wih, bih, bhh):
        gp = emb @ np32(wih) + np32(bih)[None, :]
        gp[:, :2 * GRU_H] += np32(bhh)[None, :2 * GRU_H]
        return gp
    giproj = np.concatenate([in_proj(p["wih_f"], p["bih_f"], p["bhh_f"]),
                             in_proj(p["wih_b"], p["bih_b"], p["bhh_b"])], axis=0)
    whh = np.concatenate([np32(p["whh_f"]), np32(p["whh_b"])], axis=0)     # (64, 96)
    bhhn = np.stack([np32(p["bhh_f"])[2 * GRU_H:],
                     np32(p["bhh_b"])[2 * GRU_H:]], axis=0)                # (2, 32)

    wa1 = np32(p["wa1"])
    wa1_img = wa1[:IMG_EMB]                                     # (64, 64)
    wa1_task = wa1[IMG_EMB:IMG_EMB + NUM_TASKS]                 # (3, 64)
    wa1_h = wa1[IMG_EMB + NUM_TASKS:]                           # (64, 64): [h_f | h_b] rows

    bf = lambda x: jnp.asarray(x, jnp.bfloat16)
    f32 = lambda x: jnp.asarray(x, jnp.float32)
    return dict(
        w1d=bf(w1d), b1d=f32(b1d), w2d=bf(w2d), b2d=f32(b2d),
        w3d=bf(w3d), b3d=f32(b3d),
        giproj=bf(giproj), whh=bf(whh), bhhn=f32(bhhn),
        wa1_img=bf(wa1_img), wa1_task=bf(wa1_task), wa1_h=bf(wa1_h),
        ba1=f32(p["ba1"]), wa2=bf(np32(p["wa2"])), ba2=f32(p["ba2"]))


if __name__ == "__main__":
    key = jax.random.PRNGKey(0)
    pkey, okey, lkey = jax.random.split(key, 3)
    params = pack_params(init_actor_params(pkey))

    B = 2
    img_task = jax.random.uniform(okey, (B, IMG_FLAT + NUM_TASKS), jnp.float32)
    ltl = jax.random.randint(lkey, (B, LTL_LEN), 0, VOCAB).astype(jnp.float32)
    obs = jnp.concatenate([img_task, ltl], axis=-1)             # (2, 147 + 3 + 8) = (2, 158)

    probs = jax.block_until_ready(actor_forward(obs, params))
    assert probs.shape == (B, ACTION_N)
    assert bool(jnp.all(probs >= 0.0))
    assert bool(jnp.all(jnp.abs(jnp.sum(probs, axis=-1) - 1.0) < 1e-4))
    print("KERNEL_OK")
</pallas_src>

<mosaic_0001>
module attributes {stable_mosaic.version = 11 : i64} {
  func.func @actor_kernel(%arg0: i32, %arg1: memref<2x147xf32, #tpu.memory_space<vmem>>, %arg2: memref<2x3xf32, #tpu.memory_space<vmem>>, %arg3: memref<2x8xi32, #tpu.memory_space<vmem>>, %arg4: memref<147x1024xbf16, #tpu.memory_space<vmem>>, %arg5: memref<1x1024xf32, #tpu.memory_space<vmem>>, %arg6: memref<256x128xbf16, #tpu.memory_space<vmem>>, %arg7: memref<1x128xf32, #tpu.memory_space<vmem>>, %arg8: memref<128x64xbf16, #tpu.memory_space<vmem>>, %arg9: memref<1x64xf32, #tpu.memory_space<vmem>>, %arg10: memref<40x96xbf16, #tpu.memory_space<vmem>>, %arg11: memref<64x96xbf16, #tpu.memory_space<vmem>>, %arg12: memref<2x32xf32, #tpu.memory_space<vmem>>, %arg13: memref<64x64xbf16, #tpu.memory_space<vmem>>, %arg14: memref<3x64xbf16, #tpu.memory_space<vmem>>, %arg15: memref<64x64xbf16, #tpu.memory_space<vmem>>, %arg16: memref<1x64xf32, #tpu.memory_space<vmem>>, %arg17: memref<64x7xbf16, #tpu.memory_space<vmem>>, %arg18: memref<1x7xf32, #tpu.memory_space<vmem>>, %arg19: memref<2x7xf32, #tpu.memory_space<vmem>>) attributes {dimension_semantics = [#tpu.dimension_semantics<parallel>], iteration_bounds = array<i64: 1>, scalar_prefetch = 0 : i64, scratch_operands = 0 : i64, tpu.core_type = #tpu.core_type<tc>, window_params = [{transform_indices = @transform_0, window_bounds = array<i64: 2, 147>}, {transform_indices = @transform_1, window_bounds = array<i64: 2, 3>}, {transform_indices = @transform_2, window_bounds = array<i64: 2, 8>}, {pipeline_mode = #tpu.pipeline_mode<synchronous>, transform_indices = @transform_3, window_bounds = array<i64: 147, 1024>}, {pipeline_mode = #tpu.pipeline_mode<synchronous>, transform_indices = @transform_4, window_bounds = array<i64: 1, 1024>}, {pipeline_mode = #tpu.pipeline_mode<synchronous>, transform_indices = @transform_5, window_bounds = array<i64: 256, 128>}, {pipeline_mode = #tpu.pipeline_mode<synchronous>, transform_indices = @transform_6, window_bounds = array<i64: 1, 128>}, {pipeline_mode = #tpu.pipeline_mode<synchronous>, transform_indices = @transform_7, window_bounds = array<i64: 128, 64>}, {pipeline_mode = #tpu.pipeline_mode<synchronous>, transform_indices = @transform_8, window_bounds = array<i64: 1, 64>}, {pipeline_mode = #tpu.pipeline_mode<synchronous>, transform_indices = @transform_9, window_bounds = array<i64: 40, 96>}, {pipeline_mode = #tpu.pipeline_mode<synchronous>, transform_indices = @transform_10, window_bounds = array<i64: 64, 96>}, {pipeline_mode = #tpu.pipeline_mode<synchronous>, transform_indices = @transform_11, window_bounds = array<i64: 2, 32>}, {pipeline_mode = #tpu.pipeline_mode<synchronous>, transform_indices = @transform_12, window_bounds = array<i64: 64, 64>}, {pipeline_mode = #tpu.pipeline_mode<synchronous>, transform_indices = @transform_13, window_bounds = array<i64: 3, 64>}, {pipeline_mode = #tpu.pipeline_mode<synchronous>, transform_indices = @transform_14, window_bounds = array<i64: 64, 64>}, {pipeline_mode = #tpu.pipeline_mode<synchronous>, transform_indices = @transform_15, window_bounds = array<i64: 1, 64>}, {pipeline_mode = #tpu.pipeline_mode<synchronous>, transform_indices = @transform_16, window_bounds = array<i64: 64, 7>}, {pipeline_mode = #tpu.pipeline_mode<synchronous>, transform_indices = @transform_17, window_bounds = array<i64: 1, 7>}, {transform_indices = @transform_18, window_bounds = array<i64: 2, 7>}]} {
    %c0 = arith.constant 0 : index
    %c0_0 = arith.constant 0 : index
    %0 = vector.load %arg1[%c0, %c0_0] : memref<2x147xf32, #tpu.memory_space<vmem>>, vector<2x147xf32>
    %1 = arith.truncf %0 : vector<2x147xf32> to vector<2x147xbf16>
    %c0_1 = arith.constant 0 : index
    %c0_2 = arith.constant 0 : index
    %2 = vector.load %arg4[%c0_1, %c0_2] : memref<147x1024xbf16, #tpu.memory_space<vmem>>, vector<147x1024xbf16>
    %cst = arith.constant dense<0.000000e+00> : vector<2x1024xf32>
    %3 = tpu.matmul %1, %2, %cst {dimension_numbers = #tpu.dot_dimension_numbers<[1], [0], [0], [1], [0, 0, 1, 1], [], []>} : vector<2x147xbf16>, vector<147x1024xbf16>, vector<2x1024xf32> -> vector<2x1024xf32>
    %c0_3 = arith.constant 0 : index
    %c0_4 = arith.constant 0 : index
    %4 = vector.load %arg5[%c0_3, %c0_4] : memref<1x1024xf32, #tpu.memory_space<vmem>>, vector<1x1024xf32>
    %5 = vector.broadcast %4 : vector<1x1024xf32> to vector<2x1024xf32>
    %6 = arith.addf %3, %5 : vector<2x1024xf32>
    %cst_5 = arith.constant 0.000000e+00 : f32
    %7 = vector.broadcast %cst_5 : f32 to vector<2x1024xf32>
    %8 = arith.maximumf %6, %7 : vector<2x1024xf32>
    %9 = vector.extract_strided_slice %8 {offsets = [0, 0], sizes = [2, 256], strides = [1, 1]} : vector<2x1024xf32> to vector<2x256xf32>
    %10 = vector.extract_strided_slice %8 {offsets = [0, 256], sizes = [2, 256], strides = [1, 1]} : vector<2x1024xf32> to vector<2x256xf32>
    %11 = arith.maximumf %9, %10 : vector<2x256xf32>
    %12 = vector.extract_strided_slice %8 {offsets = [0, 512], sizes = [2, 256], strides = [1, 1]} : vector<2x1024xf32> to vector<2x256xf32>
    %13 = vector.extract_strided_slice %8 {offsets = [0, 768], sizes = [2, 256], strides = [1, 1]} : vector<2x1024xf32> to vector<2x256xf32>
    %14 = arith.maximumf %12, %13 : vector<2x256xf32>
    %15 = arith.maximumf %11, %14 : vector<2x256xf32>
    %16 = arith.truncf %15 : vector<2x256xf32> to vector<2x256xbf16>
    %c0_6 = arith.constant 0 : index
    %c0_7 = arith.constant 0 : index
    %17 = vector.load %arg6[%c0_6, %c0_7] : memref<256x128xbf16, #tpu.memory_space<vmem>>, vector<256x128xbf16>
    %cst_8 = arith.constant dense<0.000000e+00> : vector<2x128xf32>
    %18 = tpu.matmul %16, %17, %cst_8 {dimension_numbers = #tpu.dot_dimension_numbers<[1], [0], [0], [1], [0, 0, 1, 1], [], []>} : vector<2x256xbf16>, vector<256x128xbf16>, vector<2x128xf32> -> vector<2x128xf32>
    %c0_9 = arith.constant 0 : index
    %c0_10 = arith.constant 0 : index
    %19 = vector.load %arg7[%c0_9, %c0_10] : memref<1x128xf32, #tpu.memory_space<vmem>>, vector<1x128xf32>
    %20 = vector.broadcast %19 : vector<1x128xf32> to vector<2x128xf32>
    %21 = arith.addf %18, %20 : vector<2x128xf32>
    %cst_11 = arith.constant 0.000000e+00 : f32
    %22 = vector.broadcast %cst_11 : f32 to vector<2x128xf32>
    %23 = arith.maximumf %21, %22 : vector<2x128xf32>
    %24 = arith.truncf %23 : vector<2x128xf32> to vector<2x128xbf16>
    %c0_12 = arith.constant 0 : index
    %c0_13 = arith.constant 0 : index
    %25 = vector.load %arg8[%c0_12, %c0_13] : memref<128x64xbf16, #tpu.memory_space<vmem>>, vector<128x64xbf16>
    %cst_14 = arith.constant dense<0.000000e+00> : vector<2x64xf32>
    %26 = tpu.matmul %24, %25, %cst_14 {dimension_numbers = #tpu.dot_dimension_numbers<[1], [0], [0], [1], [0, 0, 1, 1], [], []>} : vector<2x128xbf16>, vector<128x64xbf16>, vector<2x64xf32> -> vector<2x64xf32>
    %c0_15 = arith.constant 0 : index
    %c0_16 = arith.constant 0 : index
    %27 = vector.load %arg9[%c0_15, %c0_16] : memref<1x64xf32, #tpu.memory_space<vmem>>, vector<1x64xf32>
    %28 = vector.broadcast %27 : vector<1x64xf32> to vector<2x64xf32>
    %29 = arith.addf %26, %28 : vector<2x64xf32>
    %cst_17 = arith.constant 0.000000e+00 : f32
    %30 = vector.broadcast %cst_17 : f32 to vector<2x64xf32>
    %31 = arith.maximumf %29, %30 : vector<2x64xf32>
    %c0_18 = arith.constant 0 : index
    %c0_19 = arith.constant 0 : index
    %32 = vector.load %arg3[%c0_18, %c0_19] : memref<2x8xi32, #tpu.memory_space<vmem>>, vector<2x8xi32>
    %33 = tpu.iota {dimensions = array<i32: 0>} : vector<4x1xi32>
    %34 = tpu.iota {dimensions = array<i32: 1>} : vector<4x40xi32>
    %c2_i32 = arith.constant 2 : i32
    %35 = vector.broadcast %c2_i32 : i32 to vector<4x1xi32>
    %36 = arith.cmpi slt, %33, %35 : vector<4x1xi32>
    %37 = arith.extui %36 : vector<4x1xi1> to vector<4x1xi32>
    %38 = arith.sitofp %37 : vector<4x1xi32> to vector<4x1xf32>
    %cst_20 = arith.constant 1.000000e+00 : f32
    %39 = vector.broadcast %cst_20 : f32 to vector<4x1xf32>
    %40 = arith.subf %39, %38 : vector<4x1xf32>
    %c0_21 = arith.constant 0 : index
    %c0_22 = arith.constant 0 : index
    %41 = vector.load %arg12[%c0_21, %c0_22] : memref<2x32xf32, #tpu.memory_space<vmem>>, vector<1x32xf32>
    %42 = vector.broadcast %41 : vector<1x32xf32> to vector<4x32xf32>
    %43 = vector.broadcast %38 : vector<4x1xf32> to vector<4x32xf32>
    %44 = arith.mulf %42, %43 : vector<4x32xf32>
    %c1 = arith.constant 1 : index
    %c0_23 = arith.constant 0 : index
    %45 = vector.load %arg12[%c1, %c0_23] : memref<2x32xf32, #tpu.memory_space<vmem>>, vector<1x32xf32>
    %46 = vector.broadcast %45 : vector<1x32xf32> to vector<4x32xf32>
    %47 = vector.broadcast %40 : vector<4x1xf32> to vector<4x32xf32>
    %48 = arith.mulf %46, %47 : vector<4x32xf32>
    %49 = arith.addf %44, %48 : vector<4x32xf32>
    %c0_24 = arith.constant 0 : index
    %c0_25 = arith.constant 0 : index
    %50 = vector.load %arg10[%c0_24, %c0_25] : memref<40x96xbf16, #tpu.memory_space<vmem>>, vector<40x96xbf16>
    %c0_26 = arith.constant 0 : index
    %c0_27 = arith.constant 0 : index
    %51 = vector.load %arg11[%c0_26, %c0_27] : memref<64x96xbf16, #tpu.memory_space<vmem>>, vector<64x96xbf16>
    %cst_28 = arith.constant 0.000000e+00 : f32
    %52 = vector.broadcast %cst_28 : f32 to vector<4x32xf32>
    %53 = vector.extract_strided_slice %32 {offsets = [0, 0], sizes = [2, 1], strides = [1, 1]} : vector<2x8xi32> to vector<2x1xi32>
    %54 = vector.extract_strided_slice %32 {offsets = [0, 7], sizes = [2, 1], strides = [1, 1]} : vector<2x8xi32> to vector<2x1xi32>
    %c20_i32 = arith.constant 20 : i32
    %55 = vector.broadcast %c20_i32 : i32 to vector<2x1xi32>
    %56 = arith.addi %54, %55 : vector<2x1xi32>
    %57 = tpu.concatenate %53, %56 in 0 : vector<2x1xi32>, vector<2x1xi32> -> vector<4x1xi32>
    %58 = vector.broadcast %57 : vector<4x1xi32> to vector<4x40xi32>
    %59 = arith.cmpi eq, %34, %58 : vector<4x40xi32>
    %60 = arith.extui %59 : vector<4x40xi1> to vector<4x40xi32>
    %61 = arith.sitofp %60 : vector<4x40xi32> to vector<4x40xf32>
    %62 = arith.truncf %61 : vector<4x40xf32> to vector<4x40xbf16>
    %cst_29 = arith.constant dense<0.000000e+00> : vector<4x96xf32>
    %63 = tpu.matmul %62, %50, %cst_29 {dimension_numbers = #tpu.dot_dimension_numbers<[1], [0], [0], [1], [0, 0, 1, 1], [], []>} : vector<4x40xbf16>, vector<40x96xbf16>, vector<4x96xf32> -> vector<4x96xf32>
    %64 = vector.broadcast %38 : vector<4x1xf32> to vector<4x32xf32>
    %65 = arith.mulf %52, %64 : vector<4x32xf32>
    %66 = vector.broadcast %40 : vector<4x1xf32> to vector<4x32xf32>
    %67 = arith.mulf %52, %66 : vector<4x32xf32>
    %68 = tpu.concatenate %65, %67 in 1 : vector<4x32xf32>, vector<4x32xf32> -> vector<4x64xf32>
    %69 = arith.truncf %68 : vector<4x64xf32> to vector<4x64xbf16>
    %cst_30 = arith.constant dense<0.000000e+00> : vector<4x96xf32>
    %70 = tpu.matmul %69, %51, %cst_30 {dimension_numbers = #tpu.dot_dimension_numbers<[1], [0], [0], [1], [0, 0, 1, 1], [], []>} : vector<4x64xbf16>, vector<64x96xbf16>, vector<4x96xf32> -> vector<4x96xf32>
    %71 = vector.extract_strided_slice %63 {offsets = [0, 0], sizes = [4, 32], strides = [1, 1]} : vector<4x96xf32> to vector<4x32xf32>
    %72 = vector.extract_strided_slice %70 {offsets = [0, 0], sizes = [4, 32], strides = [1, 1]} : vector<4x96xf32> to vector<4x32xf32>
    %73 = arith.addf %71, %72 : vector<4x32xf32>
    %cst_31 = arith.constant 5.000000e-01 : f32
    %74 = vector.broadcast %cst_31 : f32 to vector<4x32xf32>
    %75 = arith.mulf %74, %73 : vector<4x32xf32>
    %76 = math.tanh %75 : vector<4x32xf32>
    %cst_32 = arith.constant 5.000000e-01 : f32
    %77 = vector.broadcast %cst_32 : f32 to vector<4x32xf32>
    %78 = arith.mulf %77, %76 : vector<4x32xf32>
    %cst_33 = arith.constant 5.000000e-01 : f32
    %79 = vector.broadcast %cst_33 : f32 to vector<4x32xf32>
    %80 = arith.addf %78, %79 : vector<4x32xf32>
    %81 = vector.extract_strided_slice %63 {offsets = [0, 32], sizes = [4, 32], strides = [1, 1]} : vector<4x96xf32> to vector<4x32xf32>
    %82 = vector.extract_strided_slice %70 {offsets = [0, 32], sizes = [4, 32], strides = [1, 1]} : vector<4x96xf32> to vector<4x32xf32>
    %83 = arith.addf %81, %82 : vector<4x32xf32>
    %cst_34 = arith.constant 5.000000e-01 : f32
    %84 = vector.broadcast %cst_34 : f32 to vector<4x32xf32>
    %85 = arith.mulf %84, %83 : vector<4x32xf32>
    %86 = math.tanh %85 : vector<4x32xf32>
    %cst_35 = arith.constant 5.000000e-01 : f32
    %87 = vector.broadcast %cst_35 : f32 to vector<4x32xf32>
    %88 = arith.mulf %87, %86 : vector<4x32xf32>
    %cst_36 = arith.constant 5.000000e-01 : f32
    %89 = vector.broadcast %cst_36 : f32 to vector<4x32xf32>
    %90 = arith.addf %88, %89 : vector<4x32xf32>
    %91 = vector.extract_strided_slice %63 {offsets = [0, 64], sizes = [4, 32], strides = [1, 1]} : vector<4x96xf32> to vector<4x32xf32>
    %92 = vector.extract_strided_slice %70 {offsets = [0, 64], sizes = [4, 32], strides = [1, 1]} : vector<4x96xf32> to vector<4x32xf32>
    %93 = arith.addf %92, %49 : vector<4x32xf32>
    %94 = arith.mulf %80, %93 : vector<4x32xf32>
    %95 = arith.addf %91, %94 : vector<4x32xf32>
    %96 = math.tanh %95 : vector<4x32xf32>
    %cst_37 = arith.constant 1.000000e+00 : f32
    %97 = vector.broadcast %cst_37 : f32 to vector<4x32xf32>
    %98 = arith.subf %97, %90 : vector<4x32xf32>
    %99 = arith.mulf %98, %96 : vector<4x32xf32>
    %100 = arith.mulf %90, %52 : vector<4x32xf32>
    %101 = arith.addf %99, %100 : vector<4x32xf32>
    %102 = vector.extract_strided_slice %32 {offsets = [0, 1], sizes = [2, 1], strides = [1, 1]} : vector<2x8xi32> to vector<2x1xi32>
    %103 = vector.extract_strided_slice %32 {offsets = [0, 6], sizes = [2, 1], strides = [1, 1]} : vector<2x8xi32> to vector<2x1xi32>
    %c20_i32_38 = arith.constant 20 : i32
    %104 = vector.broadcast %c20_i32_38 : i32 to vector<2x1xi32>
    %105 = arith.addi %103, %104 : vector<2x1xi32>
    %106 = tpu.concatenate %102, %105 in 0 : vector<2x1xi32>, vector<2x1xi32> -> vector<4x1xi32>
    %107 = vector.broadcast %106 : vector<4x1xi32> to vector<4x40xi32>
    %108 = arith.cmpi eq, %34, %107 : vector<4x40xi32>
    %109 = arith.extui %108 : vector<4x40xi1> to vector<4x40xi32>
    %110 = arith.sitofp %109 : vector<4x40xi32> to vector<4x40xf32>
    %111 = arith.truncf %110 : vector<4x40xf32> to vector<4x40xbf16>
    %cst_39 = arith.constant dense<0.000000e+00> : vector<4x96xf32>
    %112 = tpu.matmul %111, %50, %cst_39 {dimension_numbers = #tpu.dot_dimension_numbers<[1], [0], [0], [1], [0, 0, 1, 1], [], []>} : vector<4x40xbf16>, vector<40x96xbf16>, vector<4x96xf32> -> vector<4x96xf32>
    %113 = vector.broadcast %38 : vector<4x1xf32> to vector<4x32xf32>
    %114 = arith.mulf %101, %113 : vector<4x32xf32>
    %115 = vector.broadcast %40 : vector<4x1xf32> to vector<4x32xf32>
    %116 = arith.mulf %101, %115 : vector<4x32xf32>
    %117 = tpu.concatenate %114, %116 in 1 : vector<4x32xf32>, vector<4x32xf32> -> vector<4x64xf32>
    %118 = arith.truncf %117 : vector<4x64xf32> to vector<4x64xbf16>
    %cst_40 = arith.constant dense<0.000000e+00> : vector<4x96xf32>
    %119 = tpu.matmul %118, %51, %cst_40 {dimension_numbers = #tpu.dot_dimension_numbers<[1], [0], [0], [1], [0, 0, 1, 1], [], []>} : vector<4x64xbf16>, vector<64x96xbf16>, vector<4x96xf32> -> vector<4x96xf32>
    %120 = vector.extract_strided_slice %112 {offsets = [0, 0], sizes = [4, 32], strides = [1, 1]} : vector<4x96xf32> to vector<4x32xf32>
    %121 = vector.extract_strided_slice %119 {offsets = [0, 0], sizes = [4, 32], strides = [1, 1]} : vector<4x96xf32> to vector<4x32xf32>
    %122 = arith.addf %120, %121 : vector<4x32xf32>
    %cst_41 = arith.constant 5.000000e-01 : f32
    %123 = vector.broadcast %cst_41 : f32 to vector<4x32xf32>
    %124 = arith.mulf %123, %122 : vector<4x32xf32>
    %125 = math.tanh %124 : vector<4x32xf32>
    %cst_42 = arith.constant 5.000000e-01 : f32
    %126 = vector.broadcast %cst_42 : f32 to vector<4x32xf32>
    %127 = arith.mulf %126, %125 : vector<4x32xf32>
    %cst_43 = arith.constant 5.000000e-01 : f32
    %128 = vector.broadcast %cst_43 : f32 to vector<4x32xf32>
    %129 = arith.addf %127, %128 : vector<4x32xf32>
    %130 = vector.extract_strided_slice %112 {offsets = [0, 32], sizes = [4, 32], strides = [1, 1]} : vector<4x96xf32> to vector<4x32xf32>
    %131 = vector.extract_strided_slice %119 {offsets = [0, 32], sizes = [4, 32], strides = [1, 1]} : vector<4x96xf32> to vector<4x32xf32>
    %132 = arith.addf %130, %131 : vector<4x32xf32>
    %cst_44 = arith.constant 5.000000e-01 : f32
    %133 = vector.broadcast %cst_44 : f32 to vector<4x32xf32>
    %134 = arith.mulf %133, %132 : vector<4x32xf32>
    %135 = math.tanh %134 : vector<4x32xf32>
    %cst_45 = arith.constant 5.000000e-01 : f32
    %136 = vector.broadcast %cst_45 : f32 to vector<4x32xf32>
    %137 = arith.mulf %136, %135 : vector<4x32xf32>
    %cst_46 = arith.constant 5.000000e-01 : f32
    %138 = vector.broadcast %cst_46 : f32 to vector<4x32xf32>
    %139 = arith.addf %137, %138 : vector<4x32xf32>
    %140 = vector.extract_strided_slice %112 {offsets = [0, 64], sizes = [4, 32], strides = [1, 1]} : vector<4x96xf32> to vector<4x32xf32>
    %141 = vector.extract_strided_slice %119 {offsets = [0, 64], sizes = [4, 32], strides = [1, 1]} : vector<4x96xf32> to vector<4x32xf32>
    %142 = arith.addf %141, %49 : vector<4x32xf32>
    %143 = arith.mulf %129, %142 : vector<4x32xf32>
    %144 = arith.addf %140, %143 : vector<4x32xf32>
    %145 = math.tanh %144 : vector<4x32xf32>
    %cst_47 = arith.constant 1.000000e+00 : f32
    %146 = vector.broadcast %cst_47 : f32 to vector<4x32xf32>
    %147 = arith.subf %146, %139 : vector<4x32xf32>
    %148 = arith.mulf %147, %145 : vector<4x32xf32>
    %149 = arith.mulf %139, %101 : vector<4x32xf32>
    %150 = arith.addf %148, %149 : vector<4x32xf32>
    %151 = vector.extract_strided_slice %32 {offsets = [0, 2], sizes = [2, 1], strides = [1, 1]} : vector<2x8xi32> to vector<2x1xi32>
    %152 = vector.extract_strided_slice %32 {offsets = [0, 5], sizes = [2, 1], strides = [1, 1]} : vector<2x8xi32> to vector<2x1xi32>
    %c20_i32_48 = arith.constant 20 : i32
    %153 = vector.broadcast %c20_i32_48 : i32 to vector<2x1xi32>
    %154 = arith.addi %152, %153 : vector<2x1xi32>
    %155 = tpu.concatenate %151, %154 in 0 : vector<2x1xi32>, vector<2x1xi32> -> vector<4x1xi32>
    %156 = vector.broadcast %155 : vector<4x1xi32> to vector<4x40xi32>
    %157 = arith.cmpi eq, %34, %156 : vector<4x40xi32>
    %158 = arith.extui %157 : vector<4x40xi1> to vector<4x40xi32>
    %159 = arith.sitofp %158 : vector<4x40xi32> to vector<4x40xf32>
    %160 = arith.truncf %159 : vector<4x40xf32> to vector<4x40xbf16>
    %cst_49 = arith.constant dense<0.000000e+00> : vector<4x96xf32>
    %161 = tpu.matmul %160, %50, %cst_49 {dimension_numbers = #tpu.dot_dimension_numbers<[1], [0], [0], [1], [0, 0, 1, 1], [], []>} : vector<4x40xbf16>, vector<40x96xbf16>, vector<4x96xf32> -> vector<4x96xf32>
    %162 = vector.broadcast %38 : vector<4x1xf32> to vector<4x32xf32>
    %163 = arith.mulf %150, %162 : vector<4x32xf32>
    %164 = vector.broadcast %40 : vector<4x1xf32> to vector<4x32xf32>
    %165 = arith.mulf %150, %164 : vector<4x32xf32>
    %166 = tpu.concatenate %163, %165 in 1 : vector<4x32xf32>, vector<4x32xf32> -> vector<4x64xf32>
    %167 = arith.truncf %166 : vector<4x64xf32> to vector<4x64xbf16>
    %cst_50 = arith.constant dense<0.000000e+00> : vector<4x96xf32>
    %168 = tpu.matmul %167, %51, %cst_50 {dimension_numbers = #tpu.dot_dimension_numbers<[1], [0], [0], [1], [0, 0, 1, 1], [], []>} : vector<4x64xbf16>, vector<64x96xbf16>, vector<4x96xf32> -> vector<4x96xf32>
    %169 = vector.extract_strided_slice %161 {offsets = [0, 0], sizes = [4, 32], strides = [1, 1]} : vector<4x96xf32> to vector<4x32xf32>
    %170 = vector.extract_strided_slice %168 {offsets = [0, 0], sizes = [4, 32], strides = [1, 1]} : vector<4x96xf32> to vector<4x32xf32>
    %171 = arith.addf %169, %170 : vector<4x32xf32>
    %cst_51 = arith.constant 5.000000e-01 : f32
    %172 = vector.broadcast %cst_51 : f32 to vector<4x32xf32>
    %173 = arith.mulf %172, %171 : vector<4x32xf32>
    %174 = math.tanh %173 : vector<4x32xf32>
    %cst_52 = arith.constant 5.000000e-01 : f32
    %175 = vector.broadcast %cst_52 : f32 to vector<4x32xf32>
    %176 = arith.mulf %175, %174 : vector<4x32xf32>
    %cst_53 = arith.constant 5.000000e-01 : f32
    %177 = vector.broadcast %cst_53 : f32 to vector<4x32xf32>
    %178 = arith.addf %176, %177 : vector<4x32xf32>
    %179 = vector.extract_strided_slice %161 {offsets = [0, 32], sizes = [4, 32], strides = [1, 1]} : vector<4x96xf32> to vector<4x32xf32>
    %180 = vector.extract_strided_slice %168 {offsets = [0, 32], sizes = [4, 32], strides = [1, 1]} : vector<4x96xf32> to vector<4x32xf32>
    %181 = arith.addf %179, %180 : vector<4x32xf32>
    %cst_54 = arith.constant 5.000000e-01 : f32
    %182 = vector.broadcast %cst_54 : f32 to vector<4x32xf32>
    %183 = arith.mulf %182, %181 : vector<4x32xf32>
    %184 = math.tanh %183 : vector<4x32xf32>
    %cst_55 = arith.constant 5.000000e-01 : f32
    %185 = vector.broadcast %cst_55 : f32 to vector<4x32xf32>
    %186 = arith.mulf %185, %184 : vector<4x32xf32>
    %cst_56 = arith.constant 5.000000e-01 : f32
    %187 = vector.broadcast %cst_56 : f32 to vector<4x32xf32>
    %188 = arith.addf %186, %187 : vector<4x32xf32>
    %189 = vector.extract_strided_slice %161 {offsets = [0, 64], sizes = [4, 32], strides = [1, 1]} : vector<4x96xf32> to vector<4x32xf32>
    %190 = vector.extract_strided_slice %168 {offsets = [0, 64], sizes = [4, 32], strides = [1, 1]} : vector<4x96xf32> to vector<4x32xf32>
    %191 = arith.addf %190, %49 : vector<4x32xf32>
    %192 = arith.mulf %178, %191 : vector<4x32xf32>
    %193 = arith.addf %189, %192 : vector<4x32xf32>
    %194 = math.tanh %193 : vector<4x32xf32>
    %cst_57 = arith.constant 1.000000e+00 : f32
    %195 = vector.broadcast %cst_57 : f32 to vector<4x32xf32>
    %196 = arith.subf %195, %188 : vector<4x32xf32>
    %197 = arith.mulf %196, %194 : vector<4x32xf32>
    %198 = arith.mulf %188, %150 : vector<4x32xf32>
    %199 = arith.addf %197, %198 : vector<4x32xf32>
    %200 = vector.extract_strided_slice %32 {offsets = [0, 3], sizes = [2, 1], strides = [1, 1]} : vector<2x8xi32> to vector<2x1xi32>
    %201 = vector.extract_strided_slice %32 {offsets = [0, 4], sizes = [2, 1], strides = [1, 1]} : vector<2x8xi32> to vector<2x1xi32>
    %c20_i32_58 = arith.constant 20 : i32
    %202 = vector.broadcast %c20_i32_58 : i32 to vector<2x1xi32>
    %203 = arith.addi %201, %202 : vector<2x1xi32>
    %204 = tpu.concatenate %200, %203 in 0 : vector<2x1xi32>, vector<2x1xi32> -> vector<4x1xi32>
    %205 = vector.broadcast %204 : vector<4x1xi32> to vector<4x40xi32>
    %206 = arith.cmpi eq, %34, %205 : vector<4x40xi32>
    %207 = arith.extui %206 : vector<4x40xi1> to vector<4x40xi32>
    %208 = arith.sitofp %207 : vector<4x40xi32> to vector<4x40xf32>
    %209 = arith.truncf %208 : vector<4x40xf32> to vector<4x40xbf16>
    %cst_59 = arith.constant dense<0.000000e+00> : vector<4x96xf32>
    %210 = tpu.matmul %209, %50, %cst_59 {dimension_numbers = #tpu.dot_dimension_numbers<[1], [0], [0], [1], [0, 0, 1, 1], [], []>} : vector<4x40xbf16>, vector<40x96xbf16>, vector<4x96xf32> -> vector<4x96xf32>
    %211 = vector.broadcast %38 : vector<4x1xf32> to vector<4x32xf32>
    %212 = arith.mulf %199, %211 : vector<4x32xf32>
    %213 = vector.broadcast %40 : vector<4x1xf32> to vector<4x32xf32>
    %214 = arith.mulf %199, %213 : vector<4x32xf32>
    %215 = tpu.concatenate %212, %214 in 1 : vector<4x32xf32>, vector<4x32xf32> -> vector<4x64xf32>
    %216 = arith.truncf %215 : vector<4x64xf32> to vector<4x64xbf16>
    %cst_60 = arith.constant dense<0.000000e+00> : vector<4x96xf32>
    %217 = tpu.matmul %216, %51, %cst_60 {dimension_numbers = #tpu.dot_dimension_numbers<[1], [0], [0], [1], [0, 0, 1, 1], [], []>} : vector<4x64xbf16>, vector<64x96xbf16>, vector<4x96xf32> -> vector<4x96xf32>
    %218 = vector.extract_strided_slice %210 {offsets = [0, 0], sizes = [4, 32], strides = [1, 1]} : vector<4x96xf32> to vector<4x32xf32>
    %219 = vector.extract_strided_slice %217 {offsets = [0, 0], sizes = [4, 32], strides = [1, 1]} : vector<4x96xf32> to vector<4x32xf32>
    %220 = arith.addf %218, %219 : vector<4x32xf32>
    %cst_61 = arith.constant 5.000000e-01 : f32
    %221 = vector.broadcast %cst_61 : f32 to vector<4x32xf32>
    %222 = arith.mulf %221, %220 : vector<4x32xf32>
    %223 = math.tanh %222 : vector<4x32xf32>
    %cst_62 = arith.constant 5.000000e-01 : f32
    %224 = vector.broadcast %cst_62 : f32 to vector<4x32xf32>
    %225 = arith.mulf %224, %223 : vector<4x32xf32>
    %cst_63 = arith.constant 5.000000e-01 : f32
    %226 = vector.broadcast %cst_63 : f32 to vector<4x32xf32>
    %227 = arith.addf %225, %226 : vector<4x32xf32>
    %228 = vector.extract_strided_slice %210 {offsets = [0, 32], sizes = [4, 32], strides = [1, 1]} : vector<4x96xf32> to vector<4x32xf32>
    %229 = vector.extract_strided_slice %217 {offsets = [0, 32], sizes = [4, 32], strides = [1, 1]} : vector<4x96xf32> to vector<4x32xf32>
    %230 = arith.addf %228, %229 : vector<4x32xf32>
    %cst_64 = arith.constant 5.000000e-01 : f32
    %231 = vector.broadcast %cst_64 : f32 to vector<4x32xf32>
    %232 = arith.mulf %231, %230 : vector<4x32xf32>
    %233 = math.tanh %232 : vector<4x32xf32>
    %cst_65 = arith.constant 5.000000e-01 : f32
    %234 = vector.broadcast %cst_65 : f32 to vector<4x32xf32>
    %235 = arith.mulf %234, %233 : vector<4x32xf32>
    %cst_66 = arith.constant 5.000000e-01 : f32
    %236 = vector.broadcast %cst_66 : f32 to vector<4x32xf32>
    %237 = arith.addf %235, %236 : vector<4x32xf32>
    %238 = vector.extract_strided_slice %210 {offsets = [0, 64], sizes = [4, 32], strides = [1, 1]} : vector<4x96xf32> to vector<4x32xf32>
    %239 = vector.extract_strided_slice %217 {offsets = [0, 64], sizes = [4, 32], strides = [1, 1]} : vector<4x96xf32> to vector<4x32xf32>
    %240 = arith.addf %239, %49 : vector<4x32xf32>
    %241 = arith.mulf %227, %240 : vector<4x32xf32>
    %242 = arith.addf %238, %241 : vector<4x32xf32>
    %243 = math.tanh %242 : vector<4x32xf32>
    %cst_67 = arith.constant 1.000000e+00 : f32
    %244 = vector.broadcast %cst_67 : f32 to vector<4x32xf32>
    %245 = arith.subf %244, %237 : vector<4x32xf32>
    %246 = arith.mulf %245, %243 : vector<4x32xf32>
    %247 = arith.mulf %237, %199 : vector<4x32xf32>
    %248 = arith.addf %246, %247 : vector<4x32xf32>
    %249 = vector.extract_strided_slice %32 {offsets = [0, 4], sizes = [2, 1], strides = [1, 1]} : vector<2x8xi32> to vector<2x1xi32>
    %250 = vector.extract_strided_slice %32 {offsets = [0, 3], sizes = [2, 1], strides = [1, 1]} : vector<2x8xi32> to vector<2x1xi32>
    %c20_i32_68 = arith.constant 20 : i32
    %251 = vector.broadcast %c20_i32_68 : i32 to vector<2x1xi32>
    %252 = arith.addi %250, %251 : vector<2x1xi32>
    %253 = tpu.concatenate %249, %252 in 0 : vector<2x1xi32>, vector<2x1xi32> -> vector<4x1xi32>
    %254 = vector.broadcast %253 : vector<4x1xi32> to vector<4x40xi32>
    %255 = arith.cmpi eq, %34, %254 : vector<4x40xi32>
    %256 = arith.extui %255 : vector<4x40xi1> to vector<4x40xi32>
    %257 = arith.sitofp %256 : vector<4x40xi32> to vector<4x40xf32>
    %258 = arith.truncf %257 : vector<4x40xf32> to vector<4x40xbf16>
    %cst_69 = arith.constant dense<0.000000e+00> : vector<4x96xf32>
    %259 = tpu.matmul %258, %50, %cst_69 {dimension_numbers = #tpu.dot_dimension_numbers<[1], [0], [0], [1], [0, 0, 1, 1], [], []>} : vector<4x40xbf16>, vector<40x96xbf16>, vector<4x96xf32> -> vector<4x96xf32>
    %260 = vector.broadcast %38 : vector<4x1xf32> to vector<4x32xf32>
    %261 = arith.mulf %248, %260 : vector<4x32xf32>
    %262 = vector.broadcast %40 : vector<4x1xf32> to vector<4x32xf32>
    %263 = arith.mulf %248, %262 : vector<4x32xf32>
    %264 = tpu.concatenate %261, %263 in 1 : vector<4x32xf32>, vector<4x32xf32> -> vector<4x64xf32>
    %265 = arith.truncf %264 : vector<4x64xf32> to vector<4x64xbf16>
    %cst_70 = arith.constant dense<0.000000e+00> : vector<4x96xf32>
    %266 = tpu.matmul %265, %51, %cst_70 {dimension_numbers = #tpu.dot_dimension_numbers<[1], [0], [0], [1], [0, 0, 1, 1], [], []>} : vector<4x64xbf16>, vector<64x96xbf16>, vector<4x96xf32> -> vector<4x96xf32>
    %267 = vector.extract_strided_slice %259 {offsets = [0, 0], sizes = [4, 32], strides = [1, 1]} : vector<4x96xf32> to vector<4x32xf32>
    %268 = vector.extract_strided_slice %266 {offsets = [0, 0], sizes = [4, 32], strides = [1, 1]} : vector<4x96xf32> to vector<4x32xf32>
    %269 = arith.addf %267, %268 : vector<4x32xf32>
    %cst_71 = arith.constant 5.000000e-01 : f32
    %270 = vector.broadcast %cst_71 : f32 to vector<4x32xf32>
    %271 = arith.mulf %270, %269 : vector<4x32xf32>
    %272 = math.tanh %271 : vector<4x32xf32>
    %cst_72 = arith.constant 5.000000e-01 : f32
    %273 = vector.broadcast %cst_72 : f32 to vector<4x32xf32>
    %274 = arith.mulf %273, %272 : vector<4x32xf32>
    %cst_73 = arith.constant 5.000000e-01 : f32
    %275 = vector.broadcast %cst_73 : f32 to vector<4x32xf32>
    %276 = arith.addf %274, %275 : vector<4x32xf32>
    %277 = vector.extract_strided_slice %259 {offsets = [0, 32], sizes = [4, 32], strides = [1, 1]} : vector<4x96xf32> to vector<4x32xf32>
    %278 = vector.extract_strided_slice %266 {offsets = [0, 32], sizes = [4, 32], strides = [1, 1]} : vector<4x96xf32> to vector<4x32xf32>
    %279 = arith.addf %277, %278 : vector<4x32xf32>
    %cst_74 = arith.constant 5.000000e-01 : f32
    %280 = vector.broadcast %cst_74 : f32 to vector<4x32xf32>
    %281 = arith.mulf %280, %279 : vector<4x32xf32>
    %282 = math.tanh %281 : vector<4x32xf32>
    %cst_75 = arith.constant 5.000000e-01 : f32
    %283 = vector.broadcast %cst_75 : f32 to vector<4x32xf32>
    %284 = arith.mulf %283, %282 : vector<4x32xf32>
    %cst_76 = arith.constant 5.000000e-01 : f32
    %285 = vector.broadcast %cst_76 : f32 to vector<4x32xf32>
    %286 = arith.addf %284, %285 : vector<4x32xf32>
    %287 = vector.extract_strided_slice %259 {offsets = [0, 64], sizes = [4, 32], strides = [1, 1]} : vector<4x96xf32> to vector<4x32xf32>
    %288 = vector.extract_strided_slice %266 {offsets = [0, 64], sizes = [4, 32], strides = [1, 1]} : vector<4x96xf32> to vector<4x32xf32>
    %289 = arith.addf %288, %49 : vector<4x32xf32>
    %290 = arith.mulf %276, %289 : vector<4x32xf32>
    %291 = arith.addf %287, %290 : vector<4x32xf32>
    %292 = math.tanh %291 : vector<4x32xf32>
    %cst_77 = arith.constant 1.000000e+00 : f32
    %293 = vector.broadcast %cst_77 : f32 to vector<4x32xf32>
    %294 = arith.subf %293, %286 : vector<4x32xf32>
    %295 = arith.mulf %294, %292 : vector<4x32xf32>
    %296 = arith.mulf %286, %248 : vector<4x32xf32>
    %297 = arith.addf %295, %296 : vector<4x32xf32>
    %298 = vector.extract_strided_slice %32 {offsets = [0, 5], sizes = [2, 1], strides = [1, 1]} : vector<2x8xi32> to vector<2x1xi32>
    %299 = vector.extract_strided_slice %32 {offsets = [0, 2], sizes = [2, 1], strides = [1, 1]} : vector<2x8xi32> to vector<2x1xi32>
    %c20_i32_78 = arith.constant 20 : i32
    %300 = vector.broadcast %c20_i32_78 : i32 to vector<2x1xi32>
    %301 = arith.addi %299, %300 : vector<2x1xi32>
    %302 = tpu.concatenate %298, %301 in 0 : vector<2x1xi32>, vector<2x1xi32> -> vector<4x1xi32>
    %303 = vector.broadcast %302 : vector<4x1xi32> to vector<4x40xi32>
    %304 = arith.cmpi eq, %34, %303 : vector<4x40xi32>
    %305 = arith.extui %304 : vector<4x40xi1> to vector<4x40xi32>
    %306 = arith.sitofp %305 : vector<4x40xi32> to vector<4x40xf32>
    %307 = arith.truncf %306 : vector<4x40xf32> to vector<4x40xbf16>
    %cst_79 = arith.constant dense<0.000000e+00> : vector<4x96xf32>
    %308 = tpu.matmul %307, %50, %cst_79 {dimension_numbers = #tpu.dot_dimension_numbers<[1], [0], [0], [1], [0, 0, 1, 1], [], []>} : vector<4x40xbf16>, vector<40x96xbf16>, vector<4x96xf32> -> vector<4x96xf32>
    %309 = vector.broadcast %38 : vector<4x1xf32> to vector<4x32xf32>
    %310 = arith.mulf %297, %309 : vector<4x32xf32>
    %311 = vector.broadcast %40 : vector<4x1xf32> to vector<4x32xf32>
    %312 = arith.mulf %297, %311 : vector<4x32xf32>
    %313 = tpu.concatenate %310, %312 in 1 : vector<4x32xf32>, vector<4x32xf32> -> vector<4x64xf32>
    %314 = arith.truncf %313 : vector<4x64xf32> to vector<4x64xbf16>
    %cst_80 = arith.constant dense<0.000000e+00> : vector<4x96xf32>
    %315 = tpu.matmul %314, %51, %cst_80 {dimension_numbers = #tpu.dot_dimension_numbers<[1], [0], [0], [1], [0, 0, 1, 1], [], []>} : vector<4x64xbf16>, vector<64x96xbf16>, vector<4x96xf32> -> vector<4x96xf32>
    %316 = vector.extract_strided_slice %308 {offsets = [0, 0], sizes = [4, 32], strides = [1, 1]} : vector<4x96xf32> to vector<4x32xf32>
    %317 = vector.extract_strided_slice %315 {offsets = [0, 0], sizes = [4, 32], strides = [1, 1]} : vector<4x96xf32> to vector<4x32xf32>
    %318 = arith.addf %316, %317 : vector<4x32xf32>
    %cst_81 = arith.constant 5.000000e-01 : f32
    %319 = vector.broadcast %cst_81 : f32 to vector<4x32xf32>
    %320 = arith.mulf %319, %318 : vector<4x32xf32>
    %321 = math.tanh %320 : vector<4x32xf32>
    %cst_82 = arith.constant 5.000000e-01 : f32
    %322 = vector.broadcast %cst_82 : f32 to vector<4x32xf32>
    %323 = arith.mulf %322, %321 : vector<4x32xf32>
    %cst_83 = arith.constant 5.000000e-01 : f32
    %324 = vector.broadcast %cst_83 : f32 to vector<4x32xf32>
    %325 = arith.addf %323, %324 : vector<4x32xf32>
    %326 = vector.extract_strided_slice %308 {offsets = [0, 32], sizes = [4, 32], strides = [1, 1]} : vector<4x96xf32> to vector<4x32xf32>
    %327 = vector.extract_strided_slice %315 {offsets = [0, 32], sizes = [4, 32], strides = [1, 1]} : vector<4x96xf32> to vector<4x32xf32>
    %328 = arith.addf %326, %327 : vector<4x32xf32>
    %cst_84 = arith.constant 5.000000e-01 : f32
    %329 = vector.broadcast %cst_84 : f32 to vector<4x32xf32>
    %330 = arith.mulf %329, %328 : vector<4x32xf32>
    %331 = math.tanh %330 : vector<4x32xf32>
    %cst_85 = arith.constant 5.000000e-01 : f32
    %332 = vector.broadcast %cst_85 : f32 to vector<4x32xf32>
    %333 = arith.mulf %332, %331 : vector<4x32xf32>
    %cst_86 = arith.constant 5.000000e-01 : f32
    %334 = vector.broadcast %cst_86 : f32 to vector<4x32xf32>
    %335 = arith.addf %333, %334 : vector<4x32xf32>
    %336 = vector.extract_strided_slice %308 {offsets = [0, 64], sizes = [4, 32], strides = [1, 1]} : vector<4x96xf32> to vector<4x32xf32>
    %337 = vector.extract_strided_slice %315 {offsets = [0, 64], sizes = [4, 32], strides = [1, 1]} : vector<4x96xf32> to vector<4x32xf32>
    %338 = arith.addf %337, %49 : vector<4x32xf32>
    %339 = arith.mulf %325, %338 : vector<4x32xf32>
    %340 = arith.addf %336, %339 : vector<4x32xf32>
    %341 = math.tanh %340 : vector<4x32xf32>
    %cst_87 = arith.constant 1.000000e+00 : f32
    %342 = vector.broadcast %cst_87 : f32 to vector<4x32xf32>
    %343 = arith.subf %342, %335 : vector<4x32xf32>
    %344 = arith.mulf %343, %341 : vector<4x32xf32>
    %345 = arith.mulf %335, %297 : vector<4x32xf32>
    %346 = arith.addf %344, %345 : vector<4x32xf32>
    %347 = vector.extract_strided_slice %32 {offsets = [0, 6], sizes = [2, 1], strides = [1, 1]} : vector<2x8xi32> to vector<2x1xi32>
    %348 = vector.extract_strided_slice %32 {offsets = [0, 1], sizes = [2, 1], strides = [1, 1]} : vector<2x8xi32> to vector<2x1xi32>
    %c20_i32_88 = arith.constant 20 : i32
    %349 = vector.broadcast %c20_i32_88 : i32 to vector<2x1xi32>
    %350 = arith.addi %348, %349 : vector<2x1xi32>
    %351 = tpu.concatenate %347, %350 in 0 : vector<2x1xi32>, vector<2x1xi32> -> vector<4x1xi32>
    %352 = vector.broadcast %351 : vector<4x1xi32> to vector<4x40xi32>
    %353 = arith.cmpi eq, %34, %352 : vector<4x40xi32>
    %354 = arith.extui %353 : vector<4x40xi1> to vector<4x40xi32>
    %355 = arith.sitofp %354 : vector<4x40xi32> to vector<4x40xf32>
    %356 = arith.truncf %355 : vector<4x40xf32> to vector<4x40xbf16>
    %cst_89 = arith.constant dense<0.000000e+00> : vector<4x96xf32>
    %357 = tpu.matmul %356, %50, %cst_89 {dimension_numbers = #tpu.dot_dimension_numbers<[1], [0], [0], [1], [0, 0, 1, 1], [], []>} : vector<4x40xbf16>, vector<40x96xbf16>, vector<4x96xf32> -> vector<4x96xf32>
    %358 = vector.broadcast %38 : vector<4x1xf32> to vector<4x32xf32>
    %359 = arith.mulf %346, %358 : vector<4x32xf32>
    %360 = vector.broadcast %40 : vector<4x1xf32> to vector<4x32xf32>
    %361 = arith.mulf %346, %360 : vector<4x32xf32>
    %362 = tpu.concatenate %359, %361 in 1 : vector<4x32xf32>, vector<4x32xf32> -> vector<4x64xf32>
    %363 = arith.truncf %362 : vector<4x64xf32> to vector<4x64xbf16>
    %cst_90 = arith.constant dense<0.000000e+00> : vector<4x96xf32>
    %364 = tpu.matmul %363, %51, %cst_90 {dimension_numbers = #tpu.dot_dimension_numbers<[1], [0], [0], [1], [0, 0, 1, 1], [], []>} : vector<4x64xbf16>, vector<64x96xbf16>, vector<4x96xf32> -> vector<4x96xf32>
    %365 = vector.extract_strided_slice %357 {offsets = [0, 0], sizes = [4, 32], strides = [1, 1]} : vector<4x96xf32> to vector<4x32xf32>
    %366 = vector.extract_strided_slice %364 {offsets = [0, 0], sizes = [4, 32], strides = [1, 1]} : vector<4x96xf32> to vector<4x32xf32>
    %367 = arith.addf %365, %366 : vector<4x32xf32>
    %cst_91 = arith.constant 5.000000e-01 : f32
    %368 = vector.broadcast %cst_91 : f32 to vector<4x32xf32>
    %369 = arith.mulf %368, %367 : vector<4x32xf32>
    %370 = math.tanh %369 : vector<4x32xf32>
    %cst_92 = arith.constant 5.000000e-01 : f32
    %371 = vector.broadcast %cst_92 : f32 to vector<4x32xf32>
    %372 = arith.mulf %371, %370 : vector<4x32xf32>
    %cst_93 = arith.constant 5.000000e-01 : f32
    %373 = vector.broadcast %cst_93 : f32 to vector<4x32xf32>
    %374 = arith.addf %372, %373 : vector<4x32xf32>
    %375 = vector.extract_strided_slice %357 {offsets = [0, 32], sizes = [4, 32], strides = [1, 1]} : vector<4x96xf32> to vector<4x32xf32>
    %376 = vector.extract_strided_slice %364 {offsets = [0, 32], sizes = [4, 32], strides = [1, 1]} : vector<4x96xf32> to vector<4x32xf32>
    %377 = arith.addf %375, %376 : vector<4x32xf32>
    %cst_94 = arith.constant 5.000000e-01 : f32
    %378 = vector.broadcast %cst_94 : f32 to vector<4x32xf32>
    %379 = arith.mulf %378, %377 : vector<4x32xf32>
    %380 = math.tanh %379 : vector<4x32xf32>
    %cst_95 = arith.constant 5.000000e-01 : f32
    %381 = vector.broadcast %cst_95 : f32 to vector<4x32xf32>
    %382 = arith.mulf %381, %380 : vector<4x32xf32>
    %cst_96 = arith.constant 5.000000e-01 : f32
    %383 = vector.broadcast %cst_96 : f32 to vector<4x32xf32>
    %384 = arith.addf %382, %383 : vector<4x32xf32>
    %385 = vector.extract_strided_slice %357 {offsets = [0, 64], sizes = [4, 32], strides = [1, 1]} : vector<4x96xf32> to vector<4x32xf32>
    %386 = vector.extract_strided_slice %364 {offsets = [0, 64], sizes = [4, 32], strides = [1, 1]} : vector<4x96xf32> to vector<4x32xf32>
    %387 = arith.addf %386, %49 : vector<4x32xf32>
    %388 = arith.mulf %374, %387 : vector<4x32xf32>
    %389 = arith.addf %385, %388 : vector<4x32xf32>
    %390 = math.tanh %389 : vector<4x32xf32>
    %cst_97 = arith.constant 1.000000e+00 : f32
    %391 = vector.broadcast %cst_97 : f32 to vector<4x32xf32>
    %392 = arith.subf %391, %384 : vector<4x32xf32>
    %393 = arith.mulf %392, %390 : vector<4x32xf32>
    %394 = arith.mulf %384, %346 : vector<4x32xf32>
    %395 = arith.addf %393, %394 : vector<4x32xf32>
    %396 = vector.extract_strided_slice %32 {offsets = [0, 7], sizes = [2, 1], strides = [1, 1]} : vector<2x8xi32> to vector<2x1xi32>
    %397 = vector.extract_strided_slice %32 {offsets = [0, 0], sizes = [2, 1], strides = [1, 1]} : vector<2x8xi32> to vector<2x1xi32>
    %c20_i32_98 = arith.constant 20 : i32
    %398 = vector.broadcast %c20_i32_98 : i32 to vector<2x1xi32>
    %399 = arith.addi %397, %398 : vector<2x1xi32>
    %400 = tpu.concatenate %396, %399 in 0 : vector<2x1xi32>, vector<2x1xi32> -> vector<4x1xi32>
    %401 = vector.broadcast %400 : vector<4x1xi32> to vector<4x40xi32>
    %402 = arith.cmpi eq, %34, %401 : vector<4x40xi32>
    %403 = arith.extui %402 : vector<4x40xi1> to vector<4x40xi32>
    %404 = arith.sitofp %403 : vector<4x40xi32> to vector<4x40xf32>
    %405 = arith.truncf %404 : vector<4x40xf32> to vector<4x40xbf16>
    %cst_99 = arith.constant dense<0.000000e+00> : vector<4x96xf32>
    %406 = tpu.matmul %405, %50, %cst_99 {dimension_numbers = #tpu.dot_dimension_numbers<[1], [0], [0], [1], [0, 0, 1, 1], [], []>} : vector<4x40xbf16>, vector<40x96xbf16>, vector<4x96xf32> -> vector<4x96xf32>
    %407 = vector.broadcast %38 : vector<4x1xf32> to vector<4x32xf32>
    %408 = arith.mulf %395, %407 : vector<4x32xf32>
    %409 = vector.broadcast %40 : vector<4x1xf32> to vector<4x32xf32>
    %410 = arith.mulf %395, %409 : vector<4x32xf32>
    %411 = tpu.concatenate %408, %410 in 1 : vector<4x32xf32>, vector<4x32xf32> -> vector<4x64xf32>
    %412 = arith.truncf %411 : vector<4x64xf32> to vector<4x64xbf16>
    %cst_100 = arith.constant dense<0.000000e+00> : vector<4x96xf32>
    %413 = tpu.matmul %412, %51, %cst_100 {dimension_numbers = #tpu.dot_dimension_numbers<[1], [0], [0], [1], [0, 0, 1, 1], [], []>} : vector<4x64xbf16>, vector<64x96xbf16>, vector<4x96xf32> -> vector<4x96xf32>
    %414 = vector.extract_strided_slice %406 {offsets = [0, 0], sizes = [4, 32], strides = [1, 1]} : vector<4x96xf32> to vector<4x32xf32>
    %415 = vector.extract_strided_slice %413 {offsets = [0, 0], sizes = [4, 32], strides = [1, 1]} : vector<4x96xf32> to vector<4x32xf32>
    %416 = arith.addf %414, %415 : vector<4x32xf32>
    %cst_101 = arith.constant 5.000000e-01 : f32
    %417 = vector.broadcast %cst_101 : f32 to vector<4x32xf32>
    %418 = arith.mulf %417, %416 : vector<4x32xf32>
    %419 = math.tanh %418 : vector<4x32xf32>
    %cst_102 = arith.constant 5.000000e-01 : f32
    %420 = vector.broadcast %cst_102 : f32 to vector<4x32xf32>
    %421 = arith.mulf %420, %419 : vector<4x32xf32>
    %cst_103 = arith.constant 5.000000e-01 : f32
    %422 = vector.broadcast %cst_103 : f32 to vector<4x32xf32>
    %423 = arith.addf %421, %422 : vector<4x32xf32>
    %424 = vector.extract_strided_slice %406 {offsets = [0, 32], sizes = [4, 32], strides = [1, 1]} : vector<4x96xf32> to vector<4x32xf32>
    %425 = vector.extract_strided_slice %413 {offsets = [0, 32], sizes = [4, 32], strides = [1, 1]} : vector<4x96xf32> to vector<4x32xf32>
    %426 = arith.addf %424, %425 : vector<4x32xf32>
    %cst_104 = arith.constant 5.000000e-01 : f32
    %427 = vector.broadcast %cst_104 : f32 to vector<4x32xf32>
    %428 = arith.mulf %427, %426 : vector<4x32xf32>
    %429 = math.tanh %428 : vector<4x32xf32>
    %cst_105 = arith.constant 5.000000e-01 : f32
    %430 = vector.broadcast %cst_105 : f32 to vector<4x32xf32>
    %431 = arith.mulf %430, %429 : vector<4x32xf32>
    %cst_106 = arith.constant 5.000000e-01 : f32
    %432 = vector.broadcast %cst_106 : f32 to vector<4x32xf32>
    %433 = arith.addf %431, %432 : vector<4x32xf32>
    %434 = vector.extract_strided_slice %406 {offsets = [0, 64], sizes = [4, 32], strides = [1, 1]} : vector<4x96xf32> to vector<4x32xf32>
    %435 = vector.extract_strided_slice %413 {offsets = [0, 64], sizes = [4, 32], strides = [1, 1]} : vector<4x96xf32> to vector<4x32xf32>
    %436 = arith.addf %435, %49 : vector<4x32xf32>
    %437 = arith.mulf %423, %436 : vector<4x32xf32>
    %438 = arith.addf %434, %437 : vector<4x32xf32>
    %439 = math.tanh %438 : vector<4x32xf32>
    %cst_107 = arith.constant 1.000000e+00 : f32
    %440 = vector.broadcast %cst_107 : f32 to vector<4x32xf32>
    %441 = arith.subf %440, %433 : vector<4x32xf32>
    %442 = arith.mulf %441, %439 : vector<4x32xf32>
    %443 = arith.mulf %433, %395 : vector<4x32xf32>
    %444 = arith.addf %442, %443 : vector<4x32xf32>
    %445 = vector.extract_strided_slice %444 {offsets = [0, 0], sizes = [2, 32], strides = [1, 1]} : vector<4x32xf32> to vector<2x32xf32>
    %446 = vector.extract_strided_slice %444 {offsets = [2, 0], sizes = [2, 32], strides = [1, 1]} : vector<4x32xf32> to vector<2x32xf32>
    %447 = arith.truncf %31 : vector<2x64xf32> to vector<2x64xbf16>
    %c0_108 = arith.constant 0 : index
    %c0_109 = arith.constant 0 : index
    %448 = vector.load %arg13[%c0_108, %c0_109] : memref<64x64xbf16, #tpu.memory_space<vmem>>, vector<64x64xbf16>
    %cst_110 = arith.constant dense<0.000000e+00> : vector<2x64xf32>
    %449 = tpu.matmul %447, %448, %cst_110 {dimension_numbers = #tpu.dot_dimension_numbers<[1], [0], [0], [1], [0, 0, 1, 1], [], []>} : vector<2x64xbf16>, vector<64x64xbf16>, vector<2x64xf32> -> vector<2x64xf32>
    %c0_111 = arith.constant 0 : index
    %c0_112 = arith.constant 0 : index
    %450 = vector.load %arg2[%c0_111, %c0_112] : memref<2x3xf32, #tpu.memory_space<vmem>>, vector<2x3xf32>
    %451 = arith.truncf %450 : vector<2x3xf32> to vector<2x3xbf16>
    %c0_113 = arith.constant 0 : index
    %c0_114 = arith.constant 0 : index
    %452 = vector.load %arg14[%c0_113, %c0_114] : memref<3x64xbf16, #tpu.memory_space<vmem>>, vector<3x64xbf16>
    %cst_115 = arith.constant dense<0.000000e+00> : vector<2x64xf32>
    %453 = tpu.matmul %451, %452, %cst_115 {dimension_numbers = #tpu.dot_dimension_numbers<[1], [0], [0], [1], [0, 0, 1, 1], [], []>} : vector<2x3xbf16>, vector<3x64xbf16>, vector<2x64xf32> -> vector<2x64xf32>
    %454 = arith.addf %449, %453 : vector<2x64xf32>
    %455 = arith.truncf %445 : vector<2x32xf32> to vector<2x32xbf16>
    %c0_116 = arith.constant 0 : index
    %c0_117 = arith.constant 0 : index
    %456 = vector.load %arg15[%c0_116, %c0_117] : memref<64x64xbf16, #tpu.memory_space<vmem>>, vector<32x64xbf16>
    %cst_118 = arith.constant dense<0.000000e+00> : vector<2x64xf32>
    %457 = tpu.matmul %455, %456, %cst_118 {dimension_numbers = #tpu.dot_dimension_numbers<[1], [0], [0], [1], [0, 0, 1, 1], [], []>} : vector<2x32xbf16>, vector<32x64xbf16>, vector<2x64xf32> -> vector<2x64xf32>
    %458 = arith.addf %454, %457 : vector<2x64xf32>
    %459 = arith.truncf %446 : vector<2x32xf32> to vector<2x32xbf16>
    %c32 = arith.constant 32 : index
    %c0_119 = arith.constant 0 : index
    %460 = vector.load %arg15[%c32, %c0_119] : memref<64x64xbf16, #tpu.memory_space<vmem>>, vector<32x64xbf16>
    %cst_120 = arith.constant dense<0.000000e+00> : vector<2x64xf32>
    %461 = tpu.matmul %459, %460, %cst_120 {dimension_numbers = #tpu.dot_dimension_numbers<[1], [0], [0], [1], [0, 0, 1, 1], [], []>} : vector<2x32xbf16>, vector<32x64xbf16>, vector<2x64xf32> -> vector<2x64xf32>
    %462 = arith.addf %458, %461 : vector<2x64xf32>
    %c0_121 = arith.constant 0 : index
    %c0_122 = arith.constant 0 : index
    %463 = vector.load %arg16[%c0_121, %c0_122] : memref<1x64xf32, #tpu.memory_space<vmem>>, vector<1x64xf32>
    %464 = vector.broadcast %463 : vector<1x64xf32> to vector<2x64xf32>
    %465 = arith.addf %462, %464 : vector<2x64xf32>
    %466 = math.tanh %465 : vector<2x64xf32>
    %467 = arith.truncf %466 : vector<2x64xf32> to vector<2x64xbf16>
    %c0_123 = arith.constant 0 : index
    %c0_124 = arith.constant 0 : index
    %468 = vector.load %arg17[%c0_123, %c0_124] : memref<64x7xbf16, #tpu.memory_space<vmem>>, vector<64x7xbf16>
    %cst_125 = arith.constant dense<0.000000e+00> : vector<2x7xf32>
    %469 = tpu.matmul %467, %468, %cst_125 {dimension_numbers = #tpu.dot_dimension_numbers<[1], [0], [0], [1], [0, 0, 1, 1], [], []>} : vector<2x64xbf16>, vector<64x7xbf16>, vector<2x7xf32> -> vector<2x7xf32>
    %c0_126 = arith.constant 0 : index
    %c0_127 = arith.constant 0 : index
    %470 = vector.load %arg18[%c0_126, %c0_127] : memref<1x7xf32, #tpu.memory_space<vmem>>, vector<1x7xf32>
    %471 = vector.broadcast %470 : vector<1x7xf32> to vector<2x7xf32>
    %472 = arith.addf %469, %471 : vector<2x7xf32>
    %cst_128 = arith.constant dense<0xFF800000> : vector<2xf32>
    %473 = vector.multi_reduction <maximumf>, %472, %cst_128 [1] : vector<2x7xf32> to vector<2xf32>
    %474 = vector.shape_cast %473 : vector<2xf32> to vector<2x1xf32>
    %475 = vector.broadcast %474 : vector<2x1xf32> to vector<2x7xf32>
    %476 = arith.subf %472, %475 : vector<2x7xf32>
    %477 = math.exp %476 : vector<2x7xf32>
    %cst_129 = arith.constant dense<0.000000e+00> : vector<2xf32>
    %478 = vector.multi_reduction <add>, %477, %cst_129 [1] : vector<2x7xf32> to vector<2xf32>
    %479 = vector.shape_cast %478 : vector<2xf32> to vector<2x1xf32>
    %480 = vector.broadcast %479 : vector<2x1xf32> to vector<2x7xf32>
    %481 = arith.divf %477, %480 : vector<2x7xf32>
    %c0_130 = arith.constant 0 : index
    %c0_131 = arith.constant 0 : index
    %482 = vector.load %arg19[%c0_130, %c0_131] : memref<2x7xf32, #tpu.memory_space<vmem>>, vector<2x7xf32>
    tpu.vector_store %arg19[%c0_130, %c0_131], %481 {strides = array<i32>} : memref<2x7xf32, #tpu.memory_space<vmem>>, vector<2x7xf32>,
    return
  }
  func.func @transform_0(%arg0: i32) -> (i32, i32) {
    %c0_i32 = arith.constant 0 : i32
    %c0_i32_0 = arith.constant 0 : i32
    return %arg0, %c0_i32 : i32, i32
  }
  func.func @transform_1(%arg0: i32) -> (i32, i32) {
    %c0_i32 = arith.constant 0 : i32
    %c0_i32_0 = arith.constant 0 : i32
    return %arg0, %c0_i32 : i32, i32
  }
  func.func @transform_2(%arg0: i32) -> (i32, i32) {
    %c0_i32 = arith.constant 0 : i32
    %c0_i32_0 = arith.constant 0 : i32
    return %arg0, %c0_i32 : i32, i32
  }
  func.func @transform_3(%arg0: i32) -> (i32, i32) {
    %c0_i32 = arith.constant 0 : i32
    %c0_i32_0 = arith.constant 0 : i32
    %c0_i32_1 = arith.constant 0 : i32
    return %c0_i32, %c0_i32_0 : i32, i32
  }
  func.func @transform_4(%arg0: i32) -> (i32, i32) {
    %c0_i32 = arith.constant 0 : i32
    %c0_i32_0 = arith.constant 0 : i32
    %c0_i32_1 = arith.constant 0 : i32
    return %c0_i32, %c0_i32_0 : i32, i32
  }
  func.func @transform_5(%arg0: i32) -> (i32, i32) {
    %c0_i32 = arith.constant 0 : i32
    %c0_i32_0 = arith.constant 0 : i32
    %c0_i32_1 = arith.constant 0 : i32
    return %c0_i32, %c0_i32_0 : i32, i32
  }
  func.func @transform_6(%arg0: i32) -> (i32, i32) {
    %c0_i32 = arith.constant 0 : i32
    %c0_i32_0 = arith.constant 0 : i32
    %c0_i32_1 = arith.constant 0 : i32
    return %c0_i32, %c0_i32_0 : i32, i32
  }
  func.func @transform_7(%arg0: i32) -> (i32, i32) {
    %c0_i32 = arith.constant 0 : i32
    %c0_i32_0 = arith.constant 0 : i32
    %c0_i32_1 = arith.constant 0 : i32
    return %c0_i32, %c0_i32_0 : i32, i32
  }
  func.func @transform_8(%arg0: i32) -> (i32, i32) {
    %c0_i32 = arith.constant 0 : i32
    %c0_i32_0 = arith.constant 0 : i32
    %c0_i32_1 = arith.constant 0 : i32
    return %c0_i32, %c0_i32_0 : i32, i32
  }
  func.func @transform_9(%arg0: i32) -> (i32, i32) {
    %c0_i32 = arith.constant 0 : i32
    %c0_i32_0 = arith.constant 0 : i32
    %c0_i32_1 = arith.constant 0 : i32
    return %c0_i32, %c0_i32_0 : i32, i32
  }
  func.func @transform_10(%arg0: i32) -> (i32, i32) {
    %c0_i32 = arith.constant 0 : i32
    %c0_i32_0 = arith.constant 0 : i32
    %c0_i32_1 = arith.constant 0 : i32
    return %c0_i32, %c0_i32_0 : i32, i32
  }
  func.func @transform_11(%arg0: i32) -> (i32, i32) {
    %c0_i32 = arith.constant 0 : i32
    %c0_i32_0 = arith.constant 0 : i32
    %c0_i32_1 = arith.constant 0 : i32
    return %c0_i32, %c0_i32_0 : i32, i32
  }
  func.func @transform_12(%arg0: i32) -> (i32, i32) {
    %c0_i32 = arith.constant 0 : i32
    %c0_i32_0 = arith.constant 0 : i32
    %c0_i32_1 = arith.constant 0 : i32
    return %c0_i32, %c0_i32_0 : i32, i32
  }
  func.func @transform_13(%arg0: i32) -> (i32, i32) {
    %c0_i32 = arith.constant 0 : i32
    %c0_i32_0 = arith.constant 0 : i32
    %c0_i32_1 = arith.constant 0 : i32
    return %c0_i32, %c0_i32_0 : i32, i32
  }
  func.func @transform_14(%arg0: i32) -> (i32, i32) {
    %c0_i32 = arith.constant 0 : i32
    %c0_i32_0 = arith.constant 0 : i32
    %c0_i32_1 = arith.constant 0 : i32
    return %c0_i32, %c0_i32_0 : i32, i32
  }
  func.func @transform_15(%arg0: i32) -> (i32, i32) {
    %c0_i32 = arith.constant 0 : i32
    %c0_i32_0 = arith.constant 0 : i32
    %c0_i32_1 = arith.constant 0 : i32
    return %c0_i32, %c0_i32_0 : i32, i32
  }
  func.func @transform_16(%arg0: i32) -> (i32, i32) {
    %c0_i32 = arith.constant 0 : i32
    %c0_i32_0 = arith.constant 0 : i32
    %c0_i32_1 = arith.constant 0 : i32
    return %c0_i32, %c0_i32_0 : i32, i32
  }
  func.func @transform_17(%arg0: i32) -> (i32, i32) {
    %c0_i32 = arith.constant 0 : i32
    %c0_i32_0 = arith.constant 0 : i32
    %c0_i32_1 = arith.constant 0 : i32
    return %c0_i32, %c0_i32_0 : i32, i32
  }
  func.func @transform_18(%arg0: i32) -> (i32, i32) {
    %c0_i32 = arith.constant 0 : i32
    %c0_i32_0 = arith.constant 0 : i32
    return %arg0, %c0_i32 : i32, i32
  }
}

</mosaic_0001>

<llo_original>
// kernel: _actor_forward.1
$region0: #{_actor_forward.1}
  #allocation0 [shape = 'u32[]', space=smem, size = 0x4, offset = 0x4, fixed_abs, tag = 'smem constant byte address 0x4 - core index']
  #allocation1 [shape = 'u32[144,128]{1,0:T(1,128)}', space=vmem, size = 0x12000, scoped, tag = 'internal scratch']
  %s0 = inlined_call_operand.vmem [shape: f32[2,147], index: 0, kind: input, shape index: {}]
  %s1 = inlined_call_operand.vmem [shape: f32[2,3], index: 1, kind: input, shape index: {}]
  %s2 = inlined_call_operand.vmem [shape: s32[2,8], index: 2, kind: input, shape index: {}]
  %s3 = inlined_call_operand.hbm [shape: bf16[147,1024], index: 3, kind: input, shape index: {}]
  %s4 = inlined_call_operand.hbm [shape: f32[1,1024], index: 4, kind: input, shape index: {}]
  %s5 = inlined_call_operand.vmem [shape: bf16[256,128], index: 5, kind: input, shape index: {}]
  %s6 = inlined_call_operand.hbm [shape: f32[1,128], index: 6, kind: input, shape index: {}]
  %s7 = inlined_call_operand.vmem [shape: bf16[128,64], index: 7, kind: input, shape index: {}]
  %s8 = inlined_call_operand.hbm [shape: f32[1,64], index: 8, kind: input, shape index: {}]
  %s9 = inlined_call_operand.hbm [shape: bf16[40,96], index: 9, kind: input, shape index: {}]
  %s10 = inlined_call_operand.vmem [shape: bf16[64,96], index: 10, kind: input, shape index: {}]
  %s11 = inlined_call_operand.hbm [shape: f32[2,32], index: 11, kind: input, shape index: {}]
  %s12 = inlined_call_operand.hbm [shape: bf16[64,64], index: 12, kind: input, shape index: {}]
  %s13 = inlined_call_operand.hbm [shape: bf16[3,64], index: 13, kind: input, shape index: {}]
  %s14 = inlined_call_operand.hbm [shape: bf16[64,64], index: 14, kind: input, shape index: {}]
  %s15 = inlined_call_operand.hbm [shape: f32[1,64], index: 15, kind: input, shape index: {}]
  %s16 = inlined_call_operand.vmem [shape: bf16[64,7], index: 16, kind: input, shape index: {}]
  %s17 = inlined_call_operand.hbm [shape: f32[1,7], index: 17, kind: input, shape index: {}]
  %s18 = inlined_call_operand.hbm [shape: f32[2,7], index: 18, kind: output, shape index: {}]
  %s19 = sld [smem:[#allocation0]]
  $region126: #{_actor_forward.1} parent=0
    _
  %s21 = ssub.s32 1, %s19
  %s22 = scalar_select 0, %s21, %s19
  $region1: #{_actor_forward.1} parent=0
    #allocation2 [shape = 'u8[311296]{0}', space=vmem, size = 0x4c000, scoped, tag = 'input window, operand 3, single buffered']
    #allocation3 [shape = 's32[1]{0}', space=sflag, size = 0x4, scoped, tag = 'scoped memory for _actor_forward.1']
    #allocation4 [shape = 's32[1]{0}', space=sflag, size = 0x4, scoped, tag = 'scoped memory for _actor_forward.1']
    #allocation5 [shape = 'u8[4096]{0}', space=vmem, size = 0x1000, scoped, tag = 'input window, operand 4, single buffered']
    #allocation6 [shape = 's32[1]{0}', space=sflag, size = 0x4, scoped, tag = 'scoped memory for _actor_forward.1']
    #allocation7 [shape = 'u8[512]{0}', space=vmem, size = 0x400, scoped, tag = 'input window, operand 6, single buffered']
    #allocation8 [shape = 'u8[512]{0}', space=vmem, size = 0x400, scoped, tag = 'input window, operand 8, single buffered']
    #allocation9 [shape = 's32[1]{0}', space=sflag, size = 0x4, scoped, tag = 'scoped memory for _actor_forward.1']
    #allocation10 [shape = 'u8[10240]{0}', space=vmem, size = 0x2800, scoped, tag = 'input window, operand 9, single buffered']
    #allocation11 [shape = 'u8[1024]{0}', space=vmem, size = 0x400, scoped, tag = 'input window, operand 11, single buffered']
    #allocation12 [shape = 's32[1]{0}', space=sflag, size = 0x4, scoped, tag = 'scoped memory for _actor_forward.1']
    #allocation13 [shape = 'u8[16384]{0}', space=vmem, size = 0x4000, scoped, tag = 'input window, operand 12, single buffered']
    #allocation14 [shape = 'u8[1024]{0}', space=vmem, size = 0x400, scoped, tag = 'input window, operand 13, single buffered']
    #allocation15 [shape = 's32[1]{0}', space=sflag, size = 0x4, scoped, tag = 'scoped memory for _actor_forward.1']
    #allocation16 [shape = 'u8[16384]{0}', space=vmem, size = 0x4000, scoped, tag = 'input window, operand 14, single buffered']
    #allocation17 [shape = 'u8[512]{0}', space=vmem, size = 0x400, scoped, tag = 'input window, operand 15, single buffered']
    #allocation18 [shape = 's32[1]{0}', space=sflag, size = 0x4, scoped, tag = 'scoped memory for _actor_forward.1']
    #allocation19 [shape = 'u8[512]{0}', space=vmem, size = 0x400, scoped, tag = 'input window, operand 17, single buffered']
    #allocation20 [shape = 'u8[1024]{0}', space=vmem, size = 0x400, scoped, tag = 'output window, operand 0, single buffered']
    %23 = vsyncpa [#allocation3], 0
    %24 = vsyncpa [#allocation6], 0
    %25 = vsyncpa [#allocation9], 0
    %26 = vsyncpa [#allocation12], 0
    %27 = vsyncpa [#allocation15], 0
    %28 = vsyncpa [#allocation18], 0
    %29 = vsyncpa [#allocation4], 0
    // Predicated region
    $region2: #{_actor_forward.1} parent=1 // pred_check
      _
    $region3: #{_actor_forward.1} parent=1 // pred_check_branch
      %31 = sbr.rel (0) target = $region5
    $region4: #{_actor_forward.1} parent=1 // pred_region
      _
    $region5: #{_actor_forward.1} parent=1 // pred_fallthru
      _
    // Predicated region
    $region6: #{_actor_forward.1} parent=1 // pred_check
      _
    $region7: #{_actor_forward.1} parent=1 // pred_check_branch
      %33 = sbr.rel (0) target = $region9
    $region8: #{_actor_forward.1} parent=1 // pred_region
      _
    $region9: #{_actor_forward.1} parent=1 // pred_fallthru
      _
    // Predicated region
    $region10: #{_actor_forward.1} parent=1 // pred_check
      _
    $region11: #{_actor_forward.1} parent=1 // pred_check_branch
      %35 = sbr.rel (0) target = $region13
    $region12: #{_actor_forward.1} parent=1 // pred_region
      _
    $region13: #{_actor_forward.1} parent=1 // pred_fallthru
      _
    // Predicated region
    $region14: #{_actor_forward.1} parent=1 // pred_check
      _
    $region15: #{_actor_forward.1} parent=1 // pred_check_branch
      %37 = sbr.rel (0) target = $region17
    $region16: #{_actor_forward.1} parent=1 // pred_region
      %s39 = ssub.s32 9728, 9728
      %40 = vsyncadd [#allocation3], %s39
      %s41 = sshll.u32 [#allocation2], 4
      %s42 = int_to_ptr.vmem [resolvable:$true] %s41
      %47 = dma.hbm_to_vmem [thread:$0]  %s3, 9728, %s42, [#allocation3], 512, 512, 32
    $region17: #{_actor_forward.1} parent=1 // pred_fallthru
      _
    // Predicated region
    $region18: #{_actor_forward.1} parent=1 // pred_check
      _
    $region19: #{_actor_forward.1} parent=1 // pred_check_branch
      %49 = sbr.rel (0) target = $region21
    $region20: #{_actor_forward.1} parent=1 // pred_region
      %s51 = ssub.s32 128, 128
      %52 = vsyncadd [#allocation6], %s51
      %s54 = sshll.u32 [#allocation5], 4
      %s55 = int_to_ptr.vmem [resolvable:$true] %s54
      %57 = dma.hbm_to_vmem [thread:$0]  %s4, 128, %s55, [#allocation6]
    $region21: #{_actor_forward.1} parent=1 // pred_fallthru
      _
    // Predicated region
    $region22: #{_actor_forward.1} parent=1 // pred_check
      _
    $region23: #{_actor_forward.1} parent=1 // pred_check_branch
      %59 = sbr.rel (0) target = $region25
    $region24: #{_actor_forward.1} parent=1 // pred_region
      _
    $region25: #{_actor_forward.1} parent=1 // pred_fallthru
      _
    // Predicated region
    $region26: #{_actor_forward.1} parent=1 // pred_check
      _
    $region27: #{_actor_forward.1} parent=1 // pred_check_branch
      %61 = sbr.rel (0) target = $region29
    $region28: #{_actor_forward.1} parent=1 // pred_region
      %s63 = ssub.s32 16, 16
      %64 = vsyncadd [#allocation6], %s63
      %s66 = sshll.u32 [#allocation7], 4
      %s67 = int_to_ptr.vmem [resolvable:$true] %s66
      %69 = dma.hbm_to_vmem [thread:$0]  %s6, 16, %s67, [#allocation6]
    $region29: #{_actor_forward.1} parent=1 // pred_fallthru
      _
    // Predicated region
    $region30: #{_actor_forward.1} parent=1 // pred_check
      _
    $region31: #{_actor_forward.1} parent=1 // pred_check_branch
      %71 = sbr.rel (0) target = $region33
    $region32: #{_actor_forward.1} parent=1 // pred_region
      _
    $region33: #{_actor_forward.1} parent=1 // pred_fallthru
      _
    // Predicated region
    $region34: #{_actor_forward.1} parent=1 // pred_check
      _
    $region35: #{_actor_forward.1} parent=1 // pred_check_branch
      %73 = sbr.rel (0) target = $region37
    $region36: #{_actor_forward.1} parent=1 // pred_region
      %s75 = ssub.s32 16, 16
      %76 = vsyncadd [#allocation9], %s75
      %s78 = sshll.u32 [#allocation8], 4
      %s79 = int_to_ptr.vmem [resolvable:$true] %s78
      %81 = dma.hbm_to_vmem [thread:$0]  %s8, 16, %s79, [#allocation9]
    $region37: #{_actor_forward.1} parent=1 // pred_fallthru
      _
    // Predicated region
    $region38: #{_actor_forward.1} parent=1 // pred_check
      _
    $region39: #{_actor_forward.1} parent=1 // pred_check_branch
      %83 = sbr.rel (0) target = $region41
    $region40: #{_actor_forward.1} parent=1 // pred_region
      %s85 = ssub.s32 320, 320
      %86 = vsyncadd [#allocation9], %s85
      %s87 = sshll.u32 [#allocation10], 4
      %s88 = int_to_ptr.vmem [resolvable:$true] %s87
      %93 = dma.hbm_to_vmem [thread:$0]  %s9, 320, %s88, [#allocation9], 64, 64, 4
    $region41: #{_actor_forward.1} parent=1 // pred_fallthru
      _
    // Predicated region
    $region42: #{_actor_forward.1} parent=1 // pred_check
      _
    $region43: #{_actor_forward.1} parent=1 // pred_check_branch
      %95 = sbr.rel (0) target = $region45
    $region44: #{_actor_forward.1} parent=1 // pred_region
      _
    $region45: #{_actor_forward.1} parent=1 // pred_fallthru
      _
    // Predicated region
    $region46: #{_actor_forward.1} parent=1 // pred_check
      _
    $region47: #{_actor_forward.1} parent=1 // pred_check_branch
      %97 = sbr.rel (0) target = $region49
    $region48: #{_actor_forward.1} parent=1 // pred_region
      %s99 = ssub.s32 32, 32
      %100 = vsyncadd [#allocation12], %s99
      %s102 = sshll.u32 [#allocation11], 4
      %s103 = int_to_ptr.vmem [resolvable:$true] %s102
      %105 = dma.hbm_to_vmem [thread:$0]  %s11, 32, %s103, [#allocation12]
    $region49: #{_actor_forward.1} parent=1 // pred_fallthru
      _
    // Predicated region
    $region50: #{_actor_forward.1} parent=1 // pred_check
      _
    $region51: #{_actor_forward.1} parent=1 // pred_check_branch
      %107 = sbr.rel (0) target = $region53
    $region52: #{_actor_forward.1} parent=1 // pred_region
      %s109 = ssub.s32 512, 512
      %110 = vsyncadd [#allocation12], %s109
      %s111 = sshll.u32 [#allocation13], 4
      %s112 = int_to_ptr.vmem [resolvable:$true] %s111
      %117 = dma.hbm_to_vmem [thread:$0]  %s12, 512, %s112, [#allocation12], 64, 64, 4
    $region53: #{_actor_forward.1} parent=1 // pred_fallthru
      _
    // Predicated region
    $region54: #{_actor_forward.1} parent=1 // pred_check
      _
    $region55: #{_actor_forward.1} parent=1 // pred_check_branch
      %119 = sbr.rel (0) target = $region57
    $region56: #{_actor_forward.1} parent=1 // pred_region
      %s121 = ssub.s32 32, 32
      %122 = vsyncadd [#allocation15], %s121
      %s124 = sshll.u32 [#allocation14], 4
      %s125 = int_to_ptr.vmem [resolvable:$true] %s124
      %127 = dma.hbm_to_vmem [thread:$0]  %s13, 32, %s125, [#allocation15]
    $region57: #{_actor_forward.1} parent=1 // pred_fallthru
      _
    // Predicated region
    $region58: #{_actor_forward.1} parent=1 // pred_check
      _
    $region59: #{_actor_forward.1} parent=1 // pred_check_branch
      %129 = sbr.rel (0) target = $region61
    $region60: #{_actor_forward.1} parent=1 // pred_region
      %s131 = ssub.s32 512, 512
      %132 = vsyncadd [#allocation15], %s131
      %s133 = sshll.u32 [#allocation16], 4
      %s134 = int_to_ptr.vmem [resolvable:$true] %s133
      %139 = dma.hbm_to_vmem [thread:$0]  %s14, 512, %s134, [#allocation15], 64, 64, 4
    $region61: #{_actor_forward.1} parent=1 // pred_fallthru
      _
    // Predicated region
    $region62: #{_actor_forward.1} parent=1 // pred_check
      _
    $region63: #{_actor_forward.1} parent=1 // pred_check_branch
      %141 = sbr.rel (0) target = $region65
    $region64: #{_actor_forward.1} parent=1 // pred_region
      %s143 = ssub.s32 16, 16
      %144 = vsyncadd [#allocation18], %s143
      %s146 = sshll.u32 [#allocation17], 4
      %s147 = int_to_ptr.vmem [resolvable:$true] %s146
      %149 = dma.hbm_to_vmem [thread:$0]  %s15, 16, %s147, [#allocation18]
    $region65: #{_actor_forward.1} parent=1 // pred_fallthru
      _
    // Predicated region
    $region66: #{_actor_forward.1} parent=1 // pred_check
      _
    $region67: #{_actor_forward.1} parent=1 // pred_check_branch
      %151 = sbr.rel (0) target = $region69
    $region68: #{_actor_forward.1} parent=1 // pred_region
      _
    $region69: #{_actor_forward.1} parent=1 // pred_fallthru
      _
    // Predicated region
    $region70: #{_actor_forward.1} parent=1 // pred_check
      _
    $region71: #{_actor_forward.1} parent=1 // pred_check_branch
      %153 = sbr.rel (0) target = $region73
    $region72: #{_actor_forward.1} parent=1 // pred_region
      %s155 = ssub.s32 16, 16
      %156 = vsyncadd [#allocation18], %s155
      %s158 = sshll.u32 [#allocation19], 4
      %s159 = int_to_ptr.vmem [resolvable:$true] %s158
      %161 = dma.hbm_to_vmem [thread:$0]  %s17, 16, %s159, [#allocation18]
    $region73: #{_actor_forward.1} parent=1 // pred_fallthru
      _
    // Predicated region
    $region74: #{_actor_forward.1} parent=1 // pred_check
      _
    $region75: #{_actor_forward.1} parent=1 // pred_check_branch
      %163 = sbr.rel (0) target = $region77
    $region76: #{_actor_forward.1} parent=1 // pred_region
      %164 = dma.done [#allocation3], 9728
    $region77: #{_actor_forward.1} parent=1 // pred_fallthru
      _
    // Predicated region
    $region78: #{_actor_forward.1} parent=1 // pred_check
      _
    $region79: #{_actor_forward.1} parent=1 // pred_check_branch
      %166 = sbr.rel (0) target = $region81
    $region80: #{_actor_forward.1} parent=1 // pred_region
      %167 = dma.done [#allocation6], 128
    $region81: #{_actor_forward.1} parent=1 // pred_fallthru
      _
    // Predicated region
    $region82: #{_actor_forward.1} parent=1 // pred_check
      _
    $region83: #{_actor_forward.1} parent=1 // pred_check_branch
      %169 = sbr.rel (0) target = $region85
    $region84: #{_actor_forward.1} parent=1 // pred_region
      %170 = dma.done [#allocation6], 16
    $region85: #{_actor_forward.1} parent=1 // pred_fallthru
      _
    // Predicated region
    $region86: #{_actor_forward.1} parent=1 // pred_check
      _
    $region87: #{_actor_forward.1} parent=1 // pred_check_branch
      %172 = sbr.rel (0) target = $region89
    $region88: #{_actor_forward.1} parent=1 // pred_region
      %173 = dma.done [#allocation9], 16
    $region89: #{_actor_forward.1} parent=1 // pred_fallthru
      _
    // Predicated region
    $region90: #{_actor_forward.1} parent=1 // pred_check
      _
    $region91: #{_actor_forward.1} parent=1 // pred_check_branch
      %175 = sbr.rel (0) target = $region93
    $region92: #{_actor_forward.1} parent=1 // pred_region
      %176 = dma.done [#allocation9], 320
    $region93: #{_actor_forward.1} parent=1 // pred_fallthru
      _
    // Predicated region
    $region94: #{_actor_forward.1} parent=1 // pred_check
      _
    $region95: #{_actor_forward.1} parent=1 // pred_check_branch
      %178 = sbr.rel (0) target = $region97
    $region96: #{_actor_forward.1} parent=1 // pred_region
      %179 = dma.done [#allocation12], 32
    $region97: #{_actor_forward.1} parent=1 // pred_fallthru
      _
    // Predicated region
    $region98: #{_actor_forward.1} parent=1 // pred_check
      _
    $region99: #{_actor_forward.1} parent=1 // pred_check_branch
      %181 = sbr.rel (0) target = $region101
    $region100: #{_actor_forward.1} parent=1 // pred_region
      %182 = dma.done [#allocation12], 512
    $region101: #{_actor_forward.1} parent=1 // pred_fallthru
      _
    // Predicated region
    $region102: #{_actor_forward.1} parent=1 // pred_check
      _
    $region103: #{_actor_forward.1} parent=1 // pred_check_branch
      %184 = sbr.rel (0) target = $region105
    $region104: #{_actor_forward.1} parent=1 // pred_region
      %185 = dma.done [#allocation15], 32
    $region105: #{_actor_forward.1} parent=1 // pred_fallthru
      _
    // Predicated region
    $region106: #{_actor_forward.1} parent=1 // pred_check
      _
    $region107: #{_actor_forward.1} parent=1 // pred_check_branch
      %187 = sbr.rel (0) target = $region109
    $region108: #{_actor_forward.1} parent=1 // pred_region
      %188 = dma.done [#allocation15], 512
    $region109: #{_actor_forward.1} parent=1 // pred_fallthru
      _
    // Predicated region
    $region110: #{_actor_forward.1} parent=1 // pred_check
      _
    $region111: #{_actor_forward.1} parent=1 // pred_check_branch
      %190 = sbr.rel (0) target = $region113
    $region112: #{_actor_forward.1} parent=1 // pred_region
      %191 = dma.done [#allocation18], 16
    $region113: #{_actor_forward.1} parent=1 // pred_fallthru
      _
    // Predicated region
    $region114: #{_actor_forward.1} parent=1 // pred_check
      _
    $region115: #{_actor_forward.1} parent=1 // pred_check_branch
      %193 = sbr.rel (0) target = $region117
    $region116: #{_actor_forward.1} parent=1 // pred_region
      %194 = dma.done [#allocation18], 16
    $region117: #{_actor_forward.1} parent=1 // pred_fallthru
      _
    %v196 = vld [vmem:[%s0] sm:$0xf]
    %v199 = vunpack.c.l.s4 1983009808
    %v200 = vunpack.c.0.s8 %v199
    %v201 = vlaneseq
    %v202 = vshrl.u32 %v201, 7
    %v203 = vsub.s32 %v200, %v202
    %v204 = vrot.slane %v196, %v203
    %v205 = vcombine.high %v204, %v204
    %v208 = vpack.c.bf16 %v204, %v204
    %v209 = vpack.c.bf16 %v205, %v205
    %v210 = vld [vmem:[#allocation2] sm:$0xff]
    %v211 = vld [vmem:[#allocation2 + $0x8] sm:$0xff]
    %v212 = vld [vmem:[#allocation2 + $0x10] sm:$0xff]
    %v213 = vld [vmem:[#allocation2 + $0x18] sm:$0xff]
    %v214 = vld [vmem:[#allocation2 + $0x20] sm:$0xff]
    %v215 = vld [vmem:[#allocation2 + $0x28] sm:$0xff]
    %v216 = vld [vmem:[#allocation2 + $0x30] sm:$0xff]
    %v217 = vld [vmem:[#allocation2 + $0x38] sm:$0xff]
    %v218 = vld [vmem:[#allocation2 + $0x40] sm:$0xff]
    %v219 = vld [vmem:[#allocation2 + $0x48] sm:$0xff]
    %v220 = vld [vmem:[#allocation2 + $0x50] sm:$0xff]
    %v221 = vld [vmem:[#allocation2 + $0x58] sm:$0xff]
    %v222 = vld [vmem:[#allocation2 + $0x60] sm:$0xff]
    %v223 = vld [vmem:[#allocation2 + $0x68] sm:$0xff]
    %v224 = vld [vmem:[#allocation2 + $0x70] sm:$0xff]
    %v225 = vld [vmem:[#allocation2 + $0x78] sm:$0xff]
    %v226 = vld [vmem:[#allocation2 + $0x80] sm:$0xff]
    %v227 = vld [vmem:[#allocation2 + $0x88] sm:$0xff]
    %v228 = vld [vmem:[#allocation2 + $0x90] sm:$0xff]
    %v229 = vld [vmem:[#allocation2 + $0x98] sm:$0xff]
    %v230 = vld [vmem:[#allocation2 + $0xa0] sm:$0xff]
    %v231 = vld [vmem:[#allocation2 + $0xa8] sm:$0xff]
    %v232 = vld [vmem:[#allocation2 + $0xb0] sm:$0xff]
    %v233 = vld [vmem:[#allocation2 + $0xb8] sm:$0xff]
    %v234 = vld [vmem:[#allocation2 + $0xc0] sm:$0xff]
    %v235 = vld [vmem:[#allocation2 + $0xc8] sm:$0xff]
    %v236 = vld [vmem:[#allocation2 + $0xd0] sm:$0xff]
    %v237 = vld [vmem:[#allocation2 + $0xd8] sm:$0xff]
    %v238 = vld [vmem:[#allocation2 + $0xe0] sm:$0xff]
    %v239 = vld [vmem:[#allocation2 + $0xe8] sm:$0xff]
    %v240 = vld [vmem:[#allocation2 + $0xf0] sm:$0xff]
    %v241 = vld [vmem:[#allocation2 + $0xf8] sm:$0xff]
    %v242 = vld [vmem:[#allocation2 + $0x100] sm:$0xff]
    %v243 = vld [vmem:[#allocation2 + $0x108] sm:$0xff]
    %v244 = vld [vmem:[#allocation2 + $0x110] sm:$0xff]
    %v245 = vld [vmem:[#allocation2 + $0x118] sm:$0xff]
    %v246 = vld [vmem:[#allocation2 + $0x120] sm:$0xff]
    %v247 = vld [vmem:[#allocation2 + $0x128] sm:$0xff]
    %v248 = vld [vmem:[#allocation2 + $0x130] sm:$0xff]
    %v249 = vld [vmem:[#allocation2 + $0x138] sm:$0xff]
    %v250 = vld [vmem:[#allocation2 + $0x140] sm:$0xff]
    %v251 = vld [vmem:[#allocation2 + $0x148] sm:$0xff]
    %v252 = vld [vmem:[#allocation2 + $0x150] sm:$0xff]
    %v253 = vld [vmem:[#allocation2 + $0x158] sm:$0xff]
    %v254 = vld [vmem:[#allocation2 + $0x160] sm:$0xff]
    %v255 = vld [vmem:[#allocation2 + $0x168] sm:$0xff]
    %v256 = vld [vmem:[#allocation2 + $0x170] sm:$0xff]
    %v257 = vld [vmem:[#allocation2 + $0x178] sm:$0xff]
    %v258 = vld [vmem:[#allocation2 + $0x180] sm:$0xff]
    %v259 = vld [vmem:[#allocation2 + $0x188] sm:$0xff]
    %v260 = vld [vmem:[#allocation2 + $0x190] sm:$0xff]
    %v261 = vld [vmem:[#allocation2 + $0x198] sm:$0xff]
    %v262 = vld [vmem:[#allocation2 + $0x1a0] sm:$0xff]
    %v263 = vld [vmem:[#allocation2 + $0x1a8] sm:$0xff]
    %v264 = vld [vmem:[#allocation2 + $0x1b0] sm:$0xff]
    %v265 = vld [vmem:[#allocation2 + $0x1b8] sm:$0xff]
    %v266 = vld [vmem:[#allocation2 + $0x1c0] sm:$0xff]
    %v267 = vld [vmem:[#allocation2 + $0x1c8] sm:$0xff]
    %v268 = vld [vmem:[#allocation2 + $0x1d0] sm:$0xff]
    %v269 = vld [vmem:[#allocation2 + $0x1d8] sm:$0xff]
    %v270 = vld [vmem:[#allocation2 + $0x1e0] sm:$0xff]
    %v271 = vld [vmem:[#allocation2 + $0x1e8] sm:$0xff]
    %v272 = vld [vmem:[#allocation2 + $0x1f0] sm:$0xff]
    %v273 = vld [vmem:[#allocation2 + $0x1f8] sm:$0xff]
    %v274 = vld [vmem:[#allocation2 + $0x200] sm:$0xff]
    %v275 = vld [vmem:[#allocation2 + $0x208] sm:$0xff]
    %v276 = vld [vmem:[#allocation2 + $0x210] sm:$0xff]
    %v277 = vld [vmem:[#allocation2 + $0x218] sm:$0xff]
    %v278 = vld [vmem:[#allocation2 + $0x220] sm:$0xff]
    %v279 = vld [vmem:[#allocation2 + $0x228] sm:$0xff]
    %v280 = vld [vmem:[#allocation2 + $0x230] sm:$0xff]
    %v281 = vld [vmem:[#allocation2 + $0x238] sm:$0xff]
    %v282 = vld [vmem:[#allocation2 + $0x240] sm:$0x33]
    %v283 = vld [vmem:[#allocation2 + $0x248] sm:$0x33]
    %v284 = vld [vmem:[#allocation2 + $0x250] sm:$0x33]
    %v285 = vld [vmem:[#allocation2 + $0x258] sm:$0x33]
    %v286 = vld [vmem:[#allocation5] sm:$0xff]
    %v288 = vlaneseq
    %v289 = vshrl.u32 %v288, 7
    %v290 = vsub.s32 0, %v289
    %v291 = vrot.slane %v286, %v290
    %v292 = vlaneseq
    %v293 = vshrl.u32 %v292, 7
    %v294 = vsub.s32 1, %v293
    %v295 = vrot.slane %v286, %v294
    %v296 = vlaneseq
    %v297 = vshrl.u32 %v296, 7
    %v298 = vsub.s32 2, %v297
    %v299 = vrot.slane %v286, %v298
    %v300 = vlaneseq
    %v301 = vshrl.u32 %v300, 7
    %v302 = vsub.s32 3, %v301
    %v303 = vrot.slane %v286, %v302
    %v304 = vlaneseq
    %v305 = vshrl.u32 %v304, 7
    %v306 = vsub.s32 4, %v305
    %v307 = vrot.slane %v286, %v306
    %v308 = vlaneseq
    %v309 = vshrl.u32 %v308, 7
    %v310 = vsub.s32 5, %v309
    %v311 = vrot.slane %v286, %v310
    %v312 = vlaneseq
    %v313 = vshrl.u32 %v312, 7
    %v314 = vsub.s32 6, %v313
    %v315 = vrot.slane %v286, %v314
    %v316 = vlaneseq
    %v317 = vshrl.u32 %v316, 7
    %v318 = vsub.s32 7, %v317
    %v319 = vrot.slane %v286, %v318
    %v404 = vunpack.c.l.b16 %v210
    %v405 = vunpack.c.h.b16 %v210
    %v406 = vunpack.c.l.b16 %v211
    %v407 = vunpack.c.h.b16 %v211
    %v408 = vunpack.c.l.b16 %v212
    %v409 = vunpack.c.h.b16 %v212
    %v410 = vunpack.c.l.b16 %v213
    %v411 = vunpack.c.h.b16 %v213
    %v412 = vunpack.c.l.b16 %v214
    %v413 = vunpack.c.h.b16 %v214
    %v414 = vunpack.c.l.b16 %v215
    %v415 = vunpack.c.h.b16 %v215
    %v416 = vunpack.c.l.b16 %v216
    %v417 = vunpack.c.h.b16 %v216
    %v418 = vunpack.c.l.b16 %v217
    %v419 = vunpack.c.h.b16 %v217
    %v420 = vunpack.c.l.b16 %v218
    %v421 = vunpack.c.h.b16 %v218
    %v422 = vunpack.c.l.b16 %v219
    %v423 = vunpack.c.h.b16 %v219
    %v424 = vunpack.c.l.b16 %v220
    %v425 = vunpack.c.h.b16 %v220
    %v426 = vunpack.c.l.b16 %v221
    %v427 = vunpack.c.h.b16 %v221
    %v428 = vunpack.c.l.b16 %v222
    %v429 = vunpack.c.h.b16 %v222
    %v430 = vunpack.c.l.b16 %v223
    %v431 = vunpack.c.h.b16 %v223
    %v432 = vunpack.c.l.b16 %v224
    %v433 = vunpack.c.h.b16 %v224
    %v434 = vunpack.c.l.b16 %v225
    %v435 = vunpack.c.h.b16 %v225
    %v436 = vunpack.c.l.b16 %v226
    %v437 = vunpack.c.h.b16 %v226
    %v438 = vunpack.c.l.b16 %v227
    %v439 = vunpack.c.h.b16 %v227
    %v440 = vunpack.c.l.b16 %v228
    %v441 = vunpack.c.h.b16 %v228
    %v442 = vunpack.c.l.b16 %v229
    %v443 = vunpack.c.h.b16 %v229
    %v444 = vunpack.c.l.b16 %v230
    %v445 = vunpack.c.h.b16 %v230
    %v446 = vunpack.c.l.b16 %v231
    %v447 = vunpack.c.h.b16 %v231
    %v448 = vunpack.c.l.b16 %v232
    %v449 = vunpack.c.h.b16 %v232
    %v450 = vunpack.c.l.b16 %v233
    %v451 = vunpack.c.h.b16 %v233
    %v452 = vunpack.c.l.b16 %v234
    %v453 = vunpack.c.h.b16 %v234
    %v454 = vunpack.c.l.b16 %v235
    %v455 = vunpack.c.h.b16 %v235
    %v456 = vunpack.c.l.b16 %v236
    %v457 = vunpack.c.h.b16 %v236
    %v458 = vunpack.c.l.b16 %v237
    %v459 = vunpack.c.h.b16 %v237
    %v460 = vunpack.c.l.b16 %v238
    %v461 = vunpack.c.h.b16 %v238
    %v462 = vunpack.c.l.b16 %v239
    %v463 = vunpack.c.h.b16 %v239
    %v464 = vunpack.c.l.b16 %v240
    %v465 = vunpack.c.h.b16 %v240
    %v466 = vunpack.c.l.b16 %v241
    %v467 = vunpack.c.h.b16 %v241
    %v468 = vunpack.c.l.b16 %v242
    %v469 = vunpack.c.h.b16 %v242
    %v470 = vunpack.c.l.b16 %v243
    %v471 = vunpack.c.h.b16 %v243
    %v472 = vunpack.c.l.b16 %v244
    %v473 = vunpack.c.h.b16 %v244
    %v474 = vunpack.c.l.b16 %v245
    %v475 = vunpack.c.h.b16 %v245
    %v476 = vunpack.c.l.b16 %v246
    %v477 = vunpack.c.h.b16 %v246
    %v478 = vunpack.c.l.b16 %v247
    %v479 = vunpack.c.h.b16 %v247
    %v480 = vunpack.c.l.b16 %v248
    %v481 = vunpack.c.h.b16 %v248
    %v482 = vunpack.c.l.b16 %v249
    %v483 = vunpack.c.h.b16 %v249
    %v484 = vunpack.c.l.b16 %v250
    %v485 = vunpack.c.h.b16 %v250
    %v486 = vunpack.c.l.b16 %v251
    %v487 = vunpack.c.h.b16 %v251
    %v488 = vunpack.c.l.b16 %v252
    %v489 = vunpack.c.h.b16 %v252
    %v490 = vunpack.c.l.b16 %v253
    %v491 = vunpack.c.h.b16 %v253
    %v492 = vunpack.c.l.b16 %v254
    %v493 = vunpack.c.h.b16 %v254
    %v494 = vunpack.c.l.b16 %v255
    %v495 = vunpack.c.h.b16 %v255
    %v496 = vunpack.c.l.b16 %v256
    %v497 = vunpack.c.h.b16 %v256
    %v498 = vunpack.c.l.b16 %v257
    %v499 = vunpack.c.h.b16 %v257
    %v500 = vunpack.c.l.b16 %v258
    %v501 = vunpack.c.h.b16 %v258
    %v502 = vunpack.c.l.b16 %v259
    %v503 = vunpack.c.h.b16 %v259
    %v504 = vunpack.c.l.b16 %v260
    %v505 = vunpack.c.h.b16 %v260
    %v506 = vunpack.c.l.b16 %v261
    %v507 = vunpack.c.h.b16 %v261
    %v508 = vunpack.c.l.b16 %v262
    %v509 = vunpack.c.h.b16 %v262
    %v510 = vunpack.c.l.b16 %v263
    %v511 = vunpack.c.h.b16 %v263
    %v512 = vunpack.c.l.b16 %v264
    %v513 = vunpack.c.h.b16 %v264
    %v514 = vunpack.c.l.b16 %v265
    %v515 = vunpack.c.h.b16 %v265
    %v516 = vunpack.c.l.b16 %v266
    %v517 = vunpack.c.h.b16 %v266
    %v518 = vunpack.c.l.b16 %v267
    %v519 = vunpack.c.h.b16 %v267
    %v520 = vunpack.c.l.b16 %v268
    %v521 = vunpack.c.h.b16 %v268
    %v522 = vunpack.c.l.b16 %v269
    %v523 = vunpack.c.h.b16 %v269
    %v524 = vunpack.c.l.b16 %v270
    %v525 = vunpack.c.h.b16 %v270
    %v526 = vunpack.c.l.b16 %v271
    %v527 = vunpack.c.h.b16 %v271
    %v528 = vunpack.c.l.b16 %v272
    %v529 = vunpack.c.h.b16 %v272
    %v530 = vunpack.c.l.b16 %v273
    %v531 = vunpack.c.h.b16 %v273
    %v532 = vunpack.c.l.b16 %v274
    %v533 = vunpack.c.h.b16 %v274
    %v534 = vunpack.c.l.b16 %v275
    %v535 = vunpack.c.h.b16 %v275
    %v536 = vunpack.c.l.b16 %v276
    %v537 = vunpack.c.h.b16 %v276
    %v538 = vunpack.c.l.b16 %v277
    %v539 = vunpack.c.h.b16 %v277
    %v540 = vunpack.c.l.b16 %v278
    %v541 = vunpack.c.h.b16 %v278
    %v542 = vunpack.c.l.b16 %v279
    %v543 = vunpack.c.h.b16 %v279
    %v544 = vunpack.c.l.b16 %v280
    %v545 = vunpack.c.h.b16 %v280
    %v546 = vunpack.c.l.b16 %v281
    %v547 = vunpack.c.h.b16 %v281
    %v548 = vunpack.c.l.b16 %v282
    %v549 = vunpack.c.h.b16 %v282
    %v550 = vunpack.c.l.b16 %v283
    %v551 = vunpack.c.h.b16 %v283
    %v552 = vunpack.c.l.b16 %v284
    %v553 = vunpack.c.h.b16 %v284
    %v554 = vunpack.c.l.b16 %v285
    %v555 = vunpack.c.h.b16 %v285
    %v556 = vpack.c.b16 %v412, %v404
    %v557 = vpack.c.b16 %v413, %v405
    %v558 = vpack.c.b16 %v414, %v406
    %v559 = vpack.c.b16 %v415, %v407
    %v560 = vpack.c.b16 %v416, %v408
    %v561 = vpack.c.b16 %v417, %v409
    %v562 = vpack.c.b16 %v418, %v410
    %v563 = vpack.c.b16 %v419, %v411
    %v564 = vpack.c.b16 %v428, %v420
    %v565 = vpack.c.b16 %v429, %v421
    %v566 = vpack.c.b16 %v430, %v422
    %v567 = vpack.c.b16 %v431, %v423
    %v568 = vpack.c.b16 %v432, %v424
    %v569 = vpack.c.b16 %v433, %v425
    %v570 = vpack.c.b16 %v434, %v426
    %v571 = vpack.c.b16 %v435, %v427
    %v572 = vpack.c.b16 %v444, %v436
    %v573 = vpack.c.b16 %v445, %v437
    %v574 = vpack.c.b16 %v446, %v438
    %v575 = vpack.c.b16 %v447, %v439
    %v576 = vpack.c.b16 %v448, %v440
    %v577 = vpack.c.b16 %v449, %v441
    %v578 = vpack.c.b16 %v450, %v442
    %v579 = vpack.c.b16 %v451, %v443
    %v580 = vpack.c.b16 %v460, %v452
    %v581 = vpack.c.b16 %v461, %v453
    %v582 = vpack.c.b16 %v462, %v454
    %v583 = vpack.c.b16 %v463, %v455
    %v584 = vpack.c.b16 %v464, %v456
    %v585 = vpack.c.b16 %v465, %v457
    %v586 = vpack.c.b16 %v466, %v458
    %v587 = vpack.c.b16 %v467, %v459
    %v588 = vpack.c.b16 %v476, %v468
    %v589 = vpack.c.b16 %v477, %v469
    %v590 = vpack.c.b16 %v478, %v470
    %v591 = vpack.c.b16 %v479, %v471
    %v592 = vpack.c.b16 %v480, %v472
    %v593 = vpack.c.b16 %v481, %v473
    %v594 = vpack.c.b16 %v482, %v474
    %v595 = vpack.c.b16 %v483, %v475
    %v596 = vpack.c.b16 %v492, %v484
    %v597 = vpack.c.b16 %v493, %v485
    %v598 = vpack.c.b16 %v494, %v486
    %v599 = vpack.c.b16 %v495, %v487
    %v600 = vpack.c.b16 %v496, %v488
    %v601 = vpack.c.b16 %v497, %v489
    %v602 = vpack.c.b16 %v498, %v490
    %v603 = vpack.c.b16 %v499, %v491
    %v604 = vpack.c.b16 %v508, %v500
    %v605 = vpack.c.b16 %v509, %v501
    %v606 = vpack.c.b16 %v510, %v502
    %v607 = vpack.c.b16 %v511, %v503
    %v608 = vpack.c.b16 %v512, %v504
    %v609 = vpack.c.b16 %v513, %v505
    %v610 = vpack.c.b16 %v514, %v506
    %v611 = vpack.c.b16 %v515, %v507
    %v612 = vpack.c.b16 %v524, %v516
    %v613 = vpack.c.b16 %v525, %v517
    %v614 = vpack.c.b16 %v526, %v518
    %v615 = vpack.c.b16 %v527, %v519
    %v616 = vpack.c.b16 %v528, %v520
    %v617 = vpack.c.b16 %v529, %v521
    %v618 = vpack.c.b16 %v530, %v522
    %v619 = vpack.c.b16 %v531, %v523
    %v620 = vpack.c.b16 %v540, %v532
    %v621 = vpack.c.b16 %v541, %v533
    %v622 = vpack.c.b16 %v542, %v534
    %v623 = vpack.c.b16 %v543, %v535
    %v624 = vpack.c.b16 %v544, %v536
    %v625 = vpack.c.b16 %v545, %v537
    %v626 = vpack.c.b16 %v546, %v538
    %v627 = vpack.c.b16 %v547, %v539
    %v628 = vpack.c.b16 %v548, %v548
    %v629 = vpack.c.b16 %v549, %v549
    %v630 = vpack.c.b16 %v550, %v550
    %v631 = vpack.c.b16 %v551, %v551
    %v632 = vpack.c.b16 %v552, %v552
    %v633 = vpack.c.b16 %v553, %v553
    %v634 = vpack.c.b16 %v554, %v554
    %v635 = vpack.c.b16 %v555, %v555
    %vm708 = vcmask 154624
    %v710 = vsel %vm708, %v209, 0
    %vm712 = vcmask 1040384
    %vm713 = vcmask 1041408
    %v714 = vsel %vm712, 4294967295, 65535
    %v715 = vsel %vm713, %v714, 0
    %v717 = vand.u32 %v628, %v715
    %v720 = vand.u32 %v629, %v715
    %v723 = vand.u32 %v630, %v715
    %v726 = vand.u32 %v631, %v715
    %v729 = vand.u32 %v632, %v715
    %v732 = vand.u32 %v633, %v715
    %v735 = vand.u32 %v634, %v715
    %v738 = vand.u32 %v635, %v715
    %740 = vmatprep.subr.bf16.mxu0 %v613
    %741 = vmatpush1.bf16.msra.mxu0 %v612
    %742 = vmatprep.subr.bf16.mxu0 %v605
    %743 = vmatpush1.bf16.msra.mxu0 %v604
    %744 = vmatprep.subr.bf16.mxu0 %v597
    %745 = vmatpush1.bf16.msra.mxu0 %v596
    %746 = vmatprep.subr.bf16.mxu0 %v589
    %747 = vmatpush1.bf16.msra.mxu0 %v588
    %748 = vmatprep.subr.bf16.mxu0 %v581
    %749 = vmatpush1.bf16.msra.mxu0 %v580
    %750 = vmatprep.subr.bf16.mxu0 %v573
    %751 = vmatpush1.bf16.msra.mxu0 %v572
    %752 = vmatprep.subr.bf16.mxu0 %v565
    %753 = vmatpush1.bf16.msra.mxu0 %v564
    %754 = vmatprep.subr.bf16.mxu0 %v557
    %755 = vmatpush1.bf16.msra.mxu0 %v556
    %756 = vmatprep.subr.bf16.mxu0 0
    %757 = vmatpush2.bf16.msra.mxu0 0
    %758 = vmatprep.subr.bf16.mxu0 0
    %759 = vmatpush2.bf16.msra.mxu0 0
    %760 = vmatprep.subr.bf16.mxu0 0
    %761 = vmatpush2.bf16.msra.mxu0 0
    %762 = vmatprep.subr.bf16.mxu0 0
    %763 = vmatpush2.bf16.msra.mxu0 0
    %764 = vmatprep.subr.bf16.mxu0 0
    %765 = vmatpush2.bf16.msra.mxu0 0
    %766 = vmatprep.subr.bf16.mxu0 0
    %767 = vmatpush2.bf16.msra.mxu0 0
    %768 = vmatprep.subr.bf16.mxu0 %v720
    %769 = vmatpush2.bf16.msra.mxu0 %v717
    %770 = vmatprep.subr.bf16.mxu0 %v621
    %771 = vmatpush2.bf16.msra.mxu0 %v620
    %772 = vmatprep.mubr.bf16.mxu0 %v710
    %773 = vmatmul.mubr.bf16.gmra.mxu0 %v208
    %v774 = vpop.f32.mrf.mxu0
    %v775 = vadd.f32 %v291, %v774
    %v776 = vpop.f32.mrf.mxu0
    %v777 = vadd.f32 %v295, %v776
    %v778 = vpop.f32.mrf.mxu0
    %v779 = vpop.f32.mrf.mxu0
    %780 = vdwg.mxu0
    %781 = vmatprep.subr.bf16.mxu0 %v615
    %782 = vmatpush1.bf16.msra.mxu0 %v614
    %783 = vmatprep.subr.bf16.mxu0 %v607
    %784 = vmatpush1.bf16.msra.mxu0 %v606
    %785 = vmatprep.subr.bf16.mxu0 %v599
    %786 = vmatpush1.bf16.msra.mxu0 %v598
    %787 = vmatprep.subr.bf16.mxu0 %v591
    %788 = vmatpush1.bf16.msra.mxu0 %v590
    %789 = vmatprep.subr.bf16.mxu0 %v583
    %790 = vmatpush1.bf16.msra.mxu0 %v582
    %791 = vmatprep.subr.bf16.mxu0 %v575
    %792 = vmatpush1.bf16.msra.mxu0 %v574
    %793 = vmatprep.subr.bf16.mxu0 %v567
    %794 = vmatpush1.bf16.msra.mxu0 %v566
    %795 = vmatprep.subr.bf16.mxu0 %v559
    %796 = vmatpush1.bf16.msra.mxu0 %v558
    %797 = vmatprep.subr.bf16.mxu0 0
    %798 = vmatpush2.bf16.msra.mxu0 0
    %799 = vmatprep.subr.bf16.mxu0 0
    %800 = vmatpush2.bf16.msra.mxu0 0
    %801 = vmatprep.subr.bf16.mxu0 0
    %802 = vmatpush2.bf16.msra.mxu0 0
    %803 = vmatprep.subr.bf16.mxu0 0
    %804 = vmatpush2.bf16.msra.mxu0 0
    %805 = vmatprep.subr.bf16.mxu0 0
    %806 = vmatpush2.bf16.msra.mxu0 0
    %807 = vmatprep.subr.bf16.mxu0 0
    %808 = vmatpush2.bf16.msra.mxu0 0
    %809 = vmatprep.subr.bf16.mxu0 %v726
    %810 = vmatpush2.bf16.msra.mxu0 %v723
    %811 = vmatprep.subr.bf16.mxu0 %v623
    %812 = vmatpush2.bf16.msra.mxu0 %v622
    %813 = vmatprep.mubr.bf16.mxu0 %v710
    %814 = vmatmul.mubr.bf16.gmra.mxu0 %v208
    %v815 = vpop.f32.mrf.mxu0
    %v816 = vadd.f32 %v299, %v815
    %v817 = vpop.f32.mrf.mxu0
    %v818 = vadd.f32 %v303, %v817
    %v819 = vpop.f32.mrf.mxu0
    %v820 = vpop.f32.mrf.mxu0
    %821 = vdwg.mxu0
    %822 = vmatprep.subr.bf16.mxu0 %v617
    %823 = vmatpush1.bf16.msra.mxu0 %v616
    %824 = vmatprep.subr.bf16.mxu0 %v609
    %825 = vmatpush1.bf16.msra.mxu0 %v608
    %826 = vmatprep.subr.bf16.mxu0 %v601
    %827 = vmatpush1.bf16.msra.mxu0 %v600
    %828 = vmatprep.subr.bf16.mxu0 %v593
    %829 = vmatpush1.bf16.msra.mxu0 %v592
    %830 = vmatprep.subr.bf16.mxu0 %v585
    %831 = vmatpush1.bf16.msra.mxu0 %v584
    %832 = vmatprep.subr.bf16.mxu0 %v577
    %833 = vmatpush1.bf16.msra.mxu0 %v576
    %834 = vmatprep.subr.bf16.mxu0 %v569
    %835 = vmatpush1.bf16.msra.mxu0 %v568
    %836 = vmatprep.subr.bf16.mxu0 %v561
    %837 = vmatpush1.bf16.msra.mxu0 %v560
    %838 = vmatprep.subr.bf16.mxu0 0
    %839 = vmatpush2.bf16.msra.mxu0 0
    %840 = vmatprep.subr.bf16.mxu0 0
    %841 = vmatpush2.bf16.msra.mxu0 0
    %842 = vmatprep.subr.bf16.mxu0 0
    %843 = vmatpush2.bf16.msra.mxu0 0
    %844 = vmatprep.subr.bf16.mxu0 0
    %845 = vmatpush2.bf16.msra.mxu0 0
    %846 = vmatprep.subr.bf16.mxu0 0
    %847 = vmatpush2.bf16.msra.mxu0 0
    %848 = vmatprep.subr.bf16.mxu0 0
    %849 = vmatpush2.bf16.msra.mxu0 0
    %850 = vmatprep.subr.bf16.mxu0 %v732
    %851 = vmatpush2.bf16.msra.mxu0 %v729
    %852 = vmatprep.subr.bf16.mxu0 %v625
    %853 = vmatpush2.bf16.msra.mxu0 %v624
    %854 = vmatprep.mubr.bf16.mxu0 %v710
    %855 = vmatmul.mubr.bf16.gmra.mxu0 %v208
    %v856 = vpop.f32.mrf.mxu0
    %v857 = vadd.f32 %v307, %v856
    %v858 = vpop.f32.mrf.mxu0
    %v859 = vadd.f32 %v311, %v858
    %v860 = vpop.f32.mrf.mxu0
    %v861 = vpop.f32.mrf.mxu0
    %862 = vdwg.mxu0
    %863 = vmatprep.subr.bf16.mxu0 %v619
    %864 = vmatpush1.bf16.msra.mxu0 %v618
    %865 = vmatprep.subr.bf16.mxu0 %v611
    %866 = vmatpush1.bf16.msra.mxu0 %v610
    %867 = vmatprep.subr.bf16.mxu0 %v603
    %868 = vmatpush1.bf16.msra.mxu0 %v602
    %869 = vmatprep.subr.bf16.mxu0 %v595
    %870 = vmatpush1.bf16.msra.mxu0 %v594
    %871 = vmatprep.subr.bf16.mxu0 %v587
    %872 = vmatpush1.bf16.msra.mxu0 %v586
    %873 = vmatprep.subr.bf16.mxu0 %v579
    %874 = vmatpush1.bf16.msra.mxu0 %v578
    %875 = vmatprep.subr.bf16.mxu0 %v571
    %876 = vmatpush1.bf16.msra.mxu0 %v570
    %877 = vmatprep.subr.bf16.mxu0 %v563
    %878 = vmatpush1.bf16.msra.mxu0 %v562
    %879 = vmatprep.subr.bf16.mxu0 0
    %880 = vmatpush2.bf16.msra.mxu0 0
    %881 = vmatprep.subr.bf16.mxu0 0
    %882 = vmatpush2.bf16.msra.mxu0 0
    %883 = vmatprep.subr.bf16.mxu0 0
    %884 = vmatpush2.bf16.msra.mxu0 0
    %885 = vmatprep.subr.bf16.mxu0 0
    %886 = vmatpush2.bf16.msra.mxu0 0
    %887 = vmatprep.subr.bf16.mxu0 0
    %888 = vmatpush2.bf16.msra.mxu0 0
    %889 = vmatprep.subr.bf16.mxu0 0
    %890 = vmatpush2.bf16.msra.mxu0 0
    %891 = vmatprep.subr.bf16.mxu0 %v738
    %892 = vmatpush2.bf16.msra.mxu0 %v735
    %893 = vmatprep.subr.bf16.mxu0 %v627
    %894 = vmatpush2.bf16.msra.mxu0 %v626
    %895 = vmatprep.mubr.bf16.mxu0 %v710
    %896 = vmatmul.mubr.bf16.gmra.mxu0 %v208
    %v897 = vpop.f32.mrf.mxu0
    %v898 = vadd.f32 %v315, %v897
    %v899 = vpop.f32.mrf.mxu0
    %v900 = vadd.f32 %v319, %v899
    %v901 = vpop.f32.mrf.mxu0
    %v902 = vpop.f32.mrf.mxu0
    %903 = vdwg.mxu0
    %v904 = vmax.f32 %v775, 0.0
    %v905 = vmax.f32 %v777, 0.0
    %v906 = vmax.f32 %v816, 0.0
    %v907 = vmax.f32 %v818, 0.0
    %v908 = vmax.f32 %v857, 0.0
    %v909 = vmax.f32 %v859, 0.0
    %v910 = vmax.f32 %v898, 0.0
    %v911 = vmax.f32 %v900, 0.0
    %v912 = vmax.f32 %v904, %v906
    %v913 = vmax.f32 %v905, %v907
    %v914 = vmax.f32 %v908, %v910
    %v915 = vmax.f32 %v909, %v911
    %v916 = vmax.f32 %v912, %v914
    %v917 = vmax.f32 %v913, %v915
    %v918 = vpack.c.bf16 %v916, %v916
    %v919 = vpack.c.bf16 %v917, %v917
    %v920 = vld [vmem:[%s5] sm:$0xf]
    %v921 = vld [vmem:[%s5 + $0x4] sm:$0xf]
    %v922 = vld [vmem:[%s5 + $0x8] sm:$0xf]
    %v923 = vld [vmem:[%s5 + $0xc] sm:$0xf]
    %v924 = vld [vmem:[%s5 + $0x10] sm:$0xf]
    %v925 = vld [vmem:[%s5 + $0x14] sm:$0xf]
    %v926 = vld [vmem:[%s5 + $0x18] sm:$0xf]
    %v927 = vld [vmem:[%s5 + $0x1c] sm:$0xf]
    %v928 = vld [vmem:[%s5 + $0x20] sm:$0xf]
    %v929 = vld [vmem:[%s5 + $0x24] sm:$0xf]
    %v930 = vld [vmem:[%s5 + $0x28] sm:$0xf]
    %v931 = vld [vmem:[%s5 + $0x2c] sm:$0xf]
    %v932 = vld [vmem:[%s5 + $0x30] sm:$0xf]
    %v933 = vld [vmem:[%s5 + $0x34] sm:$0xf]
    %v934 = vld [vmem:[%s5 + $0x38] sm:$0xf]
    %v935 = vld [vmem:[%s5 + $0x3c] sm:$0xf]
    %v936 = vld [vmem:[%s5 + $0x40] sm:$0xf]
    %v937 = vld [vmem:[%s5 + $0x44] sm:$0xf]
    %v938 = vld [vmem:[%s5 + $0x48] sm:$0xf]
    %v939 = vld [vmem:[%s5 + $0x4c] sm:$0xf]
    %v940 = vld [vmem:[%s5 + $0x50] sm:$0xf]
    %v941 = vld [vmem:[%s5 + $0x54] sm:$0xf]
    %v942 = vld [vmem:[%s5 + $0x58] sm:$0xf]
    %v943 = vld [vmem:[%s5 + $0x5c] sm:$0xf]
    %v944 = vld [vmem:[%s5 + $0x60] sm:$0xf]
    %v945 = vld [vmem:[%s5 + $0x64] sm:$0xf]
    %v946 = vld [vmem:[%s5 + $0x68] sm:$0xf]
    %v947 = vld [vmem:[%s5 + $0x6c] sm:$0xf]
    %v948 = vld [vmem:[%s5 + $0x70] sm:$0xf]
    %v949 = vld [vmem:[%s5 + $0x74] sm:$0xf]
    %v950 = vld [vmem:[%s5 + $0x78] sm:$0xf]
    %v951 = vld [vmem:[%s5 + $0x7c] sm:$0xf]
    %v952 = vld [vmem:[#allocation7] sm:$0x1]
    %v954 = vlaneseq
    %v955 = vshrl.u32 %v954, 7
    %v956 = vsub.s32 0, %v955
    %v957 = vrot.slane %v952, %v956
    %v991 = vunpack.c.l.b16 %v920
    %v992 = vunpack.c.l.b16 %v921
    %v993 = vunpack.c.l.b16 %v922
    %v994 = vunpack.c.l.b16 %v923
    %v995 = vunpack.c.l.b16 %v924
    %v996 = vunpack.c.l.b16 %v925
    %v997 = vunpack.c.l.b16 %v926
    %v998 = vunpack.c.l.b16 %v927
    %v999 = vunpack.c.l.b16 %v928
    %v1000 = vunpack.c.l.b16 %v929
    %v1001 = vunpack.c.l.b16 %v930
    %v1002 = vunpack.c.l.b16 %v931
    %v1003 = vunpack.c.l.b16 %v932
    %v1004 = vunpack.c.l.b16 %v933
    %v1005 = vunpack.c.l.b16 %v934
    %v1006 = vunpack.c.l.b16 %v935
    %v1007 = vunpack.c.l.b16 %v936
    %v1008 = vunpack.c.l.b16 %v937
    %v1009 = vunpack.c.l.b16 %v938
    %v1010 = vunpack.c.l.b16 %v939
    %v1011 = vunpack.c.l.b16 %v940
    %v1012 = vunpack.c.l.b16 %v941
    %v1013 = vunpack.c.l.b16 %v942
    %v1014 = vunpack.c.l.b16 %v943
    %v1015 = vunpack.c.l.b16 %v944
    %v1016 = vunpack.c.l.b16 %v945
    %v1017 = vunpack.c.l.b16 %v946
    %v1018 = vunpack.c.l.b16 %v947
    %v1019 = vunpack.c.l.b16 %v948
    %v1020 = vunpack.c.l.b16 %v949
    %v1021 = vunpack.c.l.b16 %v950
    %v1022 = vunpack.c.l.b16 %v951
    %v1023 = vpack.c.b16 %v992, %v991
    %v1024 = vpack.c.b16 %v994, %v993
    %v1025 = vpack.c.b16 %v996, %v995
    %v1026 = vpack.c.b16 %v998, %v997
    %v1027 = vpack.c.b16 %v1000, %v999
    %v1028 = vpack.c.b16 %v1002, %v1001
    %v1029 = vpack.c.b16 %v1004, %v1003
    %v1030 = vpack.c.b16 %v1006, %v1005
    %v1031 = vpack.c.b16 %v1008, %v1007
    %v1032 = vpack.c.b16 %v1010, %v1009
    %v1033 = vpack.c.b16 %v1012, %v1011
    %v1034 = vpack.c.b16 %v1014, %v1013
    %v1035 = vpack.c.b16 %v1016, %v1015
    %v1036 = vpack.c.b16 %v1018, %v1017
    %v1037 = vpack.c.b16 %v1020, %v1019
    %v1038 = vpack.c.b16 %v1022, %v1021
    %1055 = vmatprep.subr.bf16.mxu0 0
    %1056 = vmatpush1.bf16.msra.mxu0 %v1030
    %1057 = vmatprep.subr.bf16.mxu0 0
    %1058 = vmatpush1.bf16.msra.mxu0 %v1029
    %1059 = vmatprep.subr.bf16.mxu0 0
    %1060 = vmatpush1.bf16.msra.mxu0 %v1028
    %1061 = vmatprep.subr.bf16.mxu0 0
    %1062 = vmatpush1.bf16.msra.mxu0 %v1027
    %1063 = vmatprep.subr.bf16.mxu0 0
    %1064 = vmatpush1.bf16.msra.mxu0 %v1026
    %1065 = vmatprep.subr.bf16.mxu0 0
    %1066 = vmatpush1.bf16.msra.mxu0 %v1025
    %1067 = vmatprep.subr.bf16.mxu0 0
    %1068 = vmatpush1.bf16.msra.mxu0 %v1024
    %1069 = vmatprep.subr.bf16.mxu0 0
    %1070 = vmatpush1.bf16.msra.mxu0 %v1023
    %1071 = vmatprep.subr.bf16.mxu0 0
    %1072 = vmatpush2.bf16.msra.mxu0 %v1038
    %1073 = vmatprep.subr.bf16.mxu0 0
    %1074 = vmatpush2.bf16.msra.mxu0 %v1037
    %1075 = vmatprep.subr.bf16.mxu0 0
    %1076 = vmatpush2.bf16.msra.mxu0 %v1036
    %1077 = vmatprep.subr.bf16.mxu0 0
    %1078 = vmatpush2.bf16.msra.mxu0 %v1035
    %1079 = vmatprep.subr.bf16.mxu0 0
    %1080 = vmatpush2.bf16.msra.mxu0 %v1034
    %1081 = vmatprep.subr.bf16.mxu0 0
    %1082 = vmatpush2.bf16.msra.mxu0 %v1033
    %1083 = vmatprep.subr.bf16.mxu0 0
    %1084 = vmatpush2.bf16.msra.mxu0 %v1032
    %1085 = vmatprep.subr.bf16.mxu0 0
    %1086 = vmatpush2.bf16.msra.mxu0 %v1031
    %1087 = vmatprep.mubr.bf16.mxu0 %v919
    %1088 = vmatmul.mubr.bf16.gmra.mxu0 %v918
    %v1089 = vpop.f32.mrf.mxu0
    %v1090 = vadd.f32 %v957, %v1089
    %v1091 = vpop.f32.mrf.mxu0
    %v1092 = vpop.f32.mrf.mxu0
    %v1093 = vpop.f32.mrf.mxu0
    %1094 = vdwg.mxu0
    %v1095 = vmax.f32 %v1090, 0.0
    %v1096 = vpack.c.bf16 %v1095, %v1095
    %v1097 = vld [vmem:[%s7] sm:$0xf]
    %v1098 = vld [vmem:[%s7 + $0x4] sm:$0xf]
    %v1099 = vld [vmem:[%s7 + $0x8] sm:$0xf]
    %v1100 = vld [vmem:[%s7 + $0xc] sm:$0xf]
    %v1101 = vld [vmem:[%s7 + $0x10] sm:$0xf]
    %v1102 = vld [vmem:[%s7 + $0x14] sm:$0xf]
    %v1103 = vld [vmem:[%s7 + $0x18] sm:$0xf]
    %v1104 = vld [vmem:[%s7 + $0x1c] sm:$0xf]
    %v1105 = vld [vmem:[%s7 + $0x20] sm:$0xf]
    %v1106 = vld [vmem:[%s7 + $0x24] sm:$0xf]
    %v1107 = vld [vmem:[%s7 + $0x28] sm:$0xf]
    %v1108 = vld [vmem:[%s7 + $0x2c] sm:$0xf]
    %v1109 = vld [vmem:[%s7 + $0x30] sm:$0xf]
    %v1110 = vld [vmem:[%s7 + $0x34] sm:$0xf]
    %v1111 = vld [vmem:[%s7 + $0x38] sm:$0xf]
    %v1112 = vld [vmem:[%s7 + $0x3c] sm:$0xf]
    %v1113 = vld [vmem:[#allocation8] sm:$0x1]
    %v1115 = vlaneseq
    %v1116 = vshrl.u32 %v1115, 7
    %v1117 = vsub.s32 0, %v1116
    %v1118 = vrot.slane %v1113, %v1117
    %v1136 = vunpack.c.l.b16 %v1097
    %v1137 = vunpack.c.l.b16 %v1098
    %v1138 = vunpack.c.l.b16 %v1099
    %v1139 = vunpack.c.l.b16 %v1100
    %v1140 = vunpack.c.l.b16 %v1101
    %v1141 = vunpack.c.l.b16 %v1102
    %v1142 = vunpack.c.l.b16 %v1103
    %v1143 = vunpack.c.l.b16 %v1104
    %v1144 = vunpack.c.l.b16 %v1105
    %v1145 = vunpack.c.l.b16 %v1106
    %v1146 = vunpack.c.l.b16 %v1107
    %v1147 = vunpack.c.l.b16 %v1108
    %v1148 = vunpack.c.l.b16 %v1109
    %v1149 = vunpack.c.l.b16 %v1110
    %v1150 = vunpack.c.l.b16 %v1111
    %v1151 = vunpack.c.l.b16 %v1112
    %v1152 = vpack.c.b16 %v1137, %v1136
    %v1153 = vpack.c.b16 %v1139, %v1138
    %v1154 = vpack.c.b16 %v1141, %v1140
    %v1155 = vpack.c.b16 %v1143, %v1142
    %v1156 = vpack.c.b16 %v1145, %v1144
    %v1157 = vpack.c.b16 %v1147, %v1146
    %v1158 = vpack.c.b16 %v1149, %v1148
    %v1159 = vpack.c.b16 %v1151, %v1150
    %1168 = vmatprep.subr.bf16.mxu0 0
    %1169 = vmatpush1.bf16.msra.mxu0 %v1159
    %1170 = vmatprep.subr.bf16.mxu0 0
    %1171 = vmatpush1.bf16.msra.mxu0 %v1158
    %1172 = vmatprep.subr.bf16.mxu0 0
    %1173 = vmatpush1.bf16.msra.mxu0 %v1157
    %1174 = vmatprep.subr.bf16.mxu0 0
    %1175 = vmatpush1.bf16.msra.mxu0 %v1156
    %1176 = vmatprep.subr.bf16.mxu0 0
    %1177 = vmatpush1.bf16.msra.mxu0 %v1155
    %1178 = vmatprep.subr.bf16.mxu0 0
    %1179 = vmatpush1.bf16.msra.mxu0 %v1154
    %1180 = vmatprep.subr.bf16.mxu0 0
    %1181 = vmatpush1.bf16.msra.mxu0 %v1153
    %1182 = vmatprep.subr.bf16.mxu0 0
    %1183 = vmatpush1.bf16.msra.mxu0 %v1152
    %1184 = vmatprep.subr.bf16.mxu0 0
    %1185 = vmatpush2.bf16.msra.mxu0 0
    %1186 = vmatprep.subr.bf16.mxu0 0
    %1187 = vmatpush2.bf16.msra.mxu0 0
    %1188 = vmatprep.subr.bf16.mxu0 0
    %1189 = vmatpush2.bf16.msra.mxu0 0
    %1190 = vmatprep.subr.bf16.mxu0 0
    %1191 = vmatpush2.bf16.msra.mxu0 0
    %1192 = vmatprep.subr.bf16.mxu0 0
    %1193 = vmatpush2.bf16.msra.mxu0 0
    %1194 = vmatprep.subr.bf16.mxu0 0
    %1195 = vmatpush2.bf16.msra.mxu0 0
    %1196 = vmatprep.subr.bf16.mxu0 0
    %1197 = vmatpush2.bf16.msra.mxu0 0
    %1198 = vmatprep.subr.bf16.mxu0 0
    %1199 = vmatpush2.bf16.msra.mxu0 0
    %1200 = vmatprep.mubr.bf16.mxu0 0
    %1201 = vmatmul.mubr.bf16.gmra.mxu0 %v1096
    %v1202 = vpop.f32.mrf.mxu0
    %v1203 = vadd.f32 %v1118, %v1202
    %v1204 = vpop.f32.mrf.mxu0
    %v1205 = vpop.f32.mrf.mxu0
    %v1206 = vpop.f32.mrf.mxu0
    %1207 = vdwg.mxu0
    %v1208 = vmax.f32 %v1203, 0.0
    %v1209 = vld [vmem:[%s2] sm:$0x3]
    %v1210 = vlaneseq
    %v1211 = vshrl.u32 %v1210, 7
    %v1212 = vlaneseq
    %v1213 = vand.u32 %v1212, 127
    %vm1214 = vcmp.lt.s32.totalorder %v1211, 2
    %v1215 = vsel %vm1214, 1, 0
    %v1216 = vcvt.s32.f32 %v1215
    %v1217 = vsub.f32 1.0, %v1216
    %v1218 = vld [vmem:[#allocation11] sm:$0x1]
    %v1219 = vlaneseq
    %v1220 = vshrl.u32 %v1219, 7
    %v1221 = vsub.s32 0, %v1220
    %v1222 = vrot.slane %v1218, %v1221
    %v1223 = vmul.f32 %v1222, %v1216
    %v1224 = vld [vmem:[#allocation11 + $0x1] sm:$0x1]
    %v1225 = vlaneseq
    %v1226 = vshrl.u32 %v1225, 7
    %v1227 = vsub.s32 0, %v1226
    %v1228 = vrot.slane %v1224, %v1227
    %v1229 = vmul.f32 %v1228, %v1217
    %v1230 = vadd.f32 %v1223, %v1229
    %v1231 = vld [vmem:[#allocation10] sm:$0xf]
    %v1232 = vld [vmem:[#allocation10 + $0x4] sm:$0xf]
    %v1233 = vld [vmem:[#allocation10 + $0x8] sm:$0xf]
    %v1234 = vld [vmem:[#allocation10 + $0xc] sm:$0xf]
    %v1235 = vld [vmem:[#allocation10 + $0x10] sm:$0xf]
    %v1236 = vld [vmem:[%s10] sm:$0xf]
    %v1237 = vld [vmem:[%s10 + $0x4] sm:$0xf]
    %v1238 = vld [vmem:[%s10 + $0x8] sm:$0xf]
    %v1239 = vld [vmem:[%s10 + $0xc] sm:$0xf]
    %v1240 = vld [vmem:[%s10 + $0x10] sm:$0xf]
    %v1241 = vld [vmem:[%s10 + $0x14] sm:$0xf]
    %v1242 = vld [vmem:[%s10 + $0x18] sm:$0xf]
    %v1243 = vld [vmem:[%s10 + $0x1c] sm:$0xf]
    %v1244 = vadd.s32 %v1209, 20
    %v1245 = vrot.slane %v1244, 6
    %1246 = vrot.lane.b32.xlu0 %v1245, 121
    %v1247 = vpop.permute.xlu0 %1246
    %v1248 = vsel %vm713, %v1209, %v1247
    %1249 = vset.pattern.permute.xlu0 0
    %1250 = vperm.xlu0 %1249, %v1248
    %v1251 = vpop.permute.xlu0 %1250
    %vm1252 = vcmp.eq.s32.totalorder %v1213, %v1251
    %v1253 = vsel %vm1252, 1, 0
    %v1254 = vcvt.s32.f32 %v1253
    %v1255 = vpack.c.bf16 %v1254, %v1254
    %v1261 = vunpack.c.l.b16 %v1231
    %v1262 = vunpack.c.l.b16 %v1232
    %v1263 = vunpack.c.l.b16 %v1233
    %v1264 = vunpack.c.l.b16 %v1234
    %v1265 = vunpack.c.l.b16 %v1235
    %v1266 = vpack.c.b16 %v1262, %v1261
    %v1267 = vpack.c.b16 %v1264, %v1263
    %v1268 = vpack.c.b16 %v1265, %v1265
    %vm1271 = vcmask 326656
    %v1273 = vsel %vm1271, %v1255, 0
    %vm1275 = vcmask 1043456
    %v1277 = vsel %vm1275, %v1268, 0
    %1279 = vmatprep.subr.bf16.mxu0 0
    %1280 = vmatpush1.bf16.msra.mxu0 0
    %1281 = vmatprep.subr.bf16.mxu0 0
    %1282 = vmatpush1.bf16.msra.mxu0 0
    %1283 = vmatprep.subr.bf16.mxu0 0
    %1284 = vmatpush1.bf16.msra.mxu0 0
    %1285 = vmatprep.subr.bf16.mxu0 0
    %1286 = vmatpush1.bf16.msra.mxu0 0
    %1287 = vmatprep.subr.bf16.mxu0 0
    %1288 = vmatpush1.bf16.msra.mxu0 0
    %1289 = vmatprep.subr.bf16.mxu0 0
    %1290 = vmatpush1.bf16.msra.mxu0 %v1277
    %1291 = vmatprep.subr.bf16.mxu0 0
    %1292 = vmatpush1.bf16.msra.mxu0 %v1267
    %1293 = vmatprep.subr.bf16.mxu0 0
    %1294 = vmatpush1.bf16.msra.mxu0 %v1266
    %1295 = vmatprep.subr.bf16.mxu0 0
    %1296 = vmatpush2.bf16.msra.mxu0 0
    %1297 = vmatprep.subr.bf16.mxu0 0
    %1298 = vmatpush2.bf16.msra.mxu0 0
    %1299 = vmatprep.subr.bf16.mxu0 0
    %1300 = vmatpush2.bf16.msra.mxu0 0
    %1301 = vmatprep.subr.bf16.mxu0 0
    %1302 = vmatpush2.bf16.msra.mxu0 0
    %1303 = vmatprep.subr.bf16.mxu0 0
    %1304 = vmatpush2.bf16.msra.mxu0 0
    %1305 = vmatprep.subr.bf16.mxu0 0
    %1306 = vmatpush2.bf16.msra.mxu0 0
    %1307 = vmatprep.subr.bf16.mxu0 0
    %1308 = vmatpush2.bf16.msra.mxu0 0
    %1309 = vmatprep.subr.bf16.mxu0 0
    %1310 = vmatpush2.bf16.msra.mxu0 0
    %1311 = vmatprep.mubr.bf16.mxu0 0
    %1312 = vmatmul.mubr.bf16.gmra.mxu0 %v1273
    %v1313 = vpop.f32.mrf.mxu0
    %v1314 = vadd.f32 0.0, %v1313
    %v1315 = vpop.f32.mrf.mxu0
    %v1316 = vpop.f32.mrf.mxu0
    %v1317 = vpop.f32.mrf.mxu0
    %1318 = vdwg.mxu0
    %v1319 = vmul.f32 %v1216, 0.0
    %v1320 = vmul.f32 %v1217, 0.0
    %vm1321 = vcmask 261120
    %v1322 = vsel %vm1321, %v1319, %v1320
    %v1323 = vpack.c.bf16 %v1322, %v1322
    %v1332 = vunpack.c.l.b16 %v1236
    %v1333 = vunpack.c.l.b16 %v1237
    %v1334 = vunpack.c.l.b16 %v1238
    %v1335 = vunpack.c.l.b16 %v1239
    %v1336 = vunpack.c.l.b16 %v1240
    %v1337 = vunpack.c.l.b16 %v1241
    %v1338 = vunpack.c.l.b16 %v1242
    %v1339 = vunpack.c.l.b16 %v1243
    %v1340 = vpack.c.b16 %v1333, %v1332
    %v1341 = vpack.c.b16 %v1335, %v1334
    %v1342 = vpack.c.b16 %v1337, %v1336
    %v1343 = vpack.c.b16 %v1339, %v1338
    %vm1348 = vcmask 523264
    %v1350 = vsel %vm1348, %v1323, 0
    %1352 = vmatprep.subr.bf16.mxu0 0
    %1353 = vmatpush1.bf16.msra.mxu0 0
    %1354 = vmatprep.subr.bf16.mxu0 0
    %1355 = vmatpush1.bf16.msra.mxu0 0
    %1356 = vmatprep.subr.bf16.mxu0 0
    %1357 = vmatpush1.bf16.msra.mxu0 0
    %1358 = vmatprep.subr.bf16.mxu0 0
    %1359 = vmatpush1.bf16.msra.mxu0 0
    %1360 = vmatprep.subr.bf16.mxu0 0
    %1361 = vmatpush1.bf16.msra.mxu0 %v1343
    %1362 = vmatprep.subr.bf16.mxu0 0
    %1363 = vmatpush1.bf16.msra.mxu0 %v1342
    %1364 = vmatprep.subr.bf16.mxu0 0
    %1365 = vmatpush1.bf16.msra.mxu0 %v1341
    %1366 = vmatprep.subr.bf16.mxu0 0
    %1367 = vmatpush1.bf16.msra.mxu0 %v1340
    %1368 = vmatprep.subr.bf16.mxu0 0
    %1369 = vmatpush2.bf16.msra.mxu0 0
    %1370 = vmatprep.subr.bf16.mxu0 0
    %1371 = vmatpush2.bf16.msra.mxu0 0
    %1372 = vmatprep.subr.bf16.mxu0 0
    %1373 = vmatpush2.bf16.msra.mxu0 0
    %1374 = vmatprep.subr.bf16.mxu0 0
    %1375 = vmatpush2.bf16.msra.mxu0 0
    %1376 = vmatprep.subr.bf16.mxu0 0
    %1377 = vmatpush2.bf16.msra.mxu0 0
    %1378 = vmatprep.subr.bf16.mxu0 0
    %1379 = vmatpush2.bf16.msra.mxu0 0
    %1380 = vmatprep.subr.bf16.mxu0 0
    %1381 = vmatpush2.bf16.msra.mxu0 0
    %1382 = vmatprep.subr.bf16.mxu0 0
    %1383 = vmatpush2.bf16.msra.mxu0 0
    %1384 = vmatprep.mubr.bf16.mxu0 0
    %1385 = vmatmul.mubr.bf16.gmra.mxu0 %v1350
    %v1386 = vpop.f32.mrf.mxu0
    %v1387 = vadd.f32 0.0, %v1386
    %v1388 = vpop.f32.mrf.mxu0
    %v1389 = vpop.f32.mrf.mxu0
    %v1390 = vpop.f32.mrf.mxu0
    %1391 = vdwg.mxu0
    %v1392 = vadd.f32 %v1314, %v1387
    %v1393 = vmul.f32 %v1392, 0.5
    %v1394 = vtanh.pop %v1393
    %v1395 = vmul.f32 %v1394, 0.5
    %v1396 = vadd.f32 %v1395, 0.5
    %1398 = vrot.lane.b32.xlu0 %v1230, 64
    %v1399 = vpop.permute.xlu0 %1398
    %v1401 = vadd.f32 %v1387, %v1399
    %1403 = vrot.lane.b32.xlu0 %v1401, 64
    %v1404 = vpop.permute.xlu0 %1403
    %v1406 = vmul.f32 %v1396, %v1404
    %1408 = vrot.lane.b32.xlu0 %v1406, 64
    %v1409 = vpop.permute.xlu0 %1408
    %v1411 = vadd.f32 %v1314, %v1409
    %v1412 = vtanh.pop %v1411
    %v1413 = vsub.f32 1.0, %v1396
    %1415 = vrot.lane.b32.xlu0 %v1412, 96
    %v1416 = vpop.permute.xlu0 %1415
    %v1418 = vmul.f32 %v1413, %v1416
    %v1419 = vmul.f32 %v1396, 0.0
    %v1420 = vadd.f32 %v1418, %v1419
    %1421 = vrot.lane.b32.xlu0 %v1245, 123
    %v1422 = vpop.permute.xlu0 %1421
    %v1423 = vsel %vm713, %v1209, %v1422
    %1424 = vset.pattern.permute.xlu0 1
    %1425 = vperm.xlu0 %1424, %v1423
    %v1426 = vpop.permute.xlu0 %1425
    %vm1427 = vcmp.eq.s32.totalorder %v1213, %v1426
    %v1428 = vsel %vm1427, 1, 0
    %v1429 = vcvt.s32.f32 %v1428
    %v1430 = vpack.c.bf16 %v1429, %v1429
    %v1432 = vsel %vm1271, %v1430, 0
    %1434 = vmatprep.subr.bf16.mxu0 0
    %1435 = vmatpush1.bf16.msra.mxu0 0
    %1436 = vmatprep.subr.bf16.mxu0 0
    %1437 = vmatpush1.bf16.msra.mxu0 0
    %1438 = vmatprep.subr.bf16.mxu0 0
    %1439 = vmatpush1.bf16.msra.mxu0 0
    %1440 = vmatprep.subr.bf16.mxu0 0
    %1441 = vmatpush1.bf16.msra.mxu0 0
    %1442 = vmatprep.subr.bf16.mxu0 0
    %1443 = vmatpush1.bf16.msra.mxu0 0
    %1444 = vmatprep.subr.bf16.mxu0 0
    %1445 = vmatpush1.bf16.msra.mxu0 %v1277
    %1446 = vmatprep.subr.bf16.mxu0 0
    %1447 = vmatpush1.bf16.msra.mxu0 %v1267
    %1448 = vmatprep.subr.bf16.mxu0 0
    %1449 = vmatpush1.bf16.msra.mxu0 %v1266
    %1450 = vmatprep.subr.bf16.mxu0 0
    %1451 = vmatpush2.bf16.msra.mxu0 0
    %1452 = vmatprep.subr.bf16.mxu0 0
    %1453 = vmatpush2.bf16.msra.mxu0 0
    %1454 = vmatprep.subr.bf16.mxu0 0
    %1455 = vmatpush2.bf16.msra.mxu0 0
    %1456 = vmatprep.subr.bf16.mxu0 0
    %1457 = vmatpush2.bf16.msra.mxu0 0
    %1458 = vmatprep.subr.bf16.mxu0 0
    %1459 = vmatpush2.bf16.msra.mxu0 0
    %1460 = vmatprep.subr.bf16.mxu0 0
    %1461 = vmatpush2.bf16.msra.mxu0 0
    %1462 = vmatprep.subr.bf16.mxu0 0
    %1463 = vmatpush2.bf16.msra.mxu0 0
    %1464 = vmatprep.subr.bf16.mxu0 0
    %1465 = vmatpush2.bf16.msra.mxu0 0
    %1466 = vmatprep.mubr.bf16.mxu0 0
    %1467 = vmatmul.mubr.bf16.gmra.mxu0 %v1432
    %v1468 = vpop.f32.mrf.mxu0
    %v1469 = vadd.f32 0.0, %v1468
    %v1470 = vpop.f32.mrf.mxu0
    %v1471 = vpop.f32.mrf.mxu0
    %v1472 = vpop.f32.mrf.mxu0
    %1473 = vdwg.mxu0
    %v1474 = vmul.f32 %v1420, %v1216
    %v1475 = vmul.f32 %v1420, %v1217
    %1477 = vrot.lane.b32.xlu0 %v1474, 96
    %v1478 = vpop.permute.xlu0 %1477
    %v1480 = vsel %vm1321, %v1478, %v1475
    %v1481 = vpack.c.bf16 %v1480, %v1480
    %v1483 = vsel %vm1348, %v1481, 0
    %1485 = vmatprep.subr.bf16.mxu0 0
    %1486 = vmatpush1.bf16.msra.mxu0 0
    %1487 = vmatprep.subr.bf16.mxu0 0
    %1488 = vmatpush1.bf16.msra.mxu0 0
    %1489 = vmatprep.subr.bf16.mxu0 0
    %1490 = vmatpush1.bf16.msra.mxu0 0
    %1491 = vmatprep.subr.bf16.mxu0 0
    %1492 = vmatpush1.bf16.msra.mxu0 0
    %1493 = vmatprep.subr.bf16.mxu0 0
    %1494 = vmatpush1.bf16.msra.mxu0 %v1343
    %1495 = vmatprep.subr.bf16.mxu0 0
    %1496 = vmatpush1.bf16.msra.mxu0 %v1342
    %1497 = vmatprep.subr.bf16.mxu0 0
    %1498 = vmatpush1.bf16.msra.mxu0 %v1341
    %1499 = vmatprep.subr.bf16.mxu0 0
    %1500 = vmatpush1.bf16.msra.mxu0 %v1340
    %1501 = vmatprep.subr.bf16.mxu0 0
    %1502 = vmatpush2.bf16.msra.mxu0 0
    %1503 = vmatprep.subr.bf16.mxu0 0
    %1504 = vmatpush2.bf16.msra.mxu0 0
    %1505 = vmatprep.subr.bf16.mxu0 0
    %1506 = vmatpush2.bf16.msra.mxu0 0
    %1507 = vmatprep.subr.bf16.mxu0 0
    %1508 = vmatpush2.bf16.msra.mxu0 0
    %1509 = vmatprep.subr.bf16.mxu0 0
    %1510 = vmatpush2.bf16.msra.mxu0 0
    %1511 = vmatprep.subr.bf16.mxu0 0
    %1512 = vmatpush2.bf16.msra.mxu0 0
    %1513 = vmatprep.subr.bf16.mxu0 0
    %1514 = vmatpush2.bf16.msra.mxu0 0
    %1515 = vmatprep.subr.bf16.mxu0 0
    %1516 = vmatpush2.bf16.msra.mxu0 0
    %1517 = vmatprep.mubr.bf16.mxu0 0
    %1518 = vmatmul.mubr.bf16.gmra.mxu0 %v1483
    %v1519 = vpop.f32.mrf.mxu0
    %v1520 = vadd.f32 0.0, %v1519
    %v1521 = vpop.f32.mrf.mxu0
    %v1522 = vpop.f32.mrf.mxu0
    %v1523 = vpop.f32.mrf.mxu0
    %1524 = vdwg.mxu0
    %v1525 = vadd.f32 %v1469, %v1520
    %v1526 = vmul.f32 %v1525, 0.5
    %v1527 = vtanh.pop %v1526
    %v1528 = vmul.f32 %v1527, 0.5
    %v1529 = vadd.f32 %v1528, 0.5
    %v1530 = vadd.f32 %v1520, %v1399
    %1532 = vrot.lane.b32.xlu0 %v1530, 64
    %v1533 = vpop.permute.xlu0 %1532
    %v1535 = vmul.f32 %v1529, %v1533
    %1537 = vrot.lane.b32.xlu0 %v1535, 64
    %v1538 = vpop.permute.xlu0 %1537
    %v1540 = vadd.f32 %v1469, %v1538
    %v1541 = vtanh.pop %v1540
    %v1542 = vsub.f32 1.0, %v1529
    %1544 = vrot.lane.b32.xlu0 %v1541, 96
    %v1545 = vpop.permute.xlu0 %1544
    %v1547 = vmul.f32 %v1542, %v1545
    %v1548 = vmul.f32 %v1529, %v1420
    %v1549 = vadd.f32 %v1547, %v1548
    %1550 = vrot.lane.b32.xlu0 %v1245, 125
    %v1551 = vpop.permute.xlu0 %1550
    %v1552 = vsel %vm713, %v1209, %v1551
    %1553 = vset.pattern.permute.xlu0 2
    %1554 = vperm.xlu0 %1553, %v1552
    %v1555 = vpop.permute.xlu0 %1554
    %vm1556 = vcmp.eq.s32.totalorder %v1213, %v1555
    %v1557 = vsel %vm1556, 1, 0
    %v1558 = vcvt.s32.f32 %v1557
    %v1559 = vpack.c.bf16 %v1558, %v1558
    %v1561 = vsel %vm1271, %v1559, 0
    %1563 = vmatprep.subr.bf16.mxu0 0
    %1564 = vmatpush1.bf16.msra.mxu0 0
    %1565 = vmatprep.subr.bf16.mxu0 0
    %1566 = vmatpush1.bf16.msra.mxu0 0
    %1567 = vmatprep.subr.bf16.mxu0 0
    %1568 = vmatpush1.bf16.msra.mxu0 0
    %1569 = vmatprep.subr.bf16.mxu0 0
    %1570 = vmatpush1.bf16.msra.mxu0 0
    %1571 = vmatprep.subr.bf16.mxu0 0
    %1572 = vmatpush1.bf16.msra.mxu0 0
    %1573 = vmatprep.subr.bf16.mxu0 0
    %1574 = vmatpush1.bf16.msra.mxu0 %v1277
    %1575 = vmatprep.subr.bf16.mxu0 0
    %1576 = vmatpush1.bf16.msra.mxu0 %v1267
    %1577 = vmatprep.subr.bf16.mxu0 0
    %1578 = vmatpush1.bf16.msra.mxu0 %v1266
    %1579 = vmatprep.subr.bf16.mxu0 0
    %1580 = vmatpush2.bf16.msra.mxu0 0
    %1581 = vmatprep.subr.bf16.mxu0 0
    %1582 = vmatpush2.bf16.msra.mxu0 0
    %1583 = vmatprep.subr.bf16.mxu0 0
    %1584 = vmatpush2.bf16.msra.mxu0 0
    %1585 = vmatprep.subr.bf16.mxu0 0
    %1586 = vmatpush2.bf16.msra.mxu0 0
    %1587 = vmatprep.subr.bf16.mxu0 0
    %1588 = vmatpush2.bf16.msra.mxu0 0
    %1589 = vmatprep.subr.bf16.mxu0 0
    %1590 = vmatpush2.bf16.msra.mxu0 0
    %1591 = vmatprep.subr.bf16.mxu0 0
    %1592 = vmatpush2.bf16.msra.mxu0 0
    %1593 = vmatprep.subr.bf16.mxu0 0
    %1594 = vmatpush2.bf16.msra.mxu0 0
    %1595 = vmatprep.mubr.bf16.mxu0 0
    %1596 = vmatmul.mubr.bf16.gmra.mxu0 %v1561
    %v1597 = vpop.f32.mrf.mxu0
    %v1598 = vadd.f32 0.0, %v1597
    %v1599 = vpop.f32.mrf.mxu0
    %v1600 = vpop.f32.mrf.mxu0
    %v1601 = vpop.f32.mrf.mxu0
    %1602 = vdwg.mxu0
    %v1603 = vmul.f32 %v1549, %v1216
    %v1604 = vmul.f32 %v1549, %v1217
    %1606 = vrot.lane.b32.xlu0 %v1603, 96
    %v1607 = vpop.permute.xlu0 %1606
    %v1609 = vsel %vm1321, %v1607, %v1604
    %v1610 = vpack.c.bf16 %v1609, %v1609
    %v1612 = vsel %vm1348, %v1610, 0
    %1614 = vmatprep.subr.bf16.mxu0 0
    %1615 = vmatpush1.bf16.msra.mxu0 0
    %1616 = vmatprep.subr.bf16.mxu0 0
    %1617 = vmatpush1.bf16.msra.mxu0 0
    %1618 = vmatprep.subr.bf16.mxu0 0
    %1619 = vmatpush1.bf16.msra.mxu0 0
    %1620 = vmatprep.subr.bf16.mxu0 0
    %1621 = vmatpush1.bf16.msra.mxu0 0
    %1622 = vmatprep.subr.bf16.mxu0 0
    %1623 = vmatpush1.bf16.msra.mxu0 %v1343
    %1624 = vmatprep.subr.bf16.mxu0 0
    %1625 = vmatpush1.bf16.msra.mxu0 %v1342
    %1626 = vmatprep.subr.bf16.mxu0 0
    %1627 = vmatpush1.bf16.msra.mxu0 %v1341
    %1628 = vmatprep.subr.bf16.mxu0 0
    %1629 = vmatpush1.bf16.msra.mxu0 %v1340
    %1630 = vmatprep.subr.bf16.mxu0 0
    %1631 = vmatpush2.bf16.msra.mxu0 0
    %1632 = vmatprep.subr.bf16.mxu0 0
    %1633 = vmatpush2.bf16.msra.mxu0 0
    %1634 = vmatprep.subr.bf16.mxu0 0
    %1635 = vmatpush2.bf16.msra.mxu0 0
    %1636 = vmatprep.subr.bf16.mxu0 0
    %1637 = vmatpush2.bf16.msra.mxu0 0
    %1638 = vmatprep.subr.bf16.mxu0 0
    %1639 = vmatpush2.bf16.msra.mxu0 0
    %1640 = vmatprep.subr.bf16.mxu0 0
    %1641 = vmatpush2.bf16.msra.mxu0 0
    %1642 = vmatprep.subr.bf16.mxu0 0
    %1643 = vmatpush2.bf16.msra.mxu0 0
    %1644 = vmatprep.subr.bf16.mxu0 0
    %1645 = vmatpush2.bf16.msra.mxu0 0
    %1646 = vmatprep.mubr.bf16.mxu0 0
    %1647 = vmatmul.mubr.bf16.gmra.mxu0 %v1612
    %v1648 = vpop.f32.mrf.mxu0
    %v1649 = vadd.f32 0.0, %v1648
    %v1650 = vpop.f32.mrf.mxu0
    %v1651 = vpop.f32.mrf.mxu0
    %v1652 = vpop.f32.mrf.mxu0
    %1653 = vdwg.mxu0
    %v1654 = vadd.f32 %v1598, %v1649
    %v1655 = vmul.f32 %v1654, 0.5
    %v1656 = vtanh.pop %v1655
    %v1657 = vmul.f32 %v1656, 0.5
    %v1658 = vadd.f32 %v1657, 0.5
    %v1659 = vadd.f32 %v1649, %v1399
    %1661 = vrot.lane.b32.xlu0 %v1659, 64
    %v1662 = vpop.permute.xlu0 %1661
    %v1664 = vmul.f32 %v1658, %v1662
    %1666 = vrot.lane.b32.xlu0 %v1664, 64
    %v1667 = vpop.permute.xlu0 %1666
    %v1669 = vadd.f32 %v1598, %v1667
    %v1670 = vtanh.pop %v1669
    %v1671 = vsub.f32 1.0, %v1658
    %1673 = vrot.lane.b32.xlu0 %v1670, 96
    %v1674 = vpop.permute.xlu0 %1673
    %v1676 = vmul.f32 %v1671, %v1674
    %v1677 = vmul.f32 %v1658, %v1549
    %v1678 = vadd.f32 %v1676, %v1677
    %1679 = vrot.lane.b32.xlu0 %v1245, 127
    %v1680 = vpop.permute.xlu0 %1679
    %v1681 = vsel %vm713, %v1209, %v1680
    %1682 = vset.pattern.permute.xlu0 3
    %1683 = vperm.xlu0 %1682, %v1681
    %v1684 = vpop.permute.xlu0 %1683
    %vm1685 = vcmp.eq.s32.totalorder %v1213, %v1684
    %v1686 = vsel %vm1685, 1, 0
    %v1687 = vcvt.s32.f32 %v1686
    %v1688 = vpack.c.bf16 %v1687, %v1687
    %v1690 = vsel %vm1271, %v1688, 0
    %1692 = vmatprep.subr.bf16.mxu0 0
    %1693 = vmatpush1.bf16.msra.mxu0 0
    %1694 = vmatprep.subr.bf16.mxu0 0
    %1695 = vmatpush1.bf16.msra.mxu0 0
    %1696 = vmatprep.subr.bf16.mxu0 0
    %1697 = vmatpush1.bf16.msra.mxu0 0
    %1698 = vmatprep.subr.bf16.mxu0 0
    %1699 = vmatpush1.bf16.msra.mxu0 0
    %1700 = vmatprep.subr.bf16.mxu0 0
    %1701 = vmatpush1.bf16.msra.mxu0 0
    %1702 = vmatprep.subr.bf16.mxu0 0
    %1703 = vmatpush1.bf16.msra.mxu0 %v1277
    %1704 = vmatprep.subr.bf16.mxu0 0
    %1705 = vmatpush1.bf16.msra.mxu0 %v1267
    %1706 = vmatprep.subr.bf16.mxu0 0
    %1707 = vmatpush1.bf16.msra.mxu0 %v1266
    %1708 = vmatprep.subr.bf16.mxu0 0
    %1709 = vmatpush2.bf16.msra.mxu0 0
    %1710 = vmatprep.subr.bf16.mxu0 0
    %1711 = vmatpush2.bf16.msra.mxu0 0
    %1712 = vmatprep.subr.bf16.mxu0 0
    %1713 = vmatpush2.bf16.msra.mxu0 0
    %1714 = vmatprep.subr.bf16.mxu0 0
    %1715 = vmatpush2.bf16.msra.mxu0 0
    %1716 = vmatprep.subr.bf16.mxu0 0
    %1717 = vmatpush2.bf16.msra.mxu0 0
    %1718 = vmatprep.subr.bf16.mxu0 0
    %1719 = vmatpush2.bf16.msra.mxu0 0
    %1720 = vmatprep.subr.bf16.mxu0 0
    %1721 = vmatpush2.bf16.msra.mxu0 0
    %1722 = vmatprep.subr.bf16.mxu0 0
    %1723 = vmatpush2.bf16.msra.mxu0 0
    %1724 = vmatprep.mubr.bf16.mxu0 0
    %1725 = vmatmul.mubr.bf16.gmra.mxu0 %v1690
    %v1726 = vpop.f32.mrf.mxu0
    %v1727 = vadd.f32 0.0, %v1726
    %v1728 = vpop.f32.mrf.mxu0
    %v1729 = vpop.f32.mrf.mxu0
    %v1730 = vpop.f32.mrf.mxu0
    %1731 = vdwg.mxu0
    %v1732 = vmul.f32 %v1678, %v1216
    %v1733 = vmul.f32 %v1678, %v1217
    %1735 = vrot.lane.b32.xlu0 %v1732, 96
    %v1736 = vpop.permute.xlu0 %1735
    %v1738 = vsel %vm1321, %v1736, %v1733
    %v1739 = vpack.c.bf16 %v1738, %v1738
    %v1741 = vsel %vm1348, %v1739, 0
    %1743 = vmatprep.subr.bf16.mxu0 0
    %1744 = vmatpush1.bf16.msra.mxu0 0
    %1745 = vmatprep.subr.bf16.mxu0 0
    %1746 = vmatpush1.bf16.msra.mxu0 0
    %1747 = vmatprep.subr.bf16.mxu0 0
    %1748 = vmatpush1.bf16.msra.mxu0 0
    %1749 = vmatprep.subr.bf16.mxu0 0
    %1750 = vmatpush1.bf16.msra.mxu0 0
    %1751 = vmatprep.subr.bf16.mxu0 0
    %1752 = vmatpush1.bf16.msra.mxu0 %v1343
    %1753 = vmatprep.subr.bf16.mxu0 0
    %1754 = vmatpush1.bf16.msra.mxu0 %v1342
    %1755 = vmatprep.subr.bf16.mxu0 0
    %1756 = vmatpush1.bf16.msra.mxu0 %v1341
    %1757 = vmatprep.subr.bf16.mxu0 0
    %1758 = vmatpush1.bf16.msra.mxu0 %v1340
    %1759 = vmatprep.subr.bf16.mxu0 0
    %1760 = vmatpush2.bf16.msra.mxu0 0
    %1761 = vmatprep.subr.bf16.mxu0 0
    %1762 = vmatpush2.bf16.msra.mxu0 0
    %1763 = vmatprep.subr.bf16.mxu0 0
    %1764 = vmatpush2.bf16.msra.mxu0 0
    %1765 = vmatprep.subr.bf16.mxu0 0
    %1766 = vmatpush2.bf16.msra.mxu0 0
    %1767 = vmatprep.subr.bf16.mxu0 0
    %1768 = vmatpush2.bf16.msra.mxu0 0
    %1769 = vmatprep.subr.bf16.mxu0 0
    %1770 = vmatpush2.bf16.msra.mxu0 0
    %1771 = vmatprep.subr.bf16.mxu0 0
    %1772 = vmatpush2.bf16.msra.mxu0 0
    %1773 = vmatprep.subr.bf16.mxu0 0
    %1774 = vmatpush2.bf16.msra.mxu0 0
    %1775 = vmatprep.mubr.bf16.mxu0 0
    %1776 = vmatmul.mubr.bf16.gmra.mxu0 %v1741
    %v1777 = vpop.f32.mrf.mxu0
    %v1778 = vadd.f32 0.0, %v1777
    %v1779 = vpop.f32.mrf.mxu0
    %v1780 = vpop.f32.mrf.mxu0
    %v1781 = vpop.f32.mrf.mxu0
    %1782 = vdwg.mxu0
    %v1783 = vadd.f32 %v1727, %v1778
    %v1784 = vmul.f32 %v1783, 0.5
    %v1785 = vtanh.pop %v1784
    %v1786 = vmul.f32 %v1785, 0.5
    %v1787 = vadd.f32 %v1786, 0.5
    %v1788 = vadd.f32 %v1778, %v1399
    %1790 = vrot.lane.b32.xlu0 %v1788, 64
    %v1791 = vpop.permute.xlu0 %1790
    %v1793 = vmul.f32 %v1787, %v1791
    %1795 = vrot.lane.b32.xlu0 %v1793, 64
    %v1796 = vpop.permute.xlu0 %1795
    %v1798 = vadd.f32 %v1727, %v1796
    %v1799 = vtanh.pop %v1798
    %v1800 = vsub.f32 1.0, %v1787
    %1802 = vrot.lane.b32.xlu0 %v1799, 96
    %v1803 = vpop.permute.xlu0 %1802
    %v1805 = vmul.f32 %v1800, %v1803
    %v1806 = vmul.f32 %v1787, %v1678
    %v1807 = vadd.f32 %v1805, %v1806
    %1808 = vrot.lane.b32.xlu0 %v1245, 1
    %v1809 = vpop.permute.xlu0 %1808
    %v1810 = vsel %vm713, %v1209, %v1809
    %1811 = vset.pattern.permute.xlu0 4
    %1812 = vperm.xlu0 %1811, %v1810
    %v1813 = vpop.permute.xlu0 %1812
    %vm1814 = vcmp.eq.s32.totalorder %v1213, %v1813
    %v1815 = vsel %vm1814, 1, 0
    %v1816 = vcvt.s32.f32 %v1815
    %v1817 = vpack.c.bf16 %v1816, %v1816
    %v1819 = vsel %vm1271, %v1817, 0
    %1821 = vmatprep.subr.bf16.mxu0 0
    %1822 = vmatpush1.bf16.msra.mxu0 0
    %1823 = vmatprep.subr.bf16.mxu0 0
    %1824 = vmatpush1.bf16.msra.mxu0 0
    %1825 = vmatprep.subr.bf16.mxu0 0
    %1826 = vmatpush1.bf16.msra.mxu0 0
    %1827 = vmatprep.subr.bf16.mxu0 0
    %1828 = vmatpush1.bf16.msra.mxu0 0
    %1829 = vmatprep.subr.bf16.mxu0 0
    %1830 = vmatpush1.bf16.msra.mxu0 0
    %1831 = vmatprep.subr.bf16.mxu0 0
    %1832 = vmatpush1.bf16.msra.mxu0 %v1277
    %1833 = vmatprep.subr.bf16.mxu0 0
    %1834 = vmatpush1.bf16.msra.mxu0 %v1267
    %1835 = vmatprep.subr.bf16.mxu0 0
    %1836 = vmatpush1.bf16.msra.mxu0 %v1266
    %1837 = vmatprep.subr.bf16.mxu0 0
    %1838 = vmatpush2.bf16.msra.mxu0 0
    %1839 = vmatprep.subr.bf16.mxu0 0
    %1840 = vmatpush2.bf16.msra.mxu0 0
    %1841 = vmatprep.subr.bf16.mxu0 0
    %1842 = vmatpush2.bf16.msra.mxu0 0
    %1843 = vmatprep.subr.bf16.mxu0 0
    %1844 = vmatpush2.bf16.msra.mxu0 0
    %1845 = vmatprep.subr.bf16.mxu0 0
    %1846 = vmatpush2.bf16.msra.mxu0 0
    %1847 = vmatprep.subr.bf16.mxu0 0
    %1848 = vmatpush2.bf16.msra.mxu0 0
    %1849 = vmatprep.subr.bf16.mxu0 0
    %1850 = vmatpush2.bf16.msra.mxu0 0
    %1851 = vmatprep.subr.bf16.mxu0 0
    %1852 = vmatpush2.bf16.msra.mxu0 0
    %1853 = vmatprep.mubr.bf16.mxu0 0
    %1854 = vmatmul.mubr.bf16.gmra.mxu0 %v1819
    %v1855 = vpop.f32.mrf.mxu0
    %v1856 = vadd.f32 0.0, %v1855
    %v1857 = vpop.f32.mrf.mxu0
    %v1858 = vpop.f32.mrf.mxu0
    %v1859 = vpop.f32.mrf.mxu0
    %1860 = vdwg.mxu0
    %v1861 = vmul.f32 %v1807, %v1216
    %v1862 = vmul.f32 %v1807, %v1217
    %1864 = vrot.lane.b32.xlu0 %v1861, 96
    %v1865 = vpop.permute.xlu0 %1864
    %v1867 = vsel %vm1321, %v1865, %v1862
    %v1868 = vpack.c.bf16 %v1867, %v1867
    %v1870 = vsel %vm1348, %v1868, 0
    %1872 = vmatprep.subr.bf16.mxu0 0
    %1873 = vmatpush1.bf16.msra.mxu0 0
    %1874 = vmatprep.subr.bf16.mxu0 0
    %1875 = vmatpush1.bf16.msra.mxu0 0
    %1876 = vmatprep.subr.bf16.mxu0 0
    %1877 = vmatpush1.bf16.msra.mxu0 0
    %1878 = vmatprep.subr.bf16.mxu0 0
    %1879 = vmatpush1.bf16.msra.mxu0 0
    %1880 = vmatprep.subr.bf16.mxu0 0
    %1881 = vmatpush1.bf16.msra.mxu0 %v1343
    %1882 = vmatprep.subr.bf16.mxu0 0
    %1883 = vmatpush1.bf16.msra.mxu0 %v1342
    %1884 = vmatprep.subr.bf16.mxu0 0
    %1885 = vmatpush1.bf16.msra.mxu0 %v1341
    %1886 = vmatprep.subr.bf16.mxu0 0
    %1887 = vmatpush1.bf16.msra.mxu0 %v1340
    %1888 = vmatprep.subr.bf16.mxu0 0
    %1889 = vmatpush2.bf16.msra.mxu0 0
    %1890 = vmatprep.subr.bf16.mxu0 0
    %1891 = vmatpush2.bf16.msra.mxu0 0
    %1892 = vmatprep.subr.bf16.mxu0 0
    %1893 = vmatpush2.bf16.msra.mxu0 0
    %1894 = vmatprep.subr.bf16.mxu0 0
    %1895 = vmatpush2.bf16.msra.mxu0 0
    %1896 = vmatprep.subr.bf16.mxu0 0
    %1897 = vmatpush2.bf16.msra.mxu0 0
    %1898 = vmatprep.subr.bf16.mxu0 0
    %1899 = vmatpush2.bf16.msra.mxu0 0
    %1900 = vmatprep.subr.bf16.mxu0 0
    %1901 = vmatpush2.bf16.msra.mxu0 0
    %1902 = vmatprep.subr.bf16.mxu0 0
    %1903 = vmatpush2.bf16.msra.mxu0 0
    %1904 = vmatprep.mubr.bf16.mxu0 0
    %1905 = vmatmul.mubr.bf16.gmra.mxu0 %v1870
    %v1906 = vpop.f32.mrf.mxu0
    %v1907 = vadd.f32 0.0, %v1906
    %v1908 = vpop.f32.mrf.mxu0
    %v1909 = vpop.f32.mrf.mxu0
    %v1910 = vpop.f32.mrf.mxu0
    %1911 = vdwg.mxu0
    %v1912 = vadd.f32 %v1856, %v1907
    %v1913 = vmul.f32 %v1912, 0.5
    %v1914 = vtanh.pop %v1913
    %v1915 = vmul.f32 %v1914, 0.5
    %v1916 = vadd.f32 %v1915, 0.5
    %v1917 = vadd.f32 %v1907, %v1399
    %1919 = vrot.lane.b32.xlu0 %v1917, 64
    %v1920 = vpop.permute.xlu0 %1919
    %v1922 = vmul.f32 %v1916, %v1920
    %1924 = vrot.lane.b32.xlu0 %v1922, 64
    %v1925 = vpop.permute.xlu0 %1924
    %v1927 = vadd.f32 %v1856, %v1925
    %v1928 = vtanh.pop %v1927
    %v1929 = vsub.f32 1.0, %v1916
    %1931 = vrot.lane.b32.xlu0 %v1928, 96
    %v1932 = vpop.permute.xlu0 %1931
    %v1934 = vmul.f32 %v1929, %v1932
    %v1935 = vmul.f32 %v1916, %v1807
    %v1936 = vadd.f32 %v1934, %v1935
    %1937 = vrot.lane.b32.xlu0 %v1245, 3
    %v1938 = vpop.permute.xlu0 %1937
    %v1939 = vsel %vm713, %v1209, %v1938
    %1940 = vset.pattern.permute.xlu0 5
    %1941 = vperm.xlu0 %1940, %v1939
    %v1942 = vpop.permute.xlu0 %1941
    %vm1943 = vcmp.eq.s32.totalorder %v1213, %v1942
    %v1944 = vsel %vm1943, 1, 0
    %v1945 = vcvt.s32.f32 %v1944
    %v1946 = vpack.c.bf16 %v1945, %v1945
    %v1948 = vsel %vm1271, %v1946, 0
    %1950 = vmatprep.subr.bf16.mxu0 0
    %1951 = vmatpush1.bf16.msra.mxu0 0
    %1952 = vmatprep.subr.bf16.mxu0 0
    %1953 = vmatpush1.bf16.msra.mxu0 0
    %1954 = vmatprep.subr.bf16.mxu0 0
    %1955 = vmatpush1.bf16.msra.mxu0 0
    %1956 = vmatprep.subr.bf16.mxu0 0
    %1957 = vmatpush1.bf16.msra.mxu0 0
    %1958 = vmatprep.subr.bf16.mxu0 0
    %1959 = vmatpush1.bf16.msra.mxu0 0
    %1960 = vmatprep.subr.bf16.mxu0 0
    %1961 = vmatpush1.bf16.msra.mxu0 %v1277
    %1962 = vmatprep.subr.bf16.mxu0 0
    %1963 = vmatpush1.bf16.msra.mxu0 %v1267
    %1964 = vmatprep.subr.bf16.mxu0 0
    %1965 = vmatpush1.bf16.msra.mxu0 %v1266
    %1966 = vmatprep.subr.bf16.mxu0 0
    %1967 = vmatpush2.bf16.msra.mxu0 0
    %1968 = vmatprep.subr.bf16.mxu0 0
    %1969 = vmatpush2.bf16.msra.mxu0 0
    %1970 = vmatprep.subr.bf16.mxu0 0
    %1971 = vmatpush2.bf16.msra.mxu0 0
    %1972 = vmatprep.subr.bf16.mxu0 0
    %1973 = vmatpush2.bf16.msra.mxu0 0
    %1974 = vmatprep.subr.bf16.mxu0 0
    %1975 = vmatpush2.bf16.msra.mxu0 0
    %1976 = vmatprep.subr.bf16.mxu0 0
    %1977 = vmatpush2.bf16.msra.mxu0 0
    %1978 = vmatprep.subr.bf16.mxu0 0
    %1979 = vmatpush2.bf16.msra.mxu0 0
    %1980 = vmatprep.subr.bf16.mxu0 0
    %1981 = vmatpush2.bf16.msra.mxu0 0
    %1982 = vmatprep.mubr.bf16.mxu0 0
    %1983 = vmatmul.mubr.bf16.gmra.mxu0 %v1948
    %v1984 = vpop.f32.mrf.mxu0
    %v1985 = vadd.f32 0.0, %v1984
    %v1986 = vpop.f32.mrf.mxu0
    %v1987 = vpop.f32.mrf.mxu0
    %v1988 = vpop.f32.mrf.mxu0
    %1989 = vdwg.mxu0
    %v1990 = vmul.f32 %v1936, %v1216
    %v1991 = vmul.f32 %v1936, %v1217
    %1993 = vrot.lane.b32.xlu0 %v1990, 96
    %v1994 = vpop.permute.xlu0 %1993
    %v1996 = vsel %vm1321, %v1994, %v1991
    %v1997 = vpack.c.bf16 %v1996, %v1996
    %v1999 = vsel %vm1348, %v1997, 0
    %2001 = vmatprep.subr.bf16.mxu0 0
    %2002 = vmatpush1.bf16.msra.mxu0 0
    %2003 = vmatprep.subr.bf16.mxu0 0
    %2004 = vmatpush1.bf16.msra.mxu0 0
    %2005 = vmatprep.subr.bf16.mxu0 0
    %2006 = vmatpush1.bf16.msra.mxu0 0
    %2007 = vmatprep.subr.bf16.mxu0 0
    %2008 = vmatpush1.bf16.msra.mxu0 0
    %2009 = vmatprep.subr.bf16.mxu0 0
    %2010 = vmatpush1.bf16.msra.mxu0 %v1343
    %2011 = vmatprep.subr.bf16.mxu0 0
    %2012 = vmatpush1.bf16.msra.mxu0 %v1342
    %2013 = vmatprep.subr.bf16.mxu0 0
    %2014 = vmatpush1.bf16.msra.mxu0 %v1341
    %2015 = vmatprep.subr.bf16.mxu0 0
    %2016 = vmatpush1.bf16.msra.mxu0 %v1340
    %2017 = vmatprep.subr.bf16.mxu0 0
    %2018 = vmatpush2.bf16.msra.mxu0 0
    %2019 = vmatprep.subr.bf16.mxu0 0
    %2020 = vmatpush2.bf16.msra.mxu0 0
    %2021 = vmatprep.subr.bf16.mxu0 0
    %2022 = vmatpush2.bf16.msra.mxu0 0
    %2023 = vmatprep.subr.bf16.mxu0 0
    %2024 = vmatpush2.bf16.msra.mxu0 0
    %2025 = vmatprep.subr.bf16.mxu0 0
    %2026 = vmatpush2.bf16.msra.mxu0 0
    %2027 = vmatprep.subr.bf16.mxu0 0
    %2028 = vmatpush2.bf16.msra.mxu0 0
    %2029 = vmatprep.subr.bf16.mxu0 0
    %2030 = vmatpush2.bf16.msra.mxu0 0
    %2031 = vmatprep.subr.bf16.mxu0 0
    %2032 = vmatpush2.bf16.msra.mxu0 0
    %2033 = vmatprep.mubr.bf16.mxu0 0
    %2034 = vmatmul.mubr.bf16.gmra.mxu0 %v1999
    %v2035 = vpop.f32.mrf.mxu0
    %v2036 = vadd.f32 0.0, %v2035
    %v2037 = vpop.f32.mrf.mxu0
    %v2038 = vpop.f32.mrf.mxu0
    %v2039 = vpop.f32.mrf.mxu0
    %2040 = vdwg.mxu0
    %v2041 = vadd.f32 %v1985, %v2036
    %v2042 = vmul.f32 %v2041, 0.5
    %v2043 = vtanh.pop %v2042
    %v2044 = vmul.f32 %v2043, 0.5
    %v2045 = vadd.f32 %v2044, 0.5
    %v2046 = vadd.f32 %v2036, %v1399
    %2048 = vrot.lane.b32.xlu0 %v2046, 64
    %v2049 = vpop.permute.xlu0 %2048
    %v2051 = vmul.f32 %v2045, %v2049
    %2053 = vrot.lane.b32.xlu0 %v2051, 64
    %v2054 = vpop.permute.xlu0 %2053
    %v2056 = vadd.f32 %v1985, %v2054
    %v2057 = vtanh.pop %v2056
    %v2058 = vsub.f32 1.0, %v2045
    %2060 = vrot.lane.b32.xlu0 %v2057, 96
    %v2061 = vpop.permute.xlu0 %2060
    %v2063 = vmul.f32 %v2058, %v2061
    %v2064 = vmul.f32 %v2045, %v1936
    %v2065 = vadd.f32 %v2063, %v2064
    %2066 = vrot.lane.b32.xlu0 %v1245, 5
    %v2067 = vpop.permute.xlu0 %2066
    %v2068 = vsel %vm713, %v1209, %v2067
    %2069 = vset.pattern.permute.xlu0 6
    %2070 = vperm.xlu0 %2069, %v2068
    %v2071 = vpop.permute.xlu0 %2070
    %vm2072 = vcmp.eq.s32.totalorder %v1213, %v2071
    %v2073 = vsel %vm2072, 1, 0
    %v2074 = vcvt.s32.f32 %v2073
    %v2075 = vpack.c.bf16 %v2074, %v2074
    %v2077 = vsel %vm1271, %v2075, 0
    %2079 = vmatprep.subr.bf16.mxu0 0
    %2080 = vmatpush1.bf16.msra.mxu0 0
    %2081 = vmatprep.subr.bf16.mxu0 0
    %2082 = vmatpush1.bf16.msra.mxu0 0
    %2083 = vmatprep.subr.bf16.mxu0 0
    %2084 = vmatpush1.bf16.msra.mxu0 0
    %2085 = vmatprep.subr.bf16.mxu0 0
    %2086 = vmatpush1.bf16.msra.mxu0 0
    %2087 = vmatprep.subr.bf16.mxu0 0
    %2088 = vmatpush1.bf16.msra.mxu0 0
    %2089 = vmatprep.subr.bf16.mxu0 0
    %2090 = vmatpush1.bf16.msra.mxu0 %v1277
    %2091 = vmatprep.subr.bf16.mxu0 0
    %2092 = vmatpush1.bf16.msra.mxu0 %v1267
    %2093 = vmatprep.subr.bf16.mxu0 0
    %2094 = vmatpush1.bf16.msra.mxu0 %v1266
    %2095 = vmatprep.subr.bf16.mxu0 0
    %2096 = vmatpush2.bf16.msra.mxu0 0
    %2097 = vmatprep.subr.bf16.mxu0 0
    %2098 = vmatpush2.bf16.msra.mxu0 0
    %2099 = vmatprep.subr.bf16.mxu0 0
    %2100 = vmatpush2.bf16.msra.mxu0 0
    %2101 = vmatprep.subr.bf16.mxu0 0
    %2102 = vmatpush2.bf16.msra.mxu0 0
    %2103 = vmatprep.subr.bf16.mxu0 0
    %2104 = vmatpush2.bf16.msra.mxu0 0
    %2105 = vmatprep.subr.bf16.mxu0 0
    %2106 = vmatpush2.bf16.msra.mxu0 0
    %2107 = vmatprep.subr.bf16.mxu0 0
    %2108 = vmatpush2.bf16.msra.mxu0 0
    %2109 = vmatprep.subr.bf16.mxu0 0
    %2110 = vmatpush2.bf16.msra.mxu0 0
    %2111 = vmatprep.mubr.bf16.mxu0 0
    %2112 = vmatmul.mubr.bf16.gmra.mxu0 %v2077
    %v2113 = vpop.f32.mrf.mxu0
    %v2114 = vadd.f32 0.0, %v2113
    %v2115 = vpop.f32.mrf.mxu0
    %v2116 = vpop.f32.mrf.mxu0
    %v2117 = vpop.f32.mrf.mxu0
    %2118 = vdwg.mxu0
    %v2119 = vmul.f32 %v2065, %v1216
    %v2120 = vmul.f32 %v2065, %v1217
    %2122 = vrot.lane.b32.xlu0 %v2119, 96
    %v2123 = vpop.permute.xlu0 %2122
    %v2125 = vsel %vm1321, %v2123, %v2120
    %v2126 = vpack.c.bf16 %v2125, %v2125
    %v2128 = vsel %vm1348, %v2126, 0
    %2130 = vmatprep.subr.bf16.mxu0 0
    %2131 = vmatpush1.bf16.msra.mxu0 0
    %2132 = vmatprep.subr.bf16.mxu0 0
    %2133 = vmatpush1.bf16.msra.mxu0 0
    %2134 = vmatprep.subr.bf16.mxu0 0
    %2135 = vmatpush1.bf16.msra.mxu0 0
    %2136 = vmatprep.subr.bf16.mxu0 0
    %2137 = vmatpush1.bf16.msra.mxu0 0
    %2138 = vmatprep.subr.bf16.mxu0 0
    %2139 = vmatpush1.bf16.msra.mxu0 %v1343
    %2140 = vmatprep.subr.bf16.mxu0 0
    %2141 = vmatpush1.bf16.msra.mxu0 %v1342
    %2142 = vmatprep.subr.bf16.mxu0 0
    %2143 = vmatpush1.bf16.msra.mxu0 %v1341
    %2144 = vmatprep.subr.bf16.mxu0 0
    %2145 = vmatpush1.bf16.msra.mxu0 %v1340
    %2146 = vmatprep.subr.bf16.mxu0 0
    %2147 = vmatpush2.bf16.msra.mxu0 0
    %2148 = vmatprep.subr.bf16.mxu0 0
    %2149 = vmatpush2.bf16.msra.mxu0 0
    %2150 = vmatprep.subr.bf16.mxu0 0
    %2151 = vmatpush2.bf16.msra.mxu0 0
    %2152 = vmatprep.subr.bf16.mxu0 0
    %2153 = vmatpush2.bf16.msra.mxu0 0
    %2154 = vmatprep.subr.bf16.mxu0 0
    %2155 = vmatpush2.bf16.msra.mxu0 0
    %2156 = vmatprep.subr.bf16.mxu0 0
    %2157 = vmatpush2.bf16.msra.mxu0 0
    %2158 = vmatprep.subr.bf16.mxu0 0
    %2159 = vmatpush2.bf16.msra.mxu0 0
    %2160 = vmatprep.subr.bf16.mxu0 0
    %2161 = vmatpush2.bf16.msra.mxu0 0
    %2162 = vmatprep.mubr.bf16.mxu0 0
    %2163 = vmatmul.mubr.bf16.gmra.mxu0 %v2128
    %v2164 = vpop.f32.mrf.mxu0
    %v2165 = vadd.f32 0.0, %v2164
    %v2166 = vpop.f32.mrf.mxu0
    %v2167 = vpop.f32.mrf.mxu0
    %v2168 = vpop.f32.mrf.mxu0
    %2169 = vdwg.mxu0
    %v2170 = vadd.f32 %v2114, %v2165
    %v2171 = vmul.f32 %v2170, 0.5
    %v2172 = vtanh.pop %v2171
    %v2173 = vmul.f32 %v2172, 0.5
    %v2174 = vadd.f32 %v2173, 0.5
    %v2175 = vadd.f32 %v2165, %v1399
    %2177 = vrot.lane.b32.xlu0 %v2175, 64
    %v2178 = vpop.permute.xlu0 %2177
    %v2180 = vmul.f32 %v2174, %v2178
    %2182 = vrot.lane.b32.xlu0 %v2180, 64
    %v2183 = vpop.permute.xlu0 %2182
    %v2185 = vadd.f32 %v2114, %v2183
    %v2186 = vtanh.pop %v2185
    %v2187 = vsub.f32 1.0, %v2174
    %2189 = vrot.lane.b32.xlu0 %v2186, 96
    %v2190 = vpop.permute.xlu0 %2189
    %v2192 = vmul.f32 %v2187, %v2190
    %v2193 = vmul.f32 %v2174, %v2065
    %v2194 = vadd.f32 %v2192, %v2193
    %2195 = vrot.lane.b32.xlu0 %v1245, 7
    %v2196 = vpop.permute.xlu0 %2195
    %v2197 = vsel %vm713, %v1209, %v2196
    %2198 = vset.pattern.permute.xlu0 7
    %2199 = vperm.xlu0 %2198, %v2197
    %v2200 = vpop.permute.xlu0 %2199
    %vm2201 = vcmp.eq.s32.totalorder %v1213, %v2200
    %v2202 = vsel %vm2201, 1, 0
    %v2203 = vcvt.s32.f32 %v2202
    %v2204 = vpack.c.bf16 %v2203, %v2203
    %v2206 = vsel %vm1271, %v2204, 0
    %2208 = vmatprep.subr.bf16.mxu0 0
    %2209 = vmatpush1.bf16.msra.mxu0 0
    %2210 = vmatprep.subr.bf16.mxu0 0
    %2211 = vmatpush1.bf16.msra.mxu0 0
    %2212 = vmatprep.subr.bf16.mxu0 0
    %2213 = vmatpush1.bf16.msra.mxu0 0
    %2214 = vmatprep.subr.bf16.mxu0 0
    %2215 = vmatpush1.bf16.msra.mxu0 0
    %2216 = vmatprep.subr.bf16.mxu0 0
    %2217 = vmatpush1.bf16.msra.mxu0 0
    %2218 = vmatprep.subr.bf16.mxu0 0
    %2219 = vmatpush1.bf16.msra.mxu0 %v1277
    %2220 = vmatprep.subr.bf16.mxu0 0
    %2221 = vmatpush1.bf16.msra.mxu0 %v1267
    %2222 = vmatprep.subr.bf16.mxu0 0
    %2223 = vmatpush1.bf16.msra.mxu0 %v1266
    %2224 = vmatprep.subr.bf16.mxu0 0
    %2225 = vmatpush2.bf16.msra.mxu0 0
    %2226 = vmatprep.subr.bf16.mxu0 0
    %2227 = vmatpush2.bf16.msra.mxu0 0
    %2228 = vmatprep.subr.bf16.mxu0 0
    %2229 = vmatpush2.bf16.msra.mxu0 0
    %2230 = vmatprep.subr.bf16.mxu0 0
    %2231 = vmatpush2.bf16.msra.mxu0 0
    %2232 = vmatprep.subr.bf16.mxu0 0
    %2233 = vmatpush2.bf16.msra.mxu0 0
    %2234 = vmatprep.subr.bf16.mxu0 0
    %2235 = vmatpush2.bf16.msra.mxu0 0
    %2236 = vmatprep.subr.bf16.mxu0 0
    %2237 = vmatpush2.bf16.msra.mxu0 0
    %2238 = vmatprep.subr.bf16.mxu0 0
    %2239 = vmatpush2.bf16.msra.mxu0 0
    %2240 = vmatprep.mubr.bf16.mxu0 0
    %2241 = vmatmul.mubr.bf16.gmra.mxu0 %v2206
    %v2242 = vpop.f32.mrf.mxu0
    %v2243 = vadd.f32 0.0, %v2242
    %v2244 = vpop.f32.mrf.mxu0
    %v2245 = vpop.f32.mrf.mxu0
    %v2246 = vpop.f32.mrf.mxu0
    %2247 = vdwg.mxu0
    %v2248 = vmul.f32 %v2194, %v1216
    %v2249 = vmul.f32 %v2194, %v1217
    %2251 = vrot.lane.b32.xlu0 %v2248, 96
    %v2252 = vpop.permute.xlu0 %2251
    %v2254 = vsel %vm1321, %v2252, %v2249
    %v2255 = vpack.c.bf16 %v2254, %v2254
    %v2257 = vsel %vm1348, %v2255, 0
    %2259 = vmatprep.subr.bf16.mxu0 0
    %2260 = vmatpush1.bf16.msra.mxu0 0
    %2261 = vmatprep.subr.bf16.mxu0 0
    %2262 = vmatpush1.bf16.msra.mxu0 0
    %2263 = vmatprep.subr.bf16.mxu0 0
    %2264 = vmatpush1.bf16.msra.mxu0 0
    %2265 = vmatprep.subr.bf16.mxu0 0
    %2266 = vmatpush1.bf16.msra.mxu0 0
    %2267 = vmatprep.subr.bf16.mxu0 0
    %2268 = vmatpush1.bf16.msra.mxu0 %v1343
    %2269 = vmatprep.subr.bf16.mxu0 0
    %2270 = vmatpush1.bf16.msra.mxu0 %v1342
    %2271 = vmatprep.subr.bf16.mxu0 0
    %2272 = vmatpush1.bf16.msra.mxu0 %v1341
    %2273 = vmatprep.subr.bf16.mxu0 0
    %2274 = vmatpush1.bf16.msra.mxu0 %v1340
    %2275 = vmatprep.subr.bf16.mxu0 0
    %2276 = vmatpush2.bf16.msra.mxu0 0
    %2277 = vmatprep.subr.bf16.mxu0 0
    %2278 = vmatpush2.bf16.msra.mxu0 0
    %2279 = vmatprep.subr.bf16.mxu0 0
    %2280 = vmatpush2.bf16.msra.mxu0 0
    %2281 = vmatprep.subr.bf16.mxu0 0
    %2282 = vmatpush2.bf16.msra.mxu0 0
    %2283 = vmatprep.subr.bf16.mxu0 0
    %2284 = vmatpush2.bf16.msra.mxu0 0
    %2285 = vmatprep.subr.bf16.mxu0 0
    %2286 = vmatpush2.bf16.msra.mxu0 0
    %2287 = vmatprep.subr.bf16.mxu0 0
    %2288 = vmatpush2.bf16.msra.mxu0 0
    %2289 = vmatprep.subr.bf16.mxu0 0
    %2290 = vmatpush2.bf16.msra.mxu0 0
    %2291 = vmatprep.mubr.bf16.mxu0 0
    %2292 = vmatmul.mubr.bf16.gmra.mxu0 %v2257
    %v2293 = vpop.f32.mrf.mxu0
    %v2294 = vadd.f32 0.0, %v2293
    %v2295 = vpop.f32.mrf.mxu0
    %v2296 = vpop.f32.mrf.mxu0
    %v2297 = vpop.f32.mrf.mxu0
    %2298 = vdwg.mxu0
    %v2299 = vadd.f32 %v2243, %v2294
    %v2300 = vmul.f32 %v2299, 0.5
    %v2301 = vtanh.pop %v2300
    %v2302 = vmul.f32 %v2301, 0.5
    %v2303 = vadd.f32 %v2302, 0.5
    %v2304 = vadd.f32 %v2294, %v1399
    %2306 = vrot.lane.b32.xlu0 %v2304, 64
    %v2307 = vpop.permute.xlu0 %2306
    %v2309 = vmul.f32 %v2303, %v2307
    %2311 = vrot.lane.b32.xlu0 %v2309, 64
    %v2312 = vpop.permute.xlu0 %2311
    %v2314 = vadd.f32 %v2243, %v2312
    %v2315 = vtanh.pop %v2314
    %v2316 = vsub.f32 1.0, %v2303
    %2318 = vrot.lane.b32.xlu0 %v2315, 96
    %v2319 = vpop.permute.xlu0 %2318
    %v2321 = vmul.f32 %v2316, %v2319
    %v2322 = vmul.f32 %v2303, %v2194
    %v2323 = vadd.f32 %v2321, %v2322
    %v2324 = vpack.c.bf16 %v1208, %v1208
    %v2325 = vld [vmem:[#allocation13] sm:$0xf]
    %v2326 = vld [vmem:[#allocation13 + $0x4] sm:$0xf]
    %v2327 = vld [vmem:[#allocation13 + $0x8] sm:$0xf]
    %v2328 = vld [vmem:[#allocation13 + $0xc] sm:$0xf]
    %v2329 = vld [vmem:[#allocation13 + $0x10] sm:$0xf]
    %v2330 = vld [vmem:[#allocation13 + $0x14] sm:$0xf]
    %v2331 = vld [vmem:[#allocation13 + $0x18] sm:$0xf]
    %v2332 = vld [vmem:[#allocation13 + $0x1c] sm:$0xf]
    %v2333 = vld [vmem:[%s1] sm:$0x3]
    %v2334 = vpack.c.bf16 %v2333, %v2333
    %v2335 = vld [vmem:[#allocation14] sm:$0x3]
    %vm2336 = vcmask 23552
    %v2338 = vsel %vm2336, %v2334, 0
    %v2341 = vand.u32 %v2335, %v715
    %2343 = vmatprep.subr.bf16.mxu0 0
    %2344 = vmatpush1.bf16.msra.mxu0 0
    %2345 = vmatprep.subr.bf16.mxu0 0
    %2346 = vmatpush1.bf16.msra.mxu0 0
    %2347 = vmatprep.subr.bf16.mxu0 0
    %2348 = vmatpush1.bf16.msra.mxu0 0
    %2349 = vmatprep.subr.bf16.mxu0 0
    %2350 = vmatpush1.bf16.msra.mxu0 0
    %2351 = vmatprep.subr.bf16.mxu0 0
    %2352 = vmatpush1.bf16.msra.mxu0 0
    %2353 = vmatprep.subr.bf16.mxu0 0
    %2354 = vmatpush1.bf16.msra.mxu0 0
    %2355 = vmatprep.subr.bf16.mxu0 0
    %2356 = vmatpush1.bf16.msra.mxu0 0
    %2357 = vmatprep.subr.bf16.mxu0 0
    %2358 = vmatpush1.bf16.msra.mxu0 %v2341
    %2359 = vmatprep.subr.bf16.mxu0 0
    %2360 = vmatpush2.bf16.msra.mxu0 0
    %2361 = vmatprep.subr.bf16.mxu0 0
    %2362 = vmatpush2.bf16.msra.mxu0 0
    %2363 = vmatprep.subr.bf16.mxu0 0
    %2364 = vmatpush2.bf16.msra.mxu0 0
    %2365 = vmatprep.subr.bf16.mxu0 0
    %2366 = vmatpush2.bf16.msra.mxu0 0
    %2367 = vmatprep.subr.bf16.mxu0 0
    %2368 = vmatpush2.bf16.msra.mxu0 0
    %2369 = vmatprep.subr.bf16.mxu0 0
    %2370 = vmatpush2.bf16.msra.mxu0 0
    %2371 = vmatprep.subr.bf16.mxu0 0
    %2372 = vmatpush2.bf16.msra.mxu0 0
    %2373 = vmatprep.subr.bf16.mxu0 0
    %2374 = vmatpush2.bf16.msra.mxu0 0
    %2375 = vmatprep.mubr.bf16.mxu0 0
    %2376 = vmatmul.mubr.bf16.gmra.mxu0 %v2338
    %v2377 = vpop.f32.mrf.mxu0
    %v2378 = vadd.f32 0.0, %v2377
    %v2379 = vpop.f32.mrf.mxu0
    %v2380 = vpop.f32.mrf.mxu0
    %v2381 = vpop.f32.mrf.mxu0
    %2382 = vdwg.mxu0
    %v2391 = vunpack.c.l.b16 %v2325
    %v2392 = vunpack.c.l.b16 %v2326
    %v2393 = vunpack.c.l.b16 %v2327
    %v2394 = vunpack.c.l.b16 %v2328
    %v2395 = vunpack.c.l.b16 %v2329
    %v2396 = vunpack.c.l.b16 %v2330
    %v2397 = vunpack.c.l.b16 %v2331
    %v2398 = vunpack.c.l.b16 %v2332
    %v2399 = vpack.c.b16 %v2392, %v2391
    %v2400 = vpack.c.b16 %v2394, %v2393
    %v2401 = vpack.c.b16 %v2396, %v2395
    %v2402 = vpack.c.b16 %v2398, %v2397
    %v2408 = vsel %vm1348, %v2324, 0
    %2410 = vmatprep.subr.bf16.mxu0 0
    %2411 = vmatpush1.bf16.msra.mxu0 0
    %2412 = vmatprep.subr.bf16.mxu0 0
    %2413 = vmatpush1.bf16.msra.mxu0 0
    %2414 = vmatprep.subr.bf16.mxu0 0
    %2415 = vmatpush1.bf16.msra.mxu0 0
    %2416 = vmatprep.subr.bf16.mxu0 0
    %2417 = vmatpush1.bf16.msra.mxu0 0
    %2418 = vmatprep.subr.bf16.mxu0 0
    %2419 = vmatpush1.bf16.msra.mxu0 %v2402
    %2420 = vmatprep.subr.bf16.mxu0 0
    %2421 = vmatpush1.bf16.msra.mxu0 %v2401
    %2422 = vmatprep.subr.bf16.mxu0 0
    %2423 = vmatpush1.bf16.msra.mxu0 %v2400
    %2424 = vmatprep.subr.bf16.mxu0 0
    %2425 = vmatpush1.bf16.msra.mxu0 %v2399
    %2426 = vmatprep.subr.bf16.mxu0 0
    %2427 = vmatpush2.bf16.msra.mxu0 0
    %2428 = vmatprep.subr.bf16.mxu0 0
    %2429 = vmatpush2.bf16.msra.mxu0 0
    %2430 = vmatprep.subr.bf16.mxu0 0
    %2431 = vmatpush2.bf16.msra.mxu0 0
    %2432 = vmatprep.subr.bf16.mxu0 0
    %2433 = vmatpush2.bf16.msra.mxu0 0
    %2434 = vmatprep.subr.bf16.mxu0 0
    %2435 = vmatpush2.bf16.msra.mxu0 0
    %2436 = vmatprep.subr.bf16.mxu0 0
    %2437 = vmatpush2.bf16.msra.mxu0 0
    %2438 = vmatprep.subr.bf16.mxu0 0
    %2439 = vmatpush2.bf16.msra.mxu0 0
    %2440 = vmatprep.subr.bf16.mxu0 0
    %2441 = vmatpush2.bf16.msra.mxu0 0
    %2442 = vmatprep.mubr.bf16.mxu0 0
    %2443 = vmatmul.mubr.bf16.gmra.mxu0 %v2408
    %v2444 = vpop.f32.mrf.mxu0
    %v2445 = vadd.f32 %v2378, %v2444
    %v2446 = vpop.f32.mrf.mxu0
    %v2447 = vpop.f32.mrf.mxu0
    %v2448 = vpop.f32.mrf.mxu0
    %2449 = vdwg.mxu0
    %v2450 = vpack.c.bf16 %v2323, %v2323
    %v2451 = vld [vmem:[#allocation16] sm:$0xf]
    %v2452 = vld [vmem:[#allocation16 + $0x4] sm:$0xf]
    %v2453 = vld [vmem:[#allocation16 + $0x8] sm:$0xf]
    %v2454 = vld [vmem:[#allocation16 + $0xc] sm:$0xf]
    %2456 = vrot.lane.b32.xlu0 %v2450, 96
    %v2457 = vpop.permute.xlu0 %2456
    %v2462 = vunpack.c.l.b16 %v2451
    %v2463 = vunpack.c.l.b16 %v2452
    %v2464 = vunpack.c.l.b16 %v2453
    %v2465 = vunpack.c.l.b16 %v2454
    %v2466 = vpack.c.b16 %v2463, %v2462
    %v2467 = vpack.c.b16 %v2465, %v2464
    %v2471 = vsel %vm1321, %v2457, 0
    %2473 = vmatprep.subr.bf16.mxu0 0
    %2474 = vmatpush1.bf16.msra.mxu0 0
    %2475 = vmatprep.subr.bf16.mxu0 0
    %2476 = vmatpush1.bf16.msra.mxu0 0
    %2477 = vmatprep.subr.bf16.mxu0 0
    %2478 = vmatpush1.bf16.msra.mxu0 0
    %2479 = vmatprep.subr.bf16.mxu0 0
    %2480 = vmatpush1.bf16.msra.mxu0 0
    %2481 = vmatprep.subr.bf16.mxu0 0
    %2482 = vmatpush1.bf16.msra.mxu0 0
    %2483 = vmatprep.subr.bf16.mxu0 0
    %2484 = vmatpush1.bf16.msra.mxu0 0
    %2485 = vmatprep.subr.bf16.mxu0 0
    %2486 = vmatpush1.bf16.msra.mxu0 %v2467
    %2487 = vmatprep.subr.bf16.mxu0 0
    %2488 = vmatpush1.bf16.msra.mxu0 %v2466
    %2489 = vmatprep.subr.bf16.mxu0 0
    %2490 = vmatpush2.bf16.msra.mxu0 0
    %2491 = vmatprep.subr.bf16.mxu0 0
    %2492 = vmatpush2.bf16.msra.mxu0 0
    %2493 = vmatprep.subr.bf16.mxu0 0
    %2494 = vmatpush2.bf16.msra.mxu0 0
    %2495 = vmatprep.subr.bf16.mxu0 0
    %2496 = vmatpush2.bf16.msra.mxu0 0
    %2497 = vmatprep.subr.bf16.mxu0 0
    %2498 = vmatpush2.bf16.msra.mxu0 0
    %2499 = vmatprep.subr.bf16.mxu0 0
    %2500 = vmatpush2.bf16.msra.mxu0 0
    %2501 = vmatprep.subr.bf16.mxu0 0
    %2502 = vmatpush2.bf16.msra.mxu0 0
    %2503 = vmatprep.subr.bf16.mxu0 0
    %2504 = vmatpush2.bf16.msra.mxu0 0
    %2505 = vmatprep.mubr.bf16.mxu0 0
    %2506 = vmatmul.mubr.bf16.gmra.mxu0 %v2471
    %v2507 = vpop.f32.mrf.mxu0
    %v2508 = vadd.f32 0.0, %v2507
    %v2509 = vpop.f32.mrf.mxu0
    %v2510 = vpop.f32.mrf.mxu0
    %v2511 = vpop.f32.mrf.mxu0
    %2512 = vdwg.mxu0
    %v2513 = vadd.f32 %v2445, %v2508
    %v2514 = vld [vmem:[#allocation16 + $0x10] sm:$0xf]
    %v2515 = vld [vmem:[#allocation16 + $0x14] sm:$0xf]
    %v2516 = vld [vmem:[#allocation16 + $0x18] sm:$0xf]
    %v2517 = vld [vmem:[#allocation16 + $0x1c] sm:$0xf]
    %v2518 = vrot.slane %v2450, 1
    %2519 = vrot.lane.b32.xlu0 %v2518, 96
    %v2520 = vpop.permute.xlu0 %2519
    %v2525 = vunpack.c.l.b16 %v2514
    %v2526 = vunpack.c.l.b16 %v2515
    %v2527 = vunpack.c.l.b16 %v2516
    %v2528 = vunpack.c.l.b16 %v2517
    %v2529 = vpack.c.b16 %v2526, %v2525
    %v2530 = vpack.c.b16 %v2528, %v2527
    %v2534 = vsel %vm1321, %v2520, 0
    %2536 = vmatprep.subr.bf16.mxu0 0
    %2537 = vmatpush1.bf16.msra.mxu0 0
    %2538 = vmatprep.subr.bf16.mxu0 0
    %2539 = vmatpush1.bf16.msra.mxu0 0
    %2540 = vmatprep.subr.bf16.mxu0 0
    %2541 = vmatpush1.bf16.msra.mxu0 0
    %2542 = vmatprep.subr.bf16.mxu0 0
    %2543 = vmatpush1.bf16.msra.mxu0 0
    %2544 = vmatprep.subr.bf16.mxu0 0
    %2545 = vmatpush1.bf16.msra.mxu0 0
    %2546 = vmatprep.subr.bf16.mxu0 0
    %2547 = vmatpush1.bf16.msra.mxu0 0
    %2548 = vmatprep.subr.bf16.mxu0 0
    %2549 = vmatpush1.bf16.msra.mxu0 %v2530
    %2550 = vmatprep.subr.bf16.mxu0 0
    %2551 = vmatpush1.bf16.msra.mxu0 %v2529
    %2552 = vmatprep.subr.bf16.mxu0 0
    %2553 = vmatpush2.bf16.msra.mxu0 0
    %2554 = vmatprep.subr.bf16.mxu0 0
    %2555 = vmatpush2.bf16.msra.mxu0 0
    %2556 = vmatprep.subr.bf16.mxu0 0
    %2557 = vmatpush2.bf16.msra.mxu0 0
    %2558 = vmatprep.subr.bf16.mxu0 0
    %2559 = vmatpush2.bf16.msra.mxu0 0
    %2560 = vmatprep.subr.bf16.mxu0 0
    %2561 = vmatpush2.bf16.msra.mxu0 0
    %2562 = vmatprep.subr.bf16.mxu0 0
    %2563 = vmatpush2.bf16.msra.mxu0 0
    %2564 = vmatprep.subr.bf16.mxu0 0
    %2565 = vmatpush2.bf16.msra.mxu0 0
    %2566 = vmatprep.subr.bf16.mxu0 0
    %2567 = vmatpush2.bf16.msra.mxu0 0
    %2568 = vmatprep.mubr.bf16.mxu0 0
    %2569 = vmatmul.mubr.bf16.gmra.mxu0 %v2534
    %v2570 = vpop.f32.mrf.mxu0
    %v2571 = vadd.f32 0.0, %v2570
    %v2572 = vpop.f32.mrf.mxu0
    %v2573 = vpop.f32.mrf.mxu0
    %v2574 = vpop.f32.mrf.mxu0
    %2575 = vdwg.mxu0
    %v2576 = vadd.f32 %v2513, %v2571
    %v2577 = vld [vmem:[#allocation17] sm:$0x1]
    %v2579 = vlaneseq
    %v2580 = vshrl.u32 %v2579, 7
    %v2581 = vsub.s32 0, %v2580
    %v2582 = vrot.slane %v2577, %v2581
    %v2584 = vadd.f32 %v2576, %v2582
    %v2585 = vtanh.pop %v2584
    %v2586 = vpack.c.bf16 %v2585, %v2585
    %v2587 = vld [vmem:[%s16] sm:$0xf]
    %v2588 = vld [vmem:[%s16 + $0x4] sm:$0xf]
    %v2589 = vld [vmem:[%s16 + $0x8] sm:$0xf]
    %v2590 = vld [vmem:[%s16 + $0xc] sm:$0xf]
    %v2591 = vld [vmem:[%s16 + $0x10] sm:$0xf]
    %v2592 = vld [vmem:[%s16 + $0x14] sm:$0xf]
    %v2593 = vld [vmem:[%s16 + $0x18] sm:$0xf]
    %v2594 = vld [vmem:[%s16 + $0x1c] sm:$0xf]
    %v2595 = vld [vmem:[#allocation19] sm:$0x1]
    %v2597 = vlaneseq
    %v2598 = vshrl.u32 %v2597, 7
    %v2599 = vsub.s32 0, %v2598
    %v2600 = vrot.slane %v2595, %v2599
    %v2610 = vunpack.c.l.b16 %v2587
    %v2611 = vunpack.c.l.b16 %v2588
    %v2612 = vunpack.c.l.b16 %v2589
    %v2613 = vunpack.c.l.b16 %v2590
    %v2614 = vunpack.c.l.b16 %v2591
    %v2615 = vunpack.c.l.b16 %v2592
    %v2616 = vunpack.c.l.b16 %v2593
    %v2617 = vunpack.c.l.b16 %v2594
    %v2618 = vpack.c.b16 %v2611, %v2610
    %v2619 = vpack.c.b16 %v2613, %v2612
    %v2620 = vpack.c.b16 %v2615, %v2614
    %v2621 = vpack.c.b16 %v2617, %v2616
    %v2627 = vsel %vm1348, %v2586, 0
    %2629 = vmatprep.subr.bf16.mxu0 0
    %2630 = vmatpush1.bf16.msra.mxu0 0
    %2631 = vmatprep.subr.bf16.mxu0 0
    %2632 = vmatpush1.bf16.msra.mxu0 0
    %2633 = vmatprep.subr.bf16.mxu0 0
    %2634 = vmatpush1.bf16.msra.mxu0 0
    %2635 = vmatprep.subr.bf16.mxu0 0
    %2636 = vmatpush1.bf16.msra.mxu0 0
    %2637 = vmatprep.subr.bf16.mxu0 0
    %2638 = vmatpush1.bf16.msra.mxu0 %v2621
    %2639 = vmatprep.subr.bf16.mxu0 0
    %2640 = vmatpush1.bf16.msra.mxu0 %v2620
    %2641 = vmatprep.subr.bf16.mxu0 0
    %2642 = vmatpush1.bf16.msra.mxu0 %v2619
    %2643 = vmatprep.subr.bf16.mxu0 0
    %2644 = vmatpush1.bf16.msra.mxu0 %v2618
    %2645 = vmatprep.subr.bf16.mxu0 0
    %2646 = vmatpush2.bf16.msra.mxu0 0
    %2647 = vmatprep.subr.bf16.mxu0 0
    %2648 = vmatpush2.bf16.msra.mxu0 0
    %2649 = vmatprep.subr.bf16.mxu0 0
    %2650 = vmatpush2.bf16.msra.mxu0 0
    %2651 = vmatprep.subr.bf16.mxu0 0
    %2652 = vmatpush2.bf16.msra.mxu0 0
    %2653 = vmatprep.subr.bf16.mxu0 0
    %2654 = vmatpush2.bf16.msra.mxu0 0
    %2655 = vmatprep.subr.bf16.mxu0 0
    %2656 = vmatpush2.bf16.msra.mxu0 0
    %2657 = vmatprep.subr.bf16.mxu0 0
    %2658 = vmatpush2.bf16.msra.mxu0 0
    %2659 = vmatprep.subr.bf16.mxu0 0
    %2660 = vmatpush2.bf16.msra.mxu0 0
    %2661 = vmatprep.mubr.bf16.mxu0 0
    %2662 = vmatmul.mubr.bf16.gmra.mxu0 %v2627
    %v2663 = vpop.f32.mrf.mxu0
    %v2664 = vadd.f32 %v2600, %v2663
    %v2665 = vpop.f32.mrf.mxu0
    %v2666 = vpop.f32.mrf.mxu0
    %v2667 = vpop.f32.mrf.mxu0
    %2668 = vdwg.mxu0
    %vm2669 = vcmask 50176
    %v2670 = vsel %vm2669, %v2664, -inf
    %2671 = vmax.xlane.f32.xlu0 %v2670
    %v2672 = vpop.xlane.xlu0 %2671
    %v2673 = vsub.f32 %v2664, %v2672
    %v2674 = vmul.f32 %v2673, 1.442695
    %v2675 = vpow.pop %v2674
    %v2676 = vsel %vm2669, %v2675, 0.0
    %2677 = vadd.xlane.f32.xlu0 %v2676
    %v2678 = vpop.xlane.xlu0 %2677
    %v2679 = vrcp.pop %v2678
    %v2680 = vmul.f32 %v2675, %v2679
    %2681 = vst.msk [vmem:[#allocation20] sm:$0x3] %vm2669, %v2680
    // Predicated region
    $region118: #{_actor_forward.1} parent=1 // pred_check
      _
    $region119: #{_actor_forward.1} parent=1 // pred_check_branch
      %2683 = sbr.rel (0) target = $region121
    $region120: #{_actor_forward.1} parent=1 // pred_region
      %s2685 = ssub.s32 32, 32
      %2686 = vsyncadd [#allocation4], %s2685
      %s2688 = sshll.u32 [#allocation20], 4
      %s2689 = int_to_ptr.vmem [resolvable:$true] %s2688
      %2691 = dma.vmem_to_hbm [thread:$0]  %s2689, 32, %s18, [#allocation4]
    $region121: #{_actor_forward.1} parent=1 // pred_fallthru
      _
    // Predicated region
    $region122: #{_actor_forward.1} parent=1 // pred_check
      _
    $region123: #{_actor_forward.1} parent=1 // pred_check_branch
      %2693 = sbr.rel (0) target = $region125
    $region124: #{_actor_forward.1} parent=1 // pred_region
      %2694 = dma.done [#allocation4], 32
    $region125: #{_actor_forward.1} parent=1 // pred_fallthru
      _
    %2695 = vsyncpa [#allocation3], 1
    %2696 = vsyncpa [#allocation6], 1
    %2697 = vsyncpa [#allocation9], 1
    %2698 = vsyncpa [#allocation12], 1
    %2699 = vsyncpa [#allocation15], 1
    %2700 = vsyncpa [#allocation18], 1
    %2701 = vsyncpa [#allocation4], 1

</llo_original>
